<compile_context>
chip_gen: v7x
topology: tpu7x:2x2x1
jax: 0.10.0
libtpu: 0.0.40
codegen_flags: <defaults>
</compile_context>

<pallas_src>
import functools
import math

import jax
import jax.numpy as jnp
import numpy as np
from jax import lax
from jax.experimental import pallas as pl
from jax.experimental.pallas import tpu as pltpu


# --------------------- kernel 1: input_proj + pos + mask ---------------------

def _inproj_kernel(x_ref, w_ref, b_ref, g_ref, be_ref, pos_ref, valid_ref,
                   gmask_ref, o_ref, *, gsize, eps):
    # x: (Cin, T) NCT slice;  w: (D, Cin)  (PyTorch Conv1d layout, k=1 squeezed).
    x = x_ref[0]
    w = w_ref[...]
    # Conv1d(kernel_size=1) == matmul over channels.  bf16 MXU, f32 accumulate.
    y = jnp.dot(w.astype(jnp.bfloat16), x.astype(jnp.bfloat16),
                preferred_element_type=jnp.float32)                 # (D, T)
    y = y + b_ref[...]                                              # (D, 1)
    T = y.shape[1]
    # GroupNorm(num_groups, D): stats per (sample, group) over group-chans x T.
    rowsum = jnp.sum(y, axis=1, keepdims=True)                      # (D, 1)
    rowsq = jnp.sum(y * y, axis=1, keepdims=True)                   # (D, 1)
    cnt = float(T * gsize)
    # gmask[i, j] = 1 iff channels i, j are in the same group; one matmul both
    # aggregates per group and broadcasts the stat back to every channel.
    mean_c = jnp.dot(gmask_ref[...], rowsum,
                     preferred_element_type=jnp.float32) / cnt       # (D, 1)
    sq_c = jnp.dot(gmask_ref[...], rowsq,
                   preferred_element_type=jnp.float32) / cnt         # (D, 1)
    var_c = jnp.maximum(sq_c - mean_c * mean_c, 0.0)                 # clamp >= 0
    ynorm = (y - mean_c) * lax.rsqrt(var_c + eps)
    # affine + sine position embedding + padding-mask multiply (fused epilogue)
    out_dt = (ynorm * g_ref[...] + be_ref[...] + pos_ref[...]) * valid_ref[0]
    # cheap in-kernel [D, T] -> [T, D] transpose so `memory` is channels-last.
    o_ref[0] = jnp.transpose(out_dt).astype(o_ref.dtype)


def input_proj_fused(src_nct, w_dc, b, gamma, beta, pos_dt, valid_b1t,
                     num_groups=32, eps=1e-5):
    """Conv1d(Cin, D, k=1) + GroupNorm(32, D) + pos + mask.  src: [B, Cin, T]."""
    B, Cin, T = src_nct.shape
    D = w_dc.shape[0]
    gsize = D // num_groups
    ch = np.arange(D)
    gmask = (ch[:, None] // gsize == ch[None, :] // gsize).astype(np.float32)
    gmask = jnp.asarray(gmask)                                       # (D, D)
    return pl.pallas_call(
        functools.partial(_inproj_kernel, gsize=gsize, eps=eps),
        out_shape=jax.ShapeDtypeStruct((B, T, D), jnp.float32),
        grid=(B,),
        in_specs=[pl.BlockSpec((1, Cin, T), lambda bb: (bb, 0, 0)),
                  pl.BlockSpec((D, Cin), lambda bb: (0, 0)),
                  pl.BlockSpec((D, 1), lambda bb: (0, 0)),
                  pl.BlockSpec((D, 1), lambda bb: (0, 0)),
                  pl.BlockSpec((D, 1), lambda bb: (0, 0)),
                  pl.BlockSpec((D, T), lambda bb: (0, 0)),
                  pl.BlockSpec((1, 1, T), lambda bb: (bb, 0, 0)),
                  pl.BlockSpec((D, D), lambda bb: (0, 0))],
        out_specs=pl.BlockSpec((1, T, D), lambda bb: (bb, 0, 0)),
        compiler_params=pltpu.CompilerParams(dimension_semantics=("parallel",)),
    )(src_nct, w_dc, b.reshape(D, 1), gamma.reshape(D, 1), beta.reshape(D, 1),
      pos_dt, valid_b1t, gmask)


# ----------------- kernel 2: fused decoder + self-attn weights ---------------

def _decoder_kernel(mem_ref, refq_ref, qposw_ref, qposb_ref,
                    w1_ref, b1_ref, w2_ref, b2_ref,
                    hs_ref, cw_ref, sw_ref, *, scale, num_layers):
    mem = mem_ref[0]                                                 # (T, D)
    # query positional embedding from reference points (former separate linear).
    qpos = jnp.dot(refq_ref[...], qposw_ref[...],
                   preferred_element_type=jnp.float32) + qposb_ref[...]   # (Q, D)
    tgt = jnp.zeros_like(qpos)
    p = None
    for l in range(num_layers):                                      # unrolled
        q = tgt + qpos
        # scores: contract last dims (trans_b), no materialized K^T.
        s = lax.dot_general(q, mem, (((1,), (1,)), ((), ())),
                            preferred_element_type=jnp.float32) * scale   # (Q, T)
        s = s - jnp.max(s, axis=-1, keepdims=True)
        e = jnp.exp(s)
        p = e * pl.reciprocal(jnp.sum(e, axis=-1, keepdims=True), approx=True)
        tgt = tgt + jnp.dot(p, mem, preferred_element_type=jnp.float32)   # (Q, D)
        h = jnp.maximum(
            jnp.dot(tgt, w1_ref[l], preferred_element_type=jnp.float32)
            + b1_ref[l], 0.0)
        h = jnp.dot(h, w2_ref[l], preferred_element_type=jnp.float32) + b2_ref[l]
        tgt = tgt + h
        hs_ref[l, 0] = tgt.astype(hs_ref.dtype)
    cw_ref[0] = p.astype(cw_ref.dtype)                               # last-layer cross-attn

    # encoder self-attention, weights-only (the p@v product was dead work).
    ss = lax.dot_general(mem, mem, (((1,), (1,)), ((), ())),
                         preferred_element_type=jnp.float32) * scale      # (T, T)
    ss = ss - jnp.max(ss, axis=-1, keepdims=True)
    ee = jnp.exp(ss)
    sw_ref[0] = (ee * pl.reciprocal(jnp.sum(ee, axis=-1, keepdims=True),
                                    approx=True)).astype(sw_ref.dtype)


def decoder_fused(mem, refpoints, qpos_w, qpos_b, w1, b1, w2, b2):
    B, T, D = mem.shape
    Q = refpoints.shape[0]
    L = w1.shape[0]
    scale = 1.0 / math.sqrt(D)
    return pl.pallas_call(
        functools.partial(_decoder_kernel, scale=scale, num_layers=L),
        out_shape=(jax.ShapeDtypeStruct((L, B, Q, D), jnp.float32),   # hs
                   jax.ShapeDtypeStruct((B, Q, T), jnp.float32),      # C_weights
                   jax.ShapeDtypeStruct((B, T, T), jnp.float32)),     # self-attn w
        grid=(B,),
        in_specs=[pl.BlockSpec((1, T, D), lambda bb: (bb, 0, 0)),
                  pl.BlockSpec((Q, 2), lambda bb: (0, 0)),
                  pl.BlockSpec((2, D), lambda bb: (0, 0)),
                  pl.BlockSpec((1, D), lambda bb: (0, 0)),
                  pl.BlockSpec((L, D, D), lambda bb: (0, 0, 0)),
                  pl.BlockSpec((L, 1, D), lambda bb: (0, 0, 0)),
                  pl.BlockSpec((L, D, D), lambda bb: (0, 0, 0)),
                  pl.BlockSpec((L, 1, D), lambda bb: (0, 0, 0))],
        out_specs=(pl.BlockSpec((L, 1, Q, D), lambda bb: (0, bb, 0, 0)),
                   pl.BlockSpec((1, Q, T), lambda bb: (bb, 0, 0)),
                   pl.BlockSpec((1, T, T), lambda bb: (bb, 0, 0))),
        compiler_params=pltpu.CompilerParams(dimension_semantics=("parallel",)),
    )(mem, refpoints, qpos_w, qpos_b.reshape(1, D), w1, b1, w2, b2)


# ---------------------- kernel 3: fused detection heads ----------------------

def _heads_kernel(hs_ref, cw_ref, cb_ref, w0_ref, b0_ref, w1_ref, b1_ref,
                  w2_ref, b2_ref, ref_ref, logits_ref, coords_ref):
    x = hs_ref[...]                                                  # (M, D), read once
    logits = jnp.dot(x, cw_ref[...], preferred_element_type=jnp.float32) + cb_ref[...]
    logits_ref[...] = logits.astype(logits_ref.dtype)
    h = jnp.maximum(
        jnp.dot(x, w0_ref[...], preferred_element_type=jnp.float32) + b0_ref[...], 0.0)
    h = jnp.maximum(
        jnp.dot(h, w1_ref[...], preferred_element_type=jnp.float32) + b1_ref[...], 0.0)
    y = jnp.dot(h, w2_ref[...], preferred_element_type=jnp.float32) + b2_ref[...]
    # + inverse_sigmoid(reference), clamped like the PyTorch helper; then sigmoid.
    r = jnp.clip(ref_ref[...], 0.0, 1.0)
    r1 = jnp.maximum(r, 1e-5)
    r2 = jnp.maximum(1.0 - r, 1e-5)
    y = y + jnp.log(r1 / r2)
    coords_ref[...] = jax.nn.sigmoid(y).astype(coords_ref.dtype)


def heads_fused(hs_flat, cls_w, cls_b, seg_w0, seg_b0, seg_w1, seg_b1,
                seg_w2, seg_b2, ref_flat):
    M, D = hs_flat.shape
    C = cls_w.shape[1]
    return pl.pallas_call(
        _heads_kernel,
        out_shape=(jax.ShapeDtypeStruct((M, C), jnp.float32),
                   jax.ShapeDtypeStruct((M, 2), jnp.float32)),
        grid=(1,),
        in_specs=[pl.BlockSpec((M, D), lambda i: (0, 0)),
                  pl.BlockSpec((D, C), lambda i: (0, 0)),
                  pl.BlockSpec((1, C), lambda i: (0, 0)),
                  pl.BlockSpec((D, D), lambda i: (0, 0)),
                  pl.BlockSpec((1, D), lambda i: (0, 0)),
                  pl.BlockSpec((D, D), lambda i: (0, 0)),
                  pl.BlockSpec((1, D), lambda i: (0, 0)),
                  pl.BlockSpec((D, 2), lambda i: (0, 0)),
                  pl.BlockSpec((1, 2), lambda i: (0, 0)),
                  pl.BlockSpec((M, 2), lambda i: (0, 0))],
        out_specs=(pl.BlockSpec((M, C), lambda i: (0, 0)),
                   pl.BlockSpec((M, 2), lambda i: (0, 0))),
    )(hs_flat, cls_w, cls_b.reshape(1, C), seg_w0, seg_b0.reshape(1, D),
      seg_w1, seg_b1.reshape(1, D), seg_w2, seg_b2.reshape(1, 2), ref_flat)


# ------------------------------- parameters ---------------------------------

def init_params(key, Cin=2048, D=32, num_classes=5, num_queries=8, num_layers=2):
    ks = jax.random.split(key, 16)

    def uni(k, shape, bound):
        return jax.random.uniform(k, shape, jnp.float32, -bound, bound)

    p = {}
    # input_proj: Conv1d(2048, D, 1) xavier_uniform weight (PyTorch [out,in] layout),
    # zero bias; GroupNorm affine.
    xb = math.sqrt(6.0 / (Cin + D))
    p["proj_w"] = uni(ks[0], (D, Cin), xb)
    p["proj_b"] = jnp.zeros((D,), jnp.float32)
    p["gn_gamma"] = jnp.ones((D,), jnp.float32)
    p["gn_beta"] = jnp.zeros((D,), jnp.float32)
    # class_embed: Linear(D, num_classes); bias = -log((1-0.01)/0.01)
    lb = 1.0 / math.sqrt(D)
    p["cls_w"] = uni(ks[1], (D, num_classes), lb)
    p["cls_b"] = jnp.full((num_classes,), -math.log((1 - 0.01) / 0.01), jnp.float32)
    # segment_embed: MLP(D, D, 2, 3); last layer zero-initialized (as in __init__)
    p["seg_w0"] = uni(ks[2], (D, D), lb)
    p["seg_b0"] = uni(ks[3], (D,), lb)
    p["seg_w1"] = uni(ks[4], (D, D), lb)
    p["seg_b1"] = uni(ks[5], (D,), lb)
    p["seg_w2"] = jnp.zeros((D, 2), jnp.float32)
    p["seg_b2"] = jnp.zeros((2,), jnp.float32)
    # refpoint_embed: Embedding(num_queries, 2)
    p["refpoints"] = jax.random.normal(ks[6], (num_queries, 2), jnp.float32)
    # stand-in transformer params (stacked per layer for the fused decoder kernel)
    p["qpos_w"] = uni(ks[7], (2, D), 1.0 / math.sqrt(2.0))
    p["qpos_b"] = jnp.zeros((D,), jnp.float32)
    w1s, b1s, w2s, b2s = [], [], [], []
    for l in range(num_layers):
        kk = jax.random.split(ks[8 + l], 4)
        w1s.append(uni(kk[0], (D, D), lb))
        b1s.append(uni(kk[1], (1, D), lb))
        w2s.append(uni(kk[2], (D, D), lb))
        b2s.append(uni(kk[3], (1, D), lb))
    p["dec_w1"] = jnp.stack(w1s)      # (L, D, D)
    p["dec_b1"] = jnp.stack(b1s)      # (L, 1, D)
    p["dec_w2"] = jnp.stack(w2s)
    p["dec_b2"] = jnp.stack(b2s)
    return p


# --------------------------------- forward ----------------------------------

def sine_position_embedding_dt(T, D):
    """Fixed 1-D sine embedding, generated directly in (D, T) layout."""
    t = jnp.arange(T, dtype=jnp.float32)[None, :]                    # (1, T)
    dim_i = jnp.arange(D // 2, dtype=jnp.float32)[:, None]           # (D/2, 1)
    freq = 10000.0 ** (2.0 * dim_i / D)
    ang = t / freq                                                   # (D/2, T)
    return jnp.concatenate([jnp.sin(ang), jnp.cos(ang)], axis=0)     # (D, T)


def tadtr_forward(params, src, mask):
    """src: [B, 2048, T] (NCT), mask: [B, T] bool (True on padded positions)."""
    B, Cin, T = src.shape
    D = params["proj_w"].shape[0]
    Q = params["refpoints"].shape[0]
    L = params["dec_w1"].shape[0]
    num_classes = params["cls_w"].shape[1]

    # position embedding (external module in TadTR; fixed sine stand-in) + mask
    pos_dt = sine_position_embedding_dt(T, D)
    valid = (1.0 - mask.astype(jnp.float32)).reshape(B, 1, T)

    # 1) Conv1d(k=1) + GroupNorm(32, D) + pos-add + mask   [one Pallas kernel]
    mem = input_proj_fused(src, params["proj_w"], params["proj_b"],
                           params["gn_gamma"], params["gn_beta"],
                           pos_dt, valid)                            # [B, T, D]

    # 2) stand-in transformer decoder (all layers) + encoder self-attn weights
    hs, C_weights, self_w = decoder_fused(
        mem, params["refpoints"], params["qpos_w"], params["qpos_b"],
        params["dec_w1"], params["dec_b1"], params["dec_w2"], params["dec_b2"])
    Q_weights = self_w
    K_weights = self_w   # TODO(synk): stand-in aliases Q/K weights; real MSDeformAttn differs.

    reference = jax.nn.sigmoid(
        jnp.broadcast_to(params["refpoints"][None], (B, Q, 2)))      # [B, Q, 2]

    # 3) detection heads (class_embed + segment_embed MLP + ref offset + sigmoid)
    hs_flat = hs.reshape(L * B * Q, D)
    ref_flat = jnp.broadcast_to(reference[None], (L, B, Q, 2)).reshape(L * B * Q, 2)
    logits_flat, coords_flat = heads_fused(
        hs_flat, params["cls_w"], params["cls_b"],
        params["seg_w0"], params["seg_b0"], params["seg_w1"], params["seg_b1"],
        params["seg_w2"], params["seg_b2"], ref_flat)
    logits = logits_flat.reshape(L, B, Q, num_classes)
    coords = coords_flat.reshape(L, B, Q, 2)

    out = {"pred_logits": logits[-1],
           "pred_segments": coords[-1],
           "Q_weights": Q_weights,
           "K_weights": K_weights,
           "C_weights": C_weights,
           "memory": mem}
    # aux_loss=True
    out["aux_outputs"] = [{"pred_logits": logits[l], "pred_segments": coords[l]}
                          for l in range(L - 1)]
    # TODO(synk): with_act_reg branch (RoIAlign + actionness head) is disabled
    # by default (with_act_reg=False) and not implemented.
    return out


# ----------------------------------- main ------------------------------------

if __name__ == "__main__":
    key = jax.random.PRNGKey(0)
    B, Cin, T = 2, 2048, 16          # Conv1d in_channels is hardcoded to 2048
    D, num_classes, num_queries, num_layers = 32, 5, 8, 2

    kp, kx = jax.random.split(key)
    params = init_params(kp, Cin=Cin, D=D, num_classes=num_classes,
                         num_queries=num_queries, num_layers=num_layers)
    src = jax.random.normal(kx, (B, Cin, T), jnp.float32)
    mask = jnp.zeros((B, T), dtype=jnp.bool_)    # no padding

    fwd = jax.jit(tadtr_forward)
    out = fwd(params, src, mask)
    out = jax.block_until_ready(out)

    assert out["pred_logits"].shape == (B, num_queries, num_classes)
    assert out["pred_segments"].shape == (B, num_queries, 2)
    assert out["C_weights"].shape == (B, num_queries, T)
    assert out["Q_weights"].shape == (B, T, T)
    assert out["memory"].shape == (B, T, D)
    assert len(out["aux_outputs"]) == num_layers - 1
    print("KERNEL_OK")
</pallas_src>

<mosaic_0001>
module attributes {stable_mosaic.version = 11 : i64} {
  func.func @_inproj_kernel(%arg0: i32, %arg1: memref<1x2048x16xf32, #tpu.memory_space<vmem>>, %arg2: memref<32x2048xf32, #tpu.memory_space<vmem>>, %arg3: memref<32x1xf32, #tpu.memory_space<vmem>>, %arg4: memref<32x1xf32, #tpu.memory_space<vmem>>, %arg5: memref<32x1xf32, #tpu.memory_space<vmem>>, %arg6: memref<32x16xf32, #tpu.memory_space<vmem>>, %arg7: memref<1x1x16xf32, #tpu.memory_space<vmem>>, %arg8: memref<32x32xf32, #tpu.memory_space<vmem>>, %arg9: memref<1x16x32xf32, #tpu.memory_space<vmem>>) attributes {dimension_semantics = [#tpu.dimension_semantics<parallel>], iteration_bounds = array<i64: 2>, scalar_prefetch = 0 : i64, scratch_operands = 0 : i64, tpu.core_type = #tpu.core_type<tc>, window_params = [{transform_indices = @transform_0, window_bounds = array<i64: 1, 2048, 16>}, {pipeline_mode = #tpu.pipeline_mode<synchronous>, transform_indices = @transform_1, window_bounds = array<i64: 32, 2048>}, {pipeline_mode = #tpu.pipeline_mode<synchronous>, transform_indices = @transform_2, window_bounds = array<i64: 32, 1>}, {pipeline_mode = #tpu.pipeline_mode<synchronous>, transform_indices = @transform_3, window_bounds = array<i64: 32, 1>}, {pipeline_mode = #tpu.pipeline_mode<synchronous>, transform_indices = @transform_4, window_bounds = array<i64: 32, 1>}, {pipeline_mode = #tpu.pipeline_mode<synchronous>, transform_indices = @transform_5, window_bounds = array<i64: 32, 16>}, {transform_indices = @transform_6, window_bounds = array<i64: 1, 1, 16>}, {pipeline_mode = #tpu.pipeline_mode<synchronous>, transform_indices = @transform_7, window_bounds = array<i64: 32, 32>}, {transform_indices = @transform_8, window_bounds = array<i64: 1, 16, 32>}]} {
    %c0 = arith.constant 0 : index
    %c0_0 = arith.constant 0 : index
    %c0_1 = arith.constant 0 : index
    %0 = vector.load %arg1[%c0, %c0_0, %c0_1] : memref<1x2048x16xf32, #tpu.memory_space<vmem>>, vector<1x2048x16xf32>
    %1 = vector.shape_cast %0 : vector<1x2048x16xf32> to vector<2048x16xf32>
    %c0_2 = arith.constant 0 : index
    %c0_3 = arith.constant 0 : index
    %2 = vector.load %arg2[%c0_2, %c0_3] : memref<32x2048xf32, #tpu.memory_space<vmem>>, vector<32x2048xf32>
    %3 = arith.truncf %2 : vector<32x2048xf32> to vector<32x2048xbf16>
    %4 = arith.truncf %1 : vector<2048x16xf32> to vector<2048x16xbf16>
    %cst = arith.constant dense<0.000000e+00> : vector<32x16xf32>
    %5 = tpu.matmul %3, %4, %cst {dimension_numbers = #tpu.dot_dimension_numbers<[1], [0], [0], [1], [0, 0, 1, 1], [], []>} : vector<32x2048xbf16>, vector<2048x16xbf16>, vector<32x16xf32> -> vector<32x16xf32>
    %c0_4 = arith.constant 0 : index
    %c0_5 = arith.constant 0 : index
    %6 = vector.load %arg3[%c0_4, %c0_5] : memref<32x1xf32, #tpu.memory_space<vmem>>, vector<32x1xf32>
    %7 = vector.broadcast %6 : vector<32x1xf32> to vector<32x16xf32>
    %8 = arith.addf %5, %7 : vector<32x16xf32>
    %cst_6 = arith.constant dense<0.000000e+00> : vector<32xf32>
    %9 = vector.multi_reduction <add>, %8, %cst_6 [1] : vector<32x16xf32> to vector<32xf32>
    %10 = vector.shape_cast %9 : vector<32xf32> to vector<32x1xf32>
    %11 = arith.mulf %8, %8 : vector<32x16xf32>
    %cst_7 = arith.constant dense<0.000000e+00> : vector<32xf32>
    %12 = vector.multi_reduction <add>, %11, %cst_7 [1] : vector<32x16xf32> to vector<32xf32>
    %13 = vector.shape_cast %12 : vector<32xf32> to vector<32x1xf32>
    %c0_8 = arith.constant 0 : index
    %c0_9 = arith.constant 0 : index
    %14 = vector.load %arg8[%c0_8, %c0_9] : memref<32x32xf32, #tpu.memory_space<vmem>>, vector<32x32xf32>
    %cst_10 = arith.constant dense<0.000000e+00> : vector<32x1xf32>
    %15 = tpu.matmul %14, %10, %cst_10 {dimension_numbers = #tpu.dot_dimension_numbers<[1], [0], [0], [1], [0, 0, 1, 1], [], []>} : vector<32x32xf32>, vector<32x1xf32>, vector<32x1xf32> -> vector<32x1xf32>
    %cst_11 = arith.constant 1.600000e+01 : f32
    %16 = vector.broadcast %cst_11 : f32 to vector<32x1xf32>
    %17 = arith.divf %15, %16 : vector<32x1xf32>
    %c0_12 = arith.constant 0 : index
    %c0_13 = arith.constant 0 : index
    %18 = vector.load %arg8[%c0_12, %c0_13] : memref<32x32xf32, #tpu.memory_space<vmem>>, vector<32x32xf32>
    %cst_14 = arith.constant dense<0.000000e+00> : vector<32x1xf32>
    %19 = tpu.matmul %18, %13, %cst_14 {dimension_numbers = #tpu.dot_dimension_numbers<[1], [0], [0], [1], [0, 0, 1, 1], [], []>} : vector<32x32xf32>, vector<32x1xf32>, vector<32x1xf32> -> vector<32x1xf32>
    %cst_15 = arith.constant 1.600000e+01 : f32
    %20 = vector.broadcast %cst_15 : f32 to vector<32x1xf32>
    %21 = arith.divf %19, %20 : vector<32x1xf32>
    %22 = arith.mulf %17, %17 : vector<32x1xf32>
    %23 = arith.subf %21, %22 : vector<32x1xf32>
    %cst_16 = arith.constant 0.000000e+00 : f32
    %24 = vector.broadcast %cst_16 : f32 to vector<32x1xf32>
    %25 = arith.maximumf %23, %24 : vector<32x1xf32>
    %26 = vector.broadcast %17 : vector<32x1xf32> to vector<32x16xf32>
    %27 = arith.subf %8, %26 : vector<32x16xf32>
    %cst_17 = arith.constant 9.99999974E-6 : f32
    %28 = vector.broadcast %cst_17 : f32 to vector<32x1xf32>
    %29 = arith.addf %25, %28 : vector<32x1xf32>
    %30 = math.rsqrt %29 : vector<32x1xf32>
    %31 = vector.broadcast %30 : vector<32x1xf32> to vector<32x16xf32>
    %32 = arith.mulf %27, %31 : vector<32x16xf32>
    %c0_18 = arith.constant 0 : index
    %c0_19 = arith.constant 0 : index
    %33 = vector.load %arg4[%c0_18, %c0_19] : memref<32x1xf32, #tpu.memory_space<vmem>>, vector<32x1xf32>
    %34 = vector.broadcast %33 : vector<32x1xf32> to vector<32x16xf32>
    %35 = arith.mulf %32, %34 : vector<32x16xf32>
    %c0_20 = arith.constant 0 : index
    %c0_21 = arith.constant 0 : index
    %36 = vector.load %arg5[%c0_20, %c0_21] : memref<32x1xf32, #tpu.memory_space<vmem>>, vector<32x1xf32>
    %37 = vector.broadcast %36 : vector<32x1xf32> to vector<32x16xf32>
    %38 = arith.addf %35, %37 : vector<32x16xf32>
    %c0_22 = arith.constant 0 : index
    %c0_23 = arith.constant 0 : index
    %39 = vector.load %arg6[%c0_22, %c0_23] : memref<32x16xf32, #tpu.memory_space<vmem>>, vector<32x16xf32>
    %40 = arith.addf %38, %39 : vector<32x16xf32>
    %c0_24 = arith.constant 0 : index
    %c0_25 = arith.constant 0 : index
    %c0_26 = arith.constant 0 : index
    %41 = vector.load %arg7[%c0_24, %c0_25, %c0_26] : memref<1x1x16xf32, #tpu.memory_space<vmem>>, vector<1x1x16xf32>
    %42 = vector.shape_cast %41 : vector<1x1x16xf32> to vector<1x16xf32>
    %43 = vector.broadcast %42 : vector<1x16xf32> to vector<32x16xf32>
    %44 = arith.mulf %40, %43 : vector<32x16xf32>
    %45 = tpu.transpose %44, [1, 0] : vector<32x16xf32> -> vector<16x32xf32>
    %c0_27 = arith.constant 0 : index
    %c0_28 = arith.constant 0 : index
    %c0_29 = arith.constant 0 : index
    %46 = vector.load %arg9[%c0_27, %c0_28, %c0_29] : memref<1x16x32xf32, #tpu.memory_space<vmem>>, vector<1x16x32xf32>
    %47 = vector.shape_cast %46 : vector<1x16x32xf32> to vector<16x32xf32>
    %48 = vector.shape_cast %45 : vector<16x32xf32> to vector<1x16x32xf32>
    tpu.vector_store %arg9[%c0_27, %c0_28, %c0_29], %48 {strides = array<i32>} : memref<1x16x32xf32, #tpu.memory_space<vmem>>, vector<1x16x32xf32>,
    return
  }
  func.func @transform_0(%arg0: i32) -> (i32, i32, i32) {
    %c0_i32 = arith.constant 0 : i32
    %c0_i32_0 = arith.constant 0 : i32
    %c0_i32_1 = arith.constant 0 : i32
    return %arg0, %c0_i32, %c0_i32_0 : i32, i32, i32
  }
  func.func @transform_1(%arg0: i32) -> (i32, i32) {
    %c0_i32 = arith.constant 0 : i32
    %c0_i32_0 = arith.constant 0 : i32
    %c0_i32_1 = arith.constant 0 : i32
    return %c0_i32, %c0_i32_0 : i32, i32
  }
  func.func @transform_2(%arg0: i32) -> (i32, i32) {
    %c0_i32 = arith.constant 0 : i32
    %c0_i32_0 = arith.constant 0 : i32
    %c0_i32_1 = arith.constant 0 : i32
    return %c0_i32, %c0_i32_0 : i32, i32
  }
  func.func @transform_3(%arg0: i32) -> (i32, i32) {
    %c0_i32 = arith.constant 0 : i32
    %c0_i32_0 = arith.constant 0 : i32
    %c0_i32_1 = arith.constant 0 : i32
    return %c0_i32, %c0_i32_0 : i32, i32
  }
  func.func @transform_4(%arg0: i32) -> (i32, i32) {
    %c0_i32 = arith.constant 0 : i32
    %c0_i32_0 = arith.constant 0 : i32
    %c0_i32_1 = arith.constant 0 : i32
    return %c0_i32, %c0_i32_0 : i32, i32
  }
  func.func @transform_5(%arg0: i32) -> (i32, i32) {
    %c0_i32 = arith.constant 0 : i32
    %c0_i32_0 = arith.constant 0 : i32
    %c0_i32_1 = arith.constant 0 : i32
    return %c0_i32, %c0_i32_0 : i32, i32
  }
  func.func @transform_6(%arg0: i32) -> (i32, i32, i32) {
    %c0_i32 = arith.constant 0 : i32
    %c0_i32_0 = arith.constant 0 : i32
    %c0_i32_1 = arith.constant 0 : i32
    return %arg0, %c0_i32, %c0_i32_0 : i32, i32, i32
  }
  func.func @transform_7(%arg0: i32) -> (i32, i32) {
    %c0_i32 = arith.constant 0 : i32
    %c0_i32_0 = arith.constant 0 : i32
    %c0_i32_1 = arith.constant 0 : i32
    return %c0_i32, %c0_i32_0 : i32, i32
  }
  func.func @transform_8(%arg0: i32) -> (i32, i32, i32) {
    %c0_i32 = arith.constant 0 : i32
    %c0_i32_0 = arith.constant 0 : i32
    %c0_i32_1 = arith.constant 0 : i32
    return %arg0, %c0_i32, %c0_i32_0 : i32, i32, i32
  }
}

module attributes {stable_mosaic.version = 11 : i64} {
  func.func @_decoder_kernel(%arg0: i32, %arg1: memref<1x16x32xf32, #tpu.memory_space<vmem>>, %arg2: memref<8x2xf32, #tpu.memory_space<vmem>>, %arg3: memref<2x32xf32, #tpu.memory_space<vmem>>, %arg4: memref<1x32xf32, #tpu.memory_space<vmem>>, %arg5: memref<2x32x32xf32, #tpu.memory_space<vmem>>, %arg6: memref<2x1x32xf32, #tpu.memory_space<vmem>>, %arg7: memref<2x32x32xf32, #tpu.memory_space<vmem>>, %arg8: memref<2x1x32xf32, #tpu.memory_space<vmem>>, %arg9: memref<2x1x8x32xf32, #tpu.memory_space<vmem>>, %arg10: memref<1x8x16xf32, #tpu.memory_space<vmem>>, %arg11: memref<1x16x16xf32, #tpu.memory_space<vmem>>) attributes {dimension_semantics = [#tpu.dimension_semantics<parallel>], iteration_bounds = array<i64: 2>, scalar_prefetch = 0 : i64, scratch_operands = 0 : i64, tpu.core_type = #tpu.core_type<tc>, window_params = [{transform_indices = @transform_0, window_bounds = array<i64: 1, 16, 32>}, {pipeline_mode = #tpu.pipeline_mode<synchronous>, transform_indices = @transform_1, window_bounds = array<i64: 8, 2>}, {pipeline_mode = #tpu.pipeline_mode<synchronous>, transform_indices = @transform_2, window_bounds = array<i64: 2, 32>}, {pipeline_mode = #tpu.pipeline_mode<synchronous>, transform_indices = @transform_3, window_bounds = array<i64: 1, 32>}, {pipeline_mode = #tpu.pipeline_mode<synchronous>, transform_indices = @transform_4, window_bounds = array<i64: 2, 32, 32>}, {pipeline_mode = #tpu.pipeline_mode<synchronous>, transform_indices = @transform_5, window_bounds = array<i64: 2, 1, 32>}, {pipeline_mode = #tpu.pipeline_mode<synchronous>, transform_indices = @transform_6, window_bounds = array<i64: 2, 32, 32>}, {pipeline_mode = #tpu.pipeline_mode<synchronous>, transform_indices = @transform_7, window_bounds = array<i64: 2, 1, 32>}, {transform_indices = @transform_8, window_bounds = array<i64: 2, 1, 8, 32>}, {transform_indices = @transform_9, window_bounds = array<i64: 1, 8, 16>}, {transform_indices = @transform_10, window_bounds = array<i64: 1, 16, 16>}]} {
    %c0 = arith.constant 0 : index
    %c0_0 = arith.constant 0 : index
    %c0_1 = arith.constant 0 : index
    %0 = vector.load %arg1[%c0, %c0_0, %c0_1] : memref<1x16x32xf32, #tpu.memory_space<vmem>>, vector<1x16x32xf32>
    %1 = vector.shape_cast %0 : vector<1x16x32xf32> to vector<16x32xf32>
    %c0_2 = arith.constant 0 : index
    %c0_3 = arith.constant 0 : index
    %2 = vector.load %arg2[%c0_2, %c0_3] : memref<8x2xf32, #tpu.memory_space<vmem>>, vector<8x2xf32>
    %c0_4 = arith.constant 0 : index
    %c0_5 = arith.constant 0 : index
    %3 = vector.load %arg3[%c0_4, %c0_5] : memref<2x32xf32, #tpu.memory_space<vmem>>, vector<2x32xf32>
    %cst = arith.constant dense<0.000000e+00> : vector<8x32xf32>
    %4 = tpu.matmul %2, %3, %cst {dimension_numbers = #tpu.dot_dimension_numbers<[1], [0], [0], [1], [0, 0, 1, 1], [], []>} : vector<8x2xf32>, vector<2x32xf32>, vector<8x32xf32> -> vector<8x32xf32>
    %c0_6 = arith.constant 0 : index
    %c0_7 = arith.constant 0 : index
    %5 = vector.load %arg4[%c0_6, %c0_7] : memref<1x32xf32, #tpu.memory_space<vmem>>, vector<1x32xf32>
    %6 = vector.broadcast %5 : vector<1x32xf32> to vector<8x32xf32>
    %7 = arith.addf %4, %6 : vector<8x32xf32>
    %cst_8 = arith.constant 0.000000e+00 : f32
    %8 = vector.broadcast %cst_8 : f32 to vector<8x32xf32>
    %9 = arith.addf %8, %7 : vector<8x32xf32>
    %cst_9 = arith.constant dense<0.000000e+00> : vector<8x16xf32>
    %10 = tpu.matmul %9, %1, %cst_9 {dimension_numbers = #tpu.dot_dimension_numbers<[1], [1], [0], [0], [0, 0, 1, 0], [], []>} : vector<8x32xf32>, vector<16x32xf32>, vector<8x16xf32> -> vector<8x16xf32>
    %cst_10 = arith.constant 0.176776692 : f32
    %11 = vector.broadcast %cst_10 : f32 to vector<8x16xf32>
    %12 = arith.mulf %10, %11 : vector<8x16xf32>
    %cst_11 = arith.constant dense<0xFF800000> : vector<8xf32>
    %13 = vector.multi_reduction <maximumf>, %12, %cst_11 [1] : vector<8x16xf32> to vector<8xf32>
    %14 = vector.shape_cast %13 : vector<8xf32> to vector<8x1xf32>
    %15 = vector.broadcast %14 : vector<8x1xf32> to vector<8x16xf32>
    %16 = arith.subf %12, %15 : vector<8x16xf32>
    %17 = math.exp %16 : vector<8x16xf32>
    %cst_12 = arith.constant dense<0.000000e+00> : vector<8xf32>
    %18 = vector.multi_reduction <add>, %17, %cst_12 [1] : vector<8x16xf32> to vector<8xf32>
    %19 = vector.shape_cast %18 : vector<8xf32> to vector<8x1xf32>
    %20 = tpu.reciprocal %19 {approx = true} : vector<8x1xf32> -> vector<8x1xf32>
    %21 = vector.broadcast %20 : vector<8x1xf32> to vector<8x16xf32>
    %22 = arith.mulf %17, %21 : vector<8x16xf32>
    %cst_13 = arith.constant dense<0.000000e+00> : vector<8x32xf32>
    %23 = tpu.matmul %22, %1, %cst_13 {dimension_numbers = #tpu.dot_dimension_numbers<[1], [0], [0], [1], [0, 0, 1, 1], [], []>} : vector<8x16xf32>, vector<16x32xf32>, vector<8x32xf32> -> vector<8x32xf32>
    %24 = arith.addf %8, %23 : vector<8x32xf32>
    %c0_14 = arith.constant 0 : index
    %c0_15 = arith.constant 0 : index
    %c0_16 = arith.constant 0 : index
    %25 = vector.load %arg5[%c0_14, %c0_15, %c0_16] : memref<2x32x32xf32, #tpu.memory_space<vmem>>, vector<1x32x32xf32>
    %26 = vector.shape_cast %25 : vector<1x32x32xf32> to vector<32x32xf32>
    %cst_17 = arith.constant dense<0.000000e+00> : vector<8x32xf32>
    %27 = tpu.matmul %24, %26, %cst_17 {dimension_numbers = #tpu.dot_dimension_numbers<[1], [0], [0], [1], [0, 0, 1, 1], [], []>} : vector<8x32xf32>, vector<32x32xf32>, vector<8x32xf32> -> vector<8x32xf32>
    %c0_18 = arith.constant 0 : index
    %c0_19 = arith.constant 0 : index
    %c0_20 = arith.constant 0 : index
    %28 = vector.load %arg6[%c0_18, %c0_19, %c0_20] : memref<2x1x32xf32, #tpu.memory_space<vmem>>, vector<1x1x32xf32>
    %29 = vector.shape_cast %28 : vector<1x1x32xf32> to vector<1x32xf32>
    %30 = vector.broadcast %29 : vector<1x32xf32> to vector<8x32xf32>
    %31 = arith.addf %27, %30 : vector<8x32xf32>
    %cst_21 = arith.constant 0.000000e+00 : f32
    %32 = vector.broadcast %cst_21 : f32 to vector<8x32xf32>
    %33 = arith.maximumf %31, %32 : vector<8x32xf32>
    %c0_22 = arith.constant 0 : index
    %c0_23 = arith.constant 0 : index
    %c0_24 = arith.constant 0 : index
    %34 = vector.load %arg7[%c0_22, %c0_23, %c0_24] : memref<2x32x32xf32, #tpu.memory_space<vmem>>, vector<1x32x32xf32>
    %35 = vector.shape_cast %34 : vector<1x32x32xf32> to vector<32x32xf32>
    %cst_25 = arith.constant dense<0.000000e+00> : vector<8x32xf32>
    %36 = tpu.matmul %33, %35, %cst_25 {dimension_numbers = #tpu.dot_dimension_numbers<[1], [0], [0], [1], [0, 0, 1, 1], [], []>} : vector<8x32xf32>, vector<32x32xf32>, vector<8x32xf32> -> vector<8x32xf32>
    %c0_26 = arith.constant 0 : index
    %c0_27 = arith.constant 0 : index
    %c0_28 = arith.constant 0 : index
    %37 = vector.load %arg8[%c0_26, %c0_27, %c0_28] : memref<2x1x32xf32, #tpu.memory_space<vmem>>, vector<1x1x32xf32>
    %38 = vector.shape_cast %37 : vector<1x1x32xf32> to vector<1x32xf32>
    %39 = vector.broadcast %38 : vector<1x32xf32> to vector<8x32xf32>
    %40 = arith.addf %36, %39 : vector<8x32xf32>
    %41 = arith.addf %24, %40 : vector<8x32xf32>
    %c0_29 = arith.constant 0 : index
    %c0_30 = arith.constant 0 : index
    %c0_31 = arith.constant 0 : index
    %c0_32 = arith.constant 0 : index
    %42 = vector.load %arg9[%c0_29, %c0_30, %c0_31, %c0_32] : memref<2x1x8x32xf32, #tpu.memory_space<vmem>>, vector<1x1x8x32xf32>
    %43 = vector.shape_cast %42 : vector<1x1x8x32xf32> to vector<8x32xf32>
    %44 = vector.shape_cast %41 : vector<8x32xf32> to vector<1x1x8x32xf32>
    tpu.vector_store %arg9[%c0_29, %c0_30, %c0_31, %c0_32], %44 {strides = array<i32>} : memref<2x1x8x32xf32, #tpu.memory_space<vmem>>, vector<1x1x8x32xf32>,
    %45 = arith.addf %41, %7 : vector<8x32xf32>
    %cst_33 = arith.constant dense<0.000000e+00> : vector<8x16xf32>
    %46 = tpu.matmul %45, %1, %cst_33 {dimension_numbers = #tpu.dot_dimension_numbers<[1], [1], [0], [0], [0, 0, 1, 0], [], []>} : vector<8x32xf32>, vector<16x32xf32>, vector<8x16xf32> -> vector<8x16xf32>
    %cst_34 = arith.constant 0.176776692 : f32
    %47 = vector.broadcast %cst_34 : f32 to vector<8x16xf32>
    %48 = arith.mulf %46, %47 : vector<8x16xf32>
    %cst_35 = arith.constant dense<0xFF800000> : vector<8xf32>
    %49 = vector.multi_reduction <maximumf>, %48, %cst_35 [1] : vector<8x16xf32> to vector<8xf32>
    %50 = vector.shape_cast %49 : vector<8xf32> to vector<8x1xf32>
    %51 = vector.broadcast %50 : vector<8x1xf32> to vector<8x16xf32>
    %52 = arith.subf %48, %51 : vector<8x16xf32>
    %53 = math.exp %52 : vector<8x16xf32>
    %cst_36 = arith.constant dense<0.000000e+00> : vector<8xf32>
    %54 = vector.multi_reduction <add>, %53, %cst_36 [1] : vector<8x16xf32> to vector<8xf32>
    %55 = vector.shape_cast %54 : vector<8xf32> to vector<8x1xf32>
    %56 = tpu.reciprocal %55 {approx = true} : vector<8x1xf32> -> vector<8x1xf32>
    %57 = vector.broadcast %56 : vector<8x1xf32> to vector<8x16xf32>
    %58 = arith.mulf %53, %57 : vector<8x16xf32>
    %cst_37 = arith.constant dense<0.000000e+00> : vector<8x32xf32>
    %59 = tpu.matmul %58, %1, %cst_37 {dimension_numbers = #tpu.dot_dimension_numbers<[1], [0], [0], [1], [0, 0, 1, 1], [], []>} : vector<8x16xf32>, vector<16x32xf32>, vector<8x32xf32> -> vector<8x32xf32>
    %60 = arith.addf %41, %59 : vector<8x32xf32>
    %c1 = arith.constant 1 : index
    %c0_38 = arith.constant 0 : index
    %c0_39 = arith.constant 0 : index
    %61 = vector.load %arg5[%c1, %c0_38, %c0_39] : memref<2x32x32xf32, #tpu.memory_space<vmem>>, vector<1x32x32xf32>
    %62 = vector.shape_cast %61 : vector<1x32x32xf32> to vector<32x32xf32>
    %cst_40 = arith.constant dense<0.000000e+00> : vector<8x32xf32>
    %63 = tpu.matmul %60, %62, %cst_40 {dimension_numbers = #tpu.dot_dimension_numbers<[1], [0], [0], [1], [0, 0, 1, 1], [], []>} : vector<8x32xf32>, vector<32x32xf32>, vector<8x32xf32> -> vector<8x32xf32>
    %c1_41 = arith.constant 1 : index
    %c0_42 = arith.constant 0 : index
    %c0_43 = arith.constant 0 : index
    %64 = vector.load %arg6[%c1_41, %c0_42, %c0_43] : memref<2x1x32xf32, #tpu.memory_space<vmem>>, vector<1x1x32xf32>
    %65 = vector.shape_cast %64 : vector<1x1x32xf32> to vector<1x32xf32>
    %66 = vector.broadcast %65 : vector<1x32xf32> to vector<8x32xf32>
    %67 = arith.addf %63, %66 : vector<8x32xf32>
    %cst_44 = arith.constant 0.000000e+00 : f32
    %68 = vector.broadcast %cst_44 : f32 to vector<8x32xf32>
    %69 = arith.maximumf %67, %68 : vector<8x32xf32>
    %c1_45 = arith.constant 1 : index
    %c0_46 = arith.constant 0 : index
    %c0_47 = arith.constant 0 : index
    %70 = vector.load %arg7[%c1_45, %c0_46, %c0_47] : memref<2x32x32xf32, #tpu.memory_space<vmem>>, vector<1x32x32xf32>
    %71 = vector.shape_cast %70 : vector<1x32x32xf32> to vector<32x32xf32>
    %cst_48 = arith.constant dense<0.000000e+00> : vector<8x32xf32>
    %72 = tpu.matmul %69, %71, %cst_48 {dimension_numbers = #tpu.dot_dimension_numbers<[1], [0], [0], [1], [0, 0, 1, 1], [], []>} : vector<8x32xf32>, vector<32x32xf32>, vector<8x32xf32> -> vector<8x32xf32>
    %c1_49 = arith.constant 1 : index
    %c0_50 = arith.constant 0 : index
    %c0_51 = arith.constant 0 : index
    %73 = vector.load %arg8[%c1_49, %c0_50, %c0_51] : memref<2x1x32xf32, #tpu.memory_space<vmem>>, vector<1x1x32xf32>
    %74 = vector.shape_cast %73 : vector<1x1x32xf32> to vector<1x32xf32>
    %75 = vector.broadcast %74 : vector<1x32xf32> to vector<8x32xf32>
    %76 = arith.addf %72, %75 : vector<8x32xf32>
    %77 = arith.addf %60, %76 : vector<8x32xf32>
    %c1_52 = arith.constant 1 : index
    %c0_53 = arith.constant 0 : index
    %c0_54 = arith.constant 0 : index
    %c0_55 = arith.constant 0 : index
    %78 = vector.load %arg9[%c1_52, %c0_53, %c0_54, %c0_55] : memref<2x1x8x32xf32, #tpu.memory_space<vmem>>, vector<1x1x8x32xf32>
    %79 = vector.shape_cast %78 : vector<1x1x8x32xf32> to vector<8x32xf32>
    %80 = vector.shape_cast %77 : vector<8x32xf32> to vector<1x1x8x32xf32>
    tpu.vector_store %arg9[%c1_52, %c0_53, %c0_54, %c0_55], %80 {strides = array<i32>} : memref<2x1x8x32xf32, #tpu.memory_space<vmem>>, vector<1x1x8x32xf32>,
    %c0_56 = arith.constant 0 : index
    %c0_57 = arith.constant 0 : index
    %c0_58 = arith.constant 0 : index
    %81 = vector.load %arg10[%c0_56, %c0_57, %c0_58] : memref<1x8x16xf32, #tpu.memory_space<vmem>>, vector<1x8x16xf32>
    %82 = vector.shape_cast %81 : vector<1x8x16xf32> to vector<8x16xf32>
    %83 = vector.shape_cast %58 : vector<8x16xf32> to vector<1x8x16xf32>
    tpu.vector_store %arg10[%c0_56, %c0_57, %c0_58], %83 {strides = array<i32>} : memref<1x8x16xf32, #tpu.memory_space<vmem>>, vector<1x8x16xf32>,
    %cst_59 = arith.constant dense<0.000000e+00> : vector<16x16xf32>
    %84 = tpu.matmul %1, %1, %cst_59 {dimension_numbers = #tpu.dot_dimension_numbers<[1], [1], [0], [0], [0, 0, 1, 0], [], []>} : vector<16x32xf32>, vector<16x32xf32>, vector<16x16xf32> -> vector<16x16xf32>
    %cst_60 = arith.constant 0.176776692 : f32
    %85 = vector.broadcast %cst_60 : f32 to vector<16x16xf32>
    %86 = arith.mulf %84, %85 : vector<16x16xf32>
    %cst_61 = arith.constant dense<0xFF800000> : vector<16xf32>
    %87 = vector.multi_reduction <maximumf>, %86, %cst_61 [1] : vector<16x16xf32> to vector<16xf32>
    %88 = vector.shape_cast %87 : vector<16xf32> to vector<16x1xf32>
    %89 = vector.broadcast %88 : vector<16x1xf32> to vector<16x16xf32>
    %90 = arith.subf %86, %89 : vector<16x16xf32>
    %91 = math.exp %90 : vector<16x16xf32>
    %cst_62 = arith.constant dense<0.000000e+00> : vector<16xf32>
    %92 = vector.multi_reduction <add>, %91, %cst_62 [1] : vector<16x16xf32> to vector<16xf32>
    %93 = vector.shape_cast %92 : vector<16xf32> to vector<16x1xf32>
    %94 = tpu.reciprocal %93 {approx = true} : vector<16x1xf32> -> vector<16x1xf32>
    %95 = vector.broadcast %94 : vector<16x1xf32> to vector<16x16xf32>
    %96 = arith.mulf %91, %95 : vector<16x16xf32>
    %c0_63 = arith.constant 0 : index
    %c0_64 = arith.constant 0 : index
    %c0_65 = arith.constant 0 : index
    %97 = vector.load %arg11[%c0_63, %c0_64, %c0_65] : memref<1x16x16xf32, #tpu.memory_space<vmem>>, vector<1x16x16xf32>
    %98 = vector.shape_cast %97 : vector<1x16x16xf32> to vector<16x16xf32>
    %99 = vector.shape_cast %96 : vector<16x16xf32> to vector<1x16x16xf32>
    tpu.vector_store %arg11[%c0_63, %c0_64, %c0_65], %99 {strides = array<i32>} : memref<1x16x16xf32, #tpu.memory_space<vmem>>, vector<1x16x16xf32>,
    return
  }
  func.func @transform_0(%arg0: i32) -> (i32, i32, i32) {
    %c0_i32 = arith.constant 0 : i32
    %c0_i32_0 = arith.constant 0 : i32
    %c0_i32_1 = arith.constant 0 : i32
    return %arg0, %c0_i32, %c0_i32_0 : i32, i32, i32
  }
  func.func @transform_1(%arg0: i32) -> (i32, i32) {
    %c0_i32 = arith.constant 0 : i32
    %c0_i32_0 = arith.constant 0 : i32
    %c0_i32_1 = arith.constant 0 : i32
    return %c0_i32, %c0_i32_0 : i32, i32
  }
  func.func @transform_2(%arg0: i32) -> (i32, i32) {
    %c0_i32 = arith.constant 0 : i32
    %c0_i32_0 = arith.constant 0 : i32
    %c0_i32_1 = arith.constant 0 : i32
    return %c0_i32, %c0_i32_0 : i32, i32
  }
  func.func @transform_3(%arg0: i32) -> (i32, i32) {
    %c0_i32 = arith.constant 0 : i32
    %c0_i32_0 = arith.constant 0 : i32
    %c0_i32_1 = arith.constant 0 : i32
    return %c0_i32, %c0_i32_0 : i32, i32
  }
  func.func @transform_4(%arg0: i32) -> (i32, i32, i32) {
    %c0_i32 = arith.constant 0 : i32
    %c0_i32_0 = arith.constant 0 : i32
    %c0_i32_1 = arith.constant 0 : i32
    %c0_i32_2 = arith.constant 0 : i32
    return %c0_i32, %c0_i32_0, %c0_i32_1 : i32, i32, i32
  }
  func.func @transform_5(%arg0: i32) -> (i32, i32, i32) {
    %c0_i32 = arith.constant 0 : i32
    %c0_i32_0 = arith.constant 0 : i32
    %c0_i32_1 = arith.constant 0 : i32
    %c0_i32_2 = arith.constant 0 : i32
    return %c0_i32, %c0_i32_0, %c0_i32_1 : i32, i32, i32
  }
  func.func @transform_6(%arg0: i32) -> (i32, i32, i32) {
    %c0_i32 = arith.constant 0 : i32
    %c0_i32_0 = arith.constant 0 : i32
    %c0_i32_1 = arith.constant 0 : i32
    %c0_i32_2 = arith.constant 0 : i32
    return %c0_i32, %c0_i32_0, %c0_i32_1 : i32, i32, i32
  }
  func.func @transform_7(%arg0: i32) -> (i32, i32, i32) {
    %c0_i32 = arith.constant 0 : i32
    %c0_i32_0 = arith.constant 0 : i32
    %c0_i32_1 = arith.constant 0 : i32
    %c0_i32_2 = arith.constant 0 : i32
    return %c0_i32, %c0_i32_0, %c0_i32_1 : i32, i32, i32
  }
  func.func @transform_8(%arg0: i32) -> (i32, i32, i32, i32) {
    %c0_i32 = arith.constant 0 : i32
    %c0_i32_0 = arith.constant 0 : i32
    %c0_i32_1 = arith.constant 0 : i32
    %c0_i32_2 = arith.constant 0 : i32
    return %c0_i32, %arg0, %c0_i32_0, %c0_i32_1 : i32, i32, i32, i32
  }
  func.func @transform_9(%arg0: i32) -> (i32, i32, i32) {
    %c0_i32 = arith.constant 0 : i32
    %c0_i32_0 = arith.constant 0 : i32
    %c0_i32_1 = arith.constant 0 : i32
    return %arg0, %c0_i32, %c0_i32_0 : i32, i32, i32
  }
  func.func @transform_10(%arg0: i32) -> (i32, i32, i32) {
    %c0_i32 = arith.constant 0 : i32
    %c0_i32_0 = arith.constant 0 : i32
    %c0_i32_1 = arith.constant 0 : i32
    return %arg0, %c0_i32, %c0_i32_0 : i32, i32, i32
  }
}

module attributes {stable_mosaic.version = 11 : i64} {
  func.func @_heads_kernel(%arg0: i32, %arg1: memref<32x32xf32, #tpu.memory_space<vmem>>, %arg2: memref<32x5xf32, #tpu.memory_space<vmem>>, %arg3: memref<1x5xf32, #tpu.memory_space<vmem>>, %arg4: memref<32x32xf32, #tpu.memory_space<vmem>>, %arg5: memref<1x32xf32, #tpu.memory_space<vmem>>, %arg6: memref<32x32xf32, #tpu.memory_space<vmem>>, %arg7: memref<1x32xf32, #tpu.memory_space<vmem>>, %arg8: memref<32x2xf32, #tpu.memory_space<vmem>>, %arg9: memref<1x2xf32, #tpu.memory_space<vmem>>, %arg10: memref<32x2xf32, #tpu.memory_space<vmem>>, %arg11: memref<32x5xf32, #tpu.memory_space<vmem>>, %arg12: memref<32x2xf32, #tpu.memory_space<vmem>>) attributes {dimension_semantics = [#tpu.dimension_semantics<arbitrary>], iteration_bounds = array<i64: 1>, scalar_prefetch = 0 : i64, scratch_operands = 0 : i64, tpu.core_type = #tpu.core_type<tc>, window_params = [{pipeline_mode = #tpu.pipeline_mode<synchronous>, transform_indices = @transform_0, window_bounds = array<i64: 32, 32>}, {pipeline_mode = #tpu.pipeline_mode<synchronous>, transform_indices = @transform_1, window_bounds = array<i64: 32, 5>}, {pipeline_mode = #tpu.pipeline_mode<synchronous>, transform_indices = @transform_2, window_bounds = array<i64: 1, 5>}, {pipeline_mode = #tpu.pipeline_mode<synchronous>, transform_indices = @transform_3, window_bounds = array<i64: 32, 32>}, {pipeline_mode = #tpu.pipeline_mode<synchronous>, transform_indices = @transform_4, window_bounds = array<i64: 1, 32>}, {pipeline_mode = #tpu.pipeline_mode<synchronous>, transform_indices = @transform_5, window_bounds = array<i64: 32, 32>}, {pipeline_mode = #tpu.pipeline_mode<synchronous>, transform_indices = @transform_6, window_bounds = array<i64: 1, 32>}, {pipeline_mode = #tpu.pipeline_mode<synchronous>, transform_indices = @transform_7, window_bounds = array<i64: 32, 2>}, {pipeline_mode = #tpu.pipeline_mode<synchronous>, transform_indices = @transform_8, window_bounds = array<i64: 1, 2>}, {pipeline_mode = #tpu.pipeline_mode<synchronous>, transform_indices = @transform_9, window_bounds = array<i64: 32, 2>}, {pipeline_mode = #tpu.pipeline_mode<synchronous>, transform_indices = @transform_10, window_bounds = array<i64: 32, 5>}, {pipeline_mode = #tpu.pipeline_mode<synchronous>, transform_indices = @transform_11, window_bounds = array<i64: 32, 2>}]} {
    %c0 = arith.constant 0 : index
    %c0_0 = arith.constant 0 : index
    %0 = vector.load %arg1[%c0, %c0_0] : memref<32x32xf32, #tpu.memory_space<vmem>>, vector<32x32xf32>
    %c0_1 = arith.constant 0 : index
    %c0_2 = arith.constant 0 : index
    %1 = vector.load %arg2[%c0_1, %c0_2] : memref<32x5xf32, #tpu.memory_space<vmem>>, vector<32x5xf32>
    %cst = arith.constant dense<0.000000e+00> : vector<32x5xf32>
    %2 = tpu.matmul %0, %1, %cst {dimension_numbers = #tpu.dot_dimension_numbers<[1], [0], [0], [1], [0, 0, 1, 1], [], []>} : vector<32x32xf32>, vector<32x5xf32>, vector<32x5xf32> -> vector<32x5xf32>
    %c0_3 = arith.constant 0 : index
    %c0_4 = arith.constant 0 : index
    %3 = vector.load %arg3[%c0_3, %c0_4] : memref<1x5xf32, #tpu.memory_space<vmem>>, vector<1x5xf32>
    %4 = vector.broadcast %3 : vector<1x5xf32> to vector<32x5xf32>
    %5 = arith.addf %2, %4 : vector<32x5xf32>
    %c0_5 = arith.constant 0 : index
    %c0_6 = arith.constant 0 : index
    %6 = vector.load %arg11[%c0_5, %c0_6] : memref<32x5xf32, #tpu.memory_space<vmem>>, vector<32x5xf32>
    tpu.vector_store %arg11[%c0_5, %c0_6], %5 {strides = array<i32>} : memref<32x5xf32, #tpu.memory_space<vmem>>, vector<32x5xf32>,
    %c0_7 = arith.constant 0 : index
    %c0_8 = arith.constant 0 : index
    %7 = vector.load %arg4[%c0_7, %c0_8] : memref<32x32xf32, #tpu.memory_space<vmem>>, vector<32x32xf32>
    %cst_9 = arith.constant dense<0.000000e+00> : vector<32x32xf32>
    %8 = tpu.matmul %0, %7, %cst_9 {dimension_numbers = #tpu.dot_dimension_numbers<[1], [0], [0], [1], [0, 0, 1, 1], [], []>} : vector<32x32xf32>, vector<32x32xf32>, vector<32x32xf32> -> vector<32x32xf32>
    %c0_10 = arith.constant 0 : index
    %c0_11 = arith.constant 0 : index
    %9 = vector.load %arg5[%c0_10, %c0_11] : memref<1x32xf32, #tpu.memory_space<vmem>>, vector<1x32xf32>
    %10 = vector.broadcast %9 : vector<1x32xf32> to vector<32x32xf32>
    %11 = arith.addf %8, %10 : vector<32x32xf32>
    %cst_12 = arith.constant 0.000000e+00 : f32
    %12 = vector.broadcast %cst_12 : f32 to vector<32x32xf32>
    %13 = arith.maximumf %11, %12 : vector<32x32xf32>
    %c0_13 = arith.constant 0 : index
    %c0_14 = arith.constant 0 : index
    %14 = vector.load %arg6[%c0_13, %c0_14] : memref<32x32xf32, #tpu.memory_space<vmem>>, vector<32x32xf32>
    %cst_15 = arith.constant dense<0.000000e+00> : vector<32x32xf32>
    %15 = tpu.matmul %13, %14, %cst_15 {dimension_numbers = #tpu.dot_dimension_numbers<[1], [0], [0], [1], [0, 0, 1, 1], [], []>} : vector<32x32xf32>, vector<32x32xf32>, vector<32x32xf32> -> vector<32x32xf32>
    %c0_16 = arith.constant 0 : index
    %c0_17 = arith.constant 0 : index
    %16 = vector.load %arg7[%c0_16, %c0_17] : memref<1x32xf32, #tpu.memory_space<vmem>>, vector<1x32xf32>
    %17 = vector.broadcast %16 : vector<1x32xf32> to vector<32x32xf32>
    %18 = arith.addf %15, %17 : vector<32x32xf32>
    %cst_18 = arith.constant 0.000000e+00 : f32
    %19 = vector.broadcast %cst_18 : f32 to vector<32x32xf32>
    %20 = arith.maximumf %18, %19 : vector<32x32xf32>
    %c0_19 = arith.constant 0 : index
    %c0_20 = arith.constant 0 : index
    %21 = vector.load %arg8[%c0_19, %c0_20] : memref<32x2xf32, #tpu.memory_space<vmem>>, vector<32x2xf32>
    %cst_21 = arith.constant dense<0.000000e+00> : vector<32x2xf32>
    %22 = tpu.matmul %20, %21, %cst_21 {dimension_numbers = #tpu.dot_dimension_numbers<[1], [0], [0], [1], [0, 0, 1, 1], [], []>} : vector<32x32xf32>, vector<32x2xf32>, vector<32x2xf32> -> vector<32x2xf32>
    %c0_22 = arith.constant 0 : index
    %c0_23 = arith.constant 0 : index
    %23 = vector.load %arg9[%c0_22, %c0_23] : memref<1x2xf32, #tpu.memory_space<vmem>>, vector<1x2xf32>
    %24 = vector.broadcast %23 : vector<1x2xf32> to vector<32x2xf32>
    %25 = arith.addf %22, %24 : vector<32x2xf32>
    %c0_24 = arith.constant 0 : index
    %c0_25 = arith.constant 0 : index
    %26 = vector.load %arg10[%c0_24, %c0_25] : memref<32x2xf32, #tpu.memory_space<vmem>>, vector<32x2xf32>
    %cst_26 = arith.constant 0.000000e+00 : f32
    %cst_27 = arith.constant 1.000000e+00 : f32
    %27 = vector.broadcast %cst_26 : f32 to vector<32x2xf32>
    %28 = arith.maximumf %27, %26 : vector<32x2xf32>
    %29 = vector.broadcast %cst_27 : f32 to vector<32x2xf32>
    %30 = arith.minimumf %29, %28 : vector<32x2xf32>
    %cst_28 = arith.constant 9.99999974E-6 : f32
    %31 = vector.broadcast %cst_28 : f32 to vector<32x2xf32>
    %32 = arith.maximumf %30, %31 : vector<32x2xf32>
    %cst_29 = arith.constant 1.000000e+00 : f32
    %33 = vector.broadcast %cst_29 : f32 to vector<32x2xf32>
    %34 = arith.subf %33, %30 : vector<32x2xf32>
    %cst_30 = arith.constant 9.99999974E-6 : f32
    %35 = vector.broadcast %cst_30 : f32 to vector<32x2xf32>
    %36 = arith.maximumf %34, %35 : vector<32x2xf32>
    %37 = arith.divf %32, %36 : vector<32x2xf32>
    %38 = math.log %37 : vector<32x2xf32>
    %39 = arith.addf %25, %38 : vector<32x2xf32>
    %40 = arith.negf %39 : vector<32x2xf32>
    %41 = math.exp %40 : vector<32x2xf32>
    %cst_31 = arith.constant 1.000000e+00 : f32
    %42 = vector.broadcast %cst_31 : f32 to vector<32x2xf32>
    %43 = arith.addf %42, %41 : vector<32x2xf32>
    %44 = arith.divf %42, %43 : vector<32x2xf32>
    %c0_32 = arith.constant 0 : index
    %c0_33 = arith.constant 0 : index
    %45 = vector.load %arg12[%c0_32, %c0_33] : memref<32x2xf32, #tpu.memory_space<vmem>>, vector<32x2xf32>
    tpu.vector_store %arg12[%c0_32, %c0_33], %44 {strides = array<i32>} : memref<32x2xf32, #tpu.memory_space<vmem>>, vector<32x2xf32>,
    return
  }
  func.func @transform_0(%arg0: i32) -> (i32, i32) {
    %c0_i32 = arith.constant 0 : i32
    %c0_i32_0 = arith.constant 0 : i32
    %c0_i32_1 = arith.constant 0 : i32
    return %c0_i32, %c0_i32_0 : i32, i32
  }
  func.func @transform_1(%arg0: i32) -> (i32, i32) {
    %c0_i32 = arith.constant 0 : i32
    %c0_i32_0 = arith.constant 0 : i32
    %c0_i32_1 = arith.constant 0 : i32
    return %c0_i32, %c0_i32_0 : i32, i32
  }
  func.func @transform_2(%arg0: i32) -> (i32, i32) {
    %c0_i32 = arith.constant 0 : i32
    %c0_i32_0 = arith.constant 0 : i32
    %c0_i32_1 = arith.constant 0 : i32
    return %c0_i32, %c0_i32_0 : i32, i32
  }
  func.func @transform_3(%arg0: i32) -> (i32, i32) {
    %c0_i32 = arith.constant 0 : i32
    %c0_i32_0 = arith.constant 0 : i32
    %c0_i32_1 = arith.constant 0 : i32
    return %c0_i32, %c0_i32_0 : i32, i32
  }
  func.func @transform_4(%arg0: i32) -> (i32, i32) {
    %c0_i32 = arith.constant 0 : i32
    %c0_i32_0 = arith.constant 0 : i32
    %c0_i32_1 = arith.constant 0 : i32
    return %c0_i32, %c0_i32_0 : i32, i32
  }
  func.func @transform_5(%arg0: i32) -> (i32, i32) {
    %c0_i32 = arith.constant 0 : i32
    %c0_i32_0 = arith.constant 0 : i32
    %c0_i32_1 = arith.constant 0 : i32
    return %c0_i32, %c0_i32_0 : i32, i32
  }
  func.func @transform_6(%arg0: i32) -> (i32, i32) {
    %c0_i32 = arith.constant 0 : i32
    %c0_i32_0 = arith.constant 0 : i32
    %c0_i32_1 = arith.constant 0 : i32
    return %c0_i32, %c0_i32_0 : i32, i32
  }
  func.func @transform_7(%arg0: i32) -> (i32, i32) {
    %c0_i32 = arith.constant 0 : i32
    %c0_i32_0 = arith.constant 0 : i32
    %c0_i32_1 = arith.constant 0 : i32
    return %c0_i32, %c0_i32_0 : i32, i32
  }
  func.func @transform_8(%arg0: i32) -> (i32, i32) {
    %c0_i32 = arith.constant 0 : i32
    %c0_i32_0 = arith.constant 0 : i32
    %c0_i32_1 = arith.constant 0 : i32
    return %c0_i32, %c0_i32_0 : i32, i32
  }
  func.func @transform_9(%arg0: i32) -> (i32, i32) {
    %c0_i32 = arith.constant 0 : i32
    %c0_i32_0 = arith.constant 0 : i32
    %c0_i32_1 = arith.constant 0 : i32
    return %c0_i32, %c0_i32_0 : i32, i32
  }
  func.func @transform_10(%arg0: i32) -> (i32, i32) {
    %c0_i32 = arith.constant 0 : i32
    %c0_i32_0 = arith.constant 0 : i32
    %c0_i32_1 = arith.constant 0 : i32
    return %c0_i32, %c0_i32_0 : i32, i32
  }
  func.func @transform_11(%arg0: i32) -> (i32, i32) {
    %c0_i32 = arith.constant 0 : i32
    %c0_i32_0 = arith.constant 0 : i32
    %c0_i32_1 = arith.constant 0 : i32
    return %c0_i32, %c0_i32_0 : i32, i32
  }
}

</mosaic_0001>

<llo_original>
// kernel: tadtr_forward.5
$region0: #{tadtr_forward.5}
  #allocation0 [shape = 'u32[]', space=smem, size = 0x4, offset = 0x4, fixed_abs, tag = 'smem constant byte address 0x4 - core index']
  #allocation1 [shape = 'u32[144,128]{1,0:T(1,128)}', space=vmem, size = 0x12000, scoped, tag = 'internal scratch']
  %s0 = inlined_call_operand.vmem [shape: f32[32,32], index: 0, kind: input, shape index: {}]
  %s1 = inlined_call_operand.vmem [shape: f32[32,5], index: 1, kind: input, shape index: {}]
  %s2 = inlined_call_operand.vmem [shape: f32[1,5], index: 2, kind: input, shape index: {}]
  %s3 = inlined_call_operand.vmem [shape: f32[32,32], index: 3, kind: input, shape index: {}]
  %s4 = inlined_call_operand.vmem [shape: f32[1,32], index: 4, kind: input, shape index: {}]
  %s5 = inlined_call_operand.vmem [shape: f32[32,32], index: 5, kind: input, shape index: {}]
  %s6 = inlined_call_operand.vmem [shape: f32[1,32], index: 6, kind: input, shape index: {}]
  %s7 = inlined_call_operand.vmem [shape: f32[32,2], index: 7, kind: input, shape index: {}]
  %s8 = inlined_call_operand.vmem [shape: f32[1,2], index: 8, kind: input, shape index: {}]
  %s9 = inlined_call_operand.vmem [shape: f32[32,2], index: 9, kind: input, shape index: {}]
  %s10 = inlined_call_operand.vmem [shape: f32[32,5], index: 10, kind: output, shape index: {0}]
  %s11 = inlined_call_operand.vmem [shape: f32[32,2], index: 11, kind: output, shape index: {1}]
  %12 = xla_tuple %s10, %s11
  %s13 = sld [smem:[#allocation0]]
  $region58: #{tadtr_forward.5} parent=0
    _
  %s15 = ssub.s32 1, %s13
  %s16 = scalar_select 0, %s15, %s13
  // Predicated region
  $region2: #{tadtr_forward.5} parent=0 // pred_check
    _
  $region3: #{tadtr_forward.5} parent=0 // pred_check_branch
    %18 = sbr.rel (0) target = $region5
  $region4: #{tadtr_forward.5} parent=0 // pred_region
    _
  $region5: #{tadtr_forward.5} parent=0 // pred_fallthru
    _
  // Predicated region
  $region6: #{tadtr_forward.5} parent=0 // pred_check
    _
  $region7: #{tadtr_forward.5} parent=0 // pred_check_branch
    %20 = sbr.rel (0) target = $region9
  $region8: #{tadtr_forward.5} parent=0 // pred_region
    _
  $region9: #{tadtr_forward.5} parent=0 // pred_fallthru
    _
  // Predicated region
  $region10: #{tadtr_forward.5} parent=0 // pred_check
    _
  $region11: #{tadtr_forward.5} parent=0 // pred_check_branch
    %22 = sbr.rel (0) target = $region13
  $region12: #{tadtr_forward.5} parent=0 // pred_region
    _
  $region13: #{tadtr_forward.5} parent=0 // pred_fallthru
    _
  // Predicated region
  $region14: #{tadtr_forward.5} parent=0 // pred_check
    _
  $region15: #{tadtr_forward.5} parent=0 // pred_check_branch
    %24 = sbr.rel (0) target = $region17
  $region16: #{tadtr_forward.5} parent=0 // pred_region
    _
  $region17: #{tadtr_forward.5} parent=0 // pred_fallthru
    _
  // Predicated region
  $region18: #{tadtr_forward.5} parent=0 // pred_check
    _
  $region19: #{tadtr_forward.5} parent=0 // pred_check_branch
    %26 = sbr.rel (0) target = $region21
  $region20: #{tadtr_forward.5} parent=0 // pred_region
    _
  $region21: #{tadtr_forward.5} parent=0 // pred_fallthru
    _
  // Predicated region
  $region22: #{tadtr_forward.5} parent=0 // pred_check
    _
  $region23: #{tadtr_forward.5} parent=0 // pred_check_branch
    %28 = sbr.rel (0) target = $region25
  $region24: #{tadtr_forward.5} parent=0 // pred_region
    _
  $region25: #{tadtr_forward.5} parent=0 // pred_fallthru
    _
  // Predicated region
  $region26: #{tadtr_forward.5} parent=0 // pred_check
    _
  $region27: #{tadtr_forward.5} parent=0 // pred_check_branch
    %30 = sbr.rel (0) target = $region29
  $region28: #{tadtr_forward.5} parent=0 // pred_region
    _
  $region29: #{tadtr_forward.5} parent=0 // pred_fallthru
    _
  // Predicated region
  $region30: #{tadtr_forward.5} parent=0 // pred_check
    _
  $region31: #{tadtr_forward.5} parent=0 // pred_check_branch
    %32 = sbr.rel (0) target = $region33
  $region32: #{tadtr_forward.5} parent=0 // pred_region
    _
  $region33: #{tadtr_forward.5} parent=0 // pred_fallthru
    _
  // Predicated region
  $region34: #{tadtr_forward.5} parent=0 // pred_check
    _
  $region35: #{tadtr_forward.5} parent=0 // pred_check_branch
    %34 = sbr.rel (0) target = $region37
  $region36: #{tadtr_forward.5} parent=0 // pred_region
    _
  $region37: #{tadtr_forward.5} parent=0 // pred_fallthru
    _
  // Predicated region
  $region38: #{tadtr_forward.5} parent=0 // pred_check
    _
  $region39: #{tadtr_forward.5} parent=0 // pred_check_branch
    %36 = sbr.rel (0) target = $region41
  $region40: #{tadtr_forward.5} parent=0 // pred_region
    _
  $region41: #{tadtr_forward.5} parent=0 // pred_fallthru
    _
  %v37 = vld [vmem:[%s0] sm:$0xff]
  %v38 = vld [vmem:[%s0 + $0x8] sm:$0xff]
  %v39 = vld [vmem:[%s0 + $0x10] sm:$0xff]
  %v40 = vld [vmem:[%s0 + $0x18] sm:$0xff]
  %v41 = vld [vmem:[%s1] sm:$0xff]
  %v42 = vld [vmem:[%s1 + $0x8] sm:$0xff]
  %v43 = vld [vmem:[%s1 + $0x10] sm:$0xff]
  %v44 = vld [vmem:[%s1 + $0x18] sm:$0xff]
  %v45 = vld [vmem:[%s2] sm:$0x1]
  %v47 = vlaneseq
  %v48 = vshrl.u32 %v47, 7
  %v49 = vsub.s32 0, %v48
  %v50 = vrot.slane %v45, %v49
  %vm52 = vcmask 261120
  %v54 = vsel %vm52, %v37, 0
  %v57 = vsel %vm52, %v38, 0
  %v60 = vsel %vm52, %v39, 0
  %v63 = vsel %vm52, %v40, 0
  %65 = vmatprep.subr.mxu0 0.0
  %66 = vmatpush1.msra.mxu0 %v41
  %67 = vmatprep.subr.mxu0 0.0
  %68 = vmatpush1.msra.mxu0 %v42
  %69 = vmatprep.subr.mxu0 0.0
  %70 = vmatpush1.msra.mxu0 %v43
  %71 = vmatprep.subr.mxu0 0.0
  %72 = vmatpush1.msra.mxu0 %v44
  %73 = vmatprep.subr.mxu0 0.0
  %74 = vmatpush1.msra.mxu0 0.0
  %75 = vmatprep.subr.mxu0 0.0
  %76 = vmatpush1.msra.mxu0 0.0
  %77 = vmatprep.subr.mxu0 0.0
  %78 = vmatpush1.msra.mxu0 0.0
  %79 = vmatprep.subr.mxu0 0.0
  %80 = vmatpush1.msra.mxu0 0.0
  %81 = vmatprep.subr.mxu0 0.0
  %82 = vmatpush1.msra.mxu0 0.0
  %83 = vmatprep.subr.mxu0 0.0
  %84 = vmatpush1.msra.mxu0 0.0
  %85 = vmatprep.subr.mxu0 0.0
  %86 = vmatpush1.msra.mxu0 0.0
  %87 = vmatprep.subr.mxu0 0.0
  %88 = vmatpush1.msra.mxu0 0.0
  %89 = vmatprep.subr.mxu0 0.0
  %90 = vmatpush1.msra.mxu0 0.0
  %91 = vmatprep.subr.mxu0 0.0
  %92 = vmatpush1.msra.mxu0 0.0
  %93 = vmatprep.subr.mxu0 0.0
  %94 = vmatpush1.msra.mxu0 0.0
  %95 = vmatprep.subr.mxu0 0.0
  %96 = vmatpush1.msra.mxu0 0.0
  %97 = vmatprep.subr.mxu0 0.0
  %98 = vmatpush1.msra.mxu0 0.0
  %99 = vmatprep.subr.mxu0 0.0
  %100 = vmatpush1.msra.mxu0 0.0
  %101 = vmatprep.subr.mxu0 0.0
  %102 = vmatpush1.msra.mxu0 0.0
  %103 = vmatprep.subr.mxu0 0.0
  %104 = vmatpush1.msra.mxu0 0.0
  %105 = vmatprep.subr.mxu0 0.0
  %106 = vmatpush1.msra.mxu0 0.0
  %107 = vmatprep.subr.mxu0 0.0
  %108 = vmatpush1.msra.mxu0 0.0
  %109 = vmatprep.subr.mxu0 0.0
  %110 = vmatpush1.msra.mxu0 0.0
  %111 = vmatprep.subr.mxu0 0.0
  %112 = vmatpush1.msra.mxu0 0.0
  %113 = vmatprep.subr.mxu0 0.0
  %114 = vmatpush1.msra.mxu0 0.0
  %115 = vmatprep.subr.mxu0 0.0
  %116 = vmatpush1.msra.mxu0 0.0
  %117 = vmatprep.subr.mxu0 0.0
  %118 = vmatpush1.msra.mxu0 0.0
  %119 = vmatprep.subr.mxu0 0.0
  %120 = vmatpush1.msra.mxu0 0.0
  %121 = vmatprep.subr.mxu0 0.0
  %122 = vmatpush1.msra.mxu0 0.0
  %123 = vmatprep.subr.mxu0 0.0
  %124 = vmatpush1.msra.mxu0 0.0
  %125 = vmatprep.subr.mxu0 0.0
  %126 = vmatpush1.msra.mxu0 0.0
  %127 = vmatprep.subr.mxu0 0.0
  %128 = vmatpush1.msra.mxu0 0.0
  %129 = vmatprep.mubr.f32.mxu0 0.0
  %130 = vmatmul.mubr.f32.gmra.mrb[0].mxu0 %v54
  %v131 = vpop.f32.mrb[0].mxu0
  %v132 = vadd.f32 %v50, %v131
  %v133 = vpop.f32.mrb[0].mxu0
  %134 = vmatprep.mubr.f32.mxu0 0.0
  %135 = vmatmul.mubr.f32.gmra.mrb[0].mxu0 %v57
  %v136 = vpop.f32.mrb[0].mxu0
  %v137 = vadd.f32 %v50, %v136
  %v138 = vpop.f32.mrb[0].mxu0
  %139 = vmatprep.mubr.f32.mxu0 0.0
  %140 = vmatmul.mubr.f32.gmra.mrb[0].mxu0 %v60
  %v141 = vpop.f32.mrb[0].mxu0
  %v142 = vadd.f32 %v50, %v141
  %v143 = vpop.f32.mrb[0].mxu0
  %144 = vmatprep.mubr.f32.mxu0 0.0
  %145 = vmatmul.mubr.f32.gmra.mrb[0].mxu0 %v63
  %v146 = vpop.f32.mrb[0].mxu0
  %v147 = vadd.f32 %v50, %v146
  %v148 = vpop.f32.mrb[0].mxu0
  %149 = vdwg.mxu0
  %vm150 = vcmask 39936
  %151 = vst.msk [vmem:[%s10] sm:$0xff] %vm150, %v132
  %152 = vst.msk [vmem:[%s10 + $0x8] sm:$0xff] %vm150, %v137
  %153 = vst.msk [vmem:[%s10 + $0x10] sm:$0xff] %vm150, %v142
  %154 = vst.msk [vmem:[%s10 + $0x18] sm:$0xff] %vm150, %v147
  %v155 = vld [vmem:[%s3] sm:$0xff]
  %v156 = vld [vmem:[%s3 + $0x8] sm:$0xff]
  %v157 = vld [vmem:[%s3 + $0x10] sm:$0xff]
  %v158 = vld [vmem:[%s3 + $0x18] sm:$0xff]
  %v159 = vld [vmem:[%s4] sm:$0x1]
  %v161 = vlaneseq
  %v162 = vshrl.u32 %v161, 7
  %v163 = vsub.s32 0, %v162
  %v164 = vrot.slane %v159, %v163
  %166 = vmatprep.subr.mxu0 0.0
  %167 = vmatpush1.msra.mxu0 %v155
  %168 = vmatprep.subr.mxu0 0.0
  %169 = vmatpush1.msra.mxu0 %v156
  %170 = vmatprep.subr.mxu0 0.0
  %171 = vmatpush1.msra.mxu0 %v157
  %172 = vmatprep.subr.mxu0 0.0
  %173 = vmatpush1.msra.mxu0 %v158
  %174 = vmatprep.subr.mxu0 0.0
  %175 = vmatpush1.msra.mxu0 0.0
  %176 = vmatprep.subr.mxu0 0.0
  %177 = vmatpush1.msra.mxu0 0.0
  %178 = vmatprep.subr.mxu0 0.0
  %179 = vmatpush1.msra.mxu0 0.0
  %180 = vmatprep.subr.mxu0 0.0
  %181 = vmatpush1.msra.mxu0 0.0
  %182 = vmatprep.subr.mxu0 0.0
  %183 = vmatpush1.msra.mxu0 0.0
  %184 = vmatprep.subr.mxu0 0.0
  %185 = vmatpush1.msra.mxu0 0.0
  %186 = vmatprep.subr.mxu0 0.0
  %187 = vmatpush1.msra.mxu0 0.0
  %188 = vmatprep.subr.mxu0 0.0
  %189 = vmatpush1.msra.mxu0 0.0
  %190 = vmatprep.subr.mxu0 0.0
  %191 = vmatpush1.msra.mxu0 0.0
  %192 = vmatprep.subr.mxu0 0.0
  %193 = vmatpush1.msra.mxu0 0.0
  %194 = vmatprep.subr.mxu0 0.0
  %195 = vmatpush1.msra.mxu0 0.0
  %196 = vmatprep.subr.mxu0 0.0
  %197 = vmatpush1.msra.mxu0 0.0
  %198 = vmatprep.subr.mxu0 0.0
  %199 = vmatpush1.msra.mxu0 0.0
  %200 = vmatprep.subr.mxu0 0.0
  %201 = vmatpush1.msra.mxu0 0.0
  %202 = vmatprep.subr.mxu0 0.0
  %203 = vmatpush1.msra.mxu0 0.0
  %204 = vmatprep.subr.mxu0 0.0
  %205 = vmatpush1.msra.mxu0 0.0
  %206 = vmatprep.subr.mxu0 0.0
  %207 = vmatpush1.msra.mxu0 0.0
  %208 = vmatprep.subr.mxu0 0.0
  %209 = vmatpush1.msra.mxu0 0.0
  %210 = vmatprep.subr.mxu0 0.0
  %211 = vmatpush1.msra.mxu0 0.0
  %212 = vmatprep.subr.mxu0 0.0
  %213 = vmatpush1.msra.mxu0 0.0
  %214 = vmatprep.subr.mxu0 0.0
  %215 = vmatpush1.msra.mxu0 0.0
  %216 = vmatprep.subr.mxu0 0.0
  %217 = vmatpush1.msra.mxu0 0.0
  %218 = vmatprep.subr.mxu0 0.0
  %219 = vmatpush1.msra.mxu0 0.0
  %220 = vmatprep.subr.mxu0 0.0
  %221 = vmatpush1.msra.mxu0 0.0
  %222 = vmatprep.subr.mxu0 0.0
  %223 = vmatpush1.msra.mxu0 0.0
  %224 = vmatprep.subr.mxu0 0.0
  %225 = vmatpush1.msra.mxu0 0.0
  %226 = vmatprep.subr.mxu0 0.0
  %227 = vmatpush1.msra.mxu0 0.0
  %228 = vmatprep.subr.mxu0 0.0
  %229 = vmatpush1.msra.mxu0 0.0
  %230 = vmatprep.mubr.f32.mxu0 0.0
  %231 = vmatmul.mubr.f32.gmra.mrb[0].mxu0 %v54
  %v232 = vpop.f32.mrb[0].mxu0
  %v233 = vadd.f32 %v164, %v232
  %v234 = vpop.f32.mrb[0].mxu0
  %235 = vmatprep.mubr.f32.mxu0 0.0
  %236 = vmatmul.mubr.f32.gmra.mrb[0].mxu0 %v57
  %v237 = vpop.f32.mrb[0].mxu0
  %v238 = vadd.f32 %v164, %v237
  %v239 = vpop.f32.mrb[0].mxu0
  %240 = vmatprep.mubr.f32.mxu0 0.0
  %241 = vmatmul.mubr.f32.gmra.mrb[0].mxu0 %v60
  %v242 = vpop.f32.mrb[0].mxu0
  %v243 = vadd.f32 %v164, %v242
  %v244 = vpop.f32.mrb[0].mxu0
  %245 = vmatprep.mubr.f32.mxu0 0.0
  %246 = vmatmul.mubr.f32.gmra.mrb[0].mxu0 %v63
  %v247 = vpop.f32.mrb[0].mxu0
  %v248 = vadd.f32 %v164, %v247
  %v249 = vpop.f32.mrb[0].mxu0
  %250 = vdwg.mxu0
  %v251 = vmax.f32 %v233, 0.0
  %v252 = vmax.f32 %v238, 0.0
  %v253 = vmax.f32 %v243, 0.0
  %v254 = vmax.f32 %v248, 0.0
  %v255 = vld [vmem:[%s5] sm:$0xff]
  %v256 = vld [vmem:[%s5 + $0x8] sm:$0xff]
  %v257 = vld [vmem:[%s5 + $0x10] sm:$0xff]
  %v258 = vld [vmem:[%s5 + $0x18] sm:$0xff]
  %v259 = vld [vmem:[%s6] sm:$0x1]
  %v261 = vlaneseq
  %v262 = vshrl.u32 %v261, 7
  %v263 = vsub.s32 0, %v262
  %v264 = vrot.slane %v259, %v263
  %v267 = vsel %vm52, %v251, 0
  %v270 = vsel %vm52, %v252, 0
  %v273 = vsel %vm52, %v253, 0
  %v276 = vsel %vm52, %v254, 0
  %278 = vmatprep.subr.mxu0 0.0
  %279 = vmatpush1.msra.mxu0 %v255
  %280 = vmatprep.subr.mxu0 0.0
  %281 = vmatpush1.msra.mxu0 %v256
  %282 = vmatprep.subr.mxu0 0.0
  %283 = vmatpush1.msra.mxu0 %v257
  %284 = vmatprep.subr.mxu0 0.0
  %285 = vmatpush1.msra.mxu0 %v258
  %286 = vmatprep.subr.mxu0 0.0
  %287 = vmatpush1.msra.mxu0 0.0
  %288 = vmatprep.subr.mxu0 0.0
  %289 = vmatpush1.msra.mxu0 0.0
  %290 = vmatprep.subr.mxu0 0.0
  %291 = vmatpush1.msra.mxu0 0.0
  %292 = vmatprep.subr.mxu0 0.0
  %293 = vmatpush1.msra.mxu0 0.0
  %294 = vmatprep.subr.mxu0 0.0
  %295 = vmatpush1.msra.mxu0 0.0
  %296 = vmatprep.subr.mxu0 0.0
  %297 = vmatpush1.msra.mxu0 0.0
  %298 = vmatprep.subr.mxu0 0.0
  %299 = vmatpush1.msra.mxu0 0.0
  %300 = vmatprep.subr.mxu0 0.0
  %301 = vmatpush1.msra.mxu0 0.0
  %302 = vmatprep.subr.mxu0 0.0
  %303 = vmatpush1.msra.mxu0 0.0
  %304 = vmatprep.subr.mxu0 0.0
  %305 = vmatpush1.msra.mxu0 0.0
  %306 = vmatprep.subr.mxu0 0.0
  %307 = vmatpush1.msra.mxu0 0.0
  %308 = vmatprep.subr.mxu0 0.0
  %309 = vmatpush1.msra.mxu0 0.0
  %310 = vmatprep.subr.mxu0 0.0
  %311 = vmatpush1.msra.mxu0 0.0
  %312 = vmatprep.subr.mxu0 0.0
  %313 = vmatpush1.msra.mxu0 0.0
  %314 = vmatprep.subr.mxu0 0.0
  %315 = vmatpush1.msra.mxu0 0.0
  %316 = vmatprep.subr.mxu0 0.0
  %317 = vmatpush1.msra.mxu0 0.0
  %318 = vmatprep.subr.mxu0 0.0
  %319 = vmatpush1.msra.mxu0 0.0
  %320 = vmatprep.subr.mxu0 0.0
  %321 = vmatpush1.msra.mxu0 0.0
  %322 = vmatprep.subr.mxu0 0.0
  %323 = vmatpush1.msra.mxu0 0.0
  %324 = vmatprep.subr.mxu0 0.0
  %325 = vmatpush1.msra.mxu0 0.0
  %326 = vmatprep.subr.mxu0 0.0
  %327 = vmatpush1.msra.mxu0 0.0
  %328 = vmatprep.subr.mxu0 0.0
  %329 = vmatpush1.msra.mxu0 0.0
  %330 = vmatprep.subr.mxu0 0.0
  %331 = vmatpush1.msra.mxu0 0.0
  %332 = vmatprep.subr.mxu0 0.0
  %333 = vmatpush1.msra.mxu0 0.0
  %334 = vmatprep.subr.mxu0 0.0
  %335 = vmatpush1.msra.mxu0 0.0
  %336 = vmatprep.subr.mxu0 0.0
  %337 = vmatpush1.msra.mxu0 0.0
  %338 = vmatprep.subr.mxu0 0.0
  %339 = vmatpush1.msra.mxu0 0.0
  %340 = vmatprep.subr.mxu0 0.0
  %341 = vmatpush1.msra.mxu0 0.0
  %342 = vmatprep.mubr.f32.mxu0 0.0
  %343 = vmatmul.mubr.f32.gmra.mrb[0].mxu0 %v267
  %v344 = vpop.f32.mrb[0].mxu0
  %v345 = vadd.f32 %v264, %v344
  %v346 = vpop.f32.mrb[0].mxu0
  %347 = vmatprep.mubr.f32.mxu0 0.0
  %348 = vmatmul.mubr.f32.gmra.mrb[0].mxu0 %v270
  %v349 = vpop.f32.mrb[0].mxu0
  %v350 = vadd.f32 %v264, %v349
  %v351 = vpop.f32.mrb[0].mxu0
  %352 = vmatprep.mubr.f32.mxu0 0.0
  %353 = vmatmul.mubr.f32.gmra.mrb[0].mxu0 %v273
  %v354 = vpop.f32.mrb[0].mxu0
  %v355 = vadd.f32 %v264, %v354
  %v356 = vpop.f32.mrb[0].mxu0
  %357 = vmatprep.mubr.f32.mxu0 0.0
  %358 = vmatmul.mubr.f32.gmra.mrb[0].mxu0 %v276
  %v359 = vpop.f32.mrb[0].mxu0
  %v360 = vadd.f32 %v264, %v359
  %v361 = vpop.f32.mrb[0].mxu0
  %362 = vdwg.mxu0
  %v363 = vmax.f32 %v345, 0.0
  %v364 = vmax.f32 %v350, 0.0
  %v365 = vmax.f32 %v355, 0.0
  %v366 = vmax.f32 %v360, 0.0
  %v367 = vld [vmem:[%s7] sm:$0xff]
  %v368 = vld [vmem:[%s7 + $0x8] sm:$0xff]
  %v369 = vld [vmem:[%s7 + $0x10] sm:$0xff]
  %v370 = vld [vmem:[%s7 + $0x18] sm:$0xff]
  %v371 = vld [vmem:[%s8] sm:$0x1]
  %v373 = vlaneseq
  %v374 = vshrl.u32 %v373, 7
  %v375 = vsub.s32 0, %v374
  %v376 = vrot.slane %v371, %v375
  %v379 = vsel %vm52, %v363, 0
  %v382 = vsel %vm52, %v364, 0
  %v385 = vsel %vm52, %v365, 0
  %v388 = vsel %vm52, %v366, 0
  %390 = vmatprep.subr.mxu0 0.0
  %391 = vmatpush1.msra.mxu0 %v367
  %392 = vmatprep.subr.mxu0 0.0
  %393 = vmatpush1.msra.mxu0 %v368
  %394 = vmatprep.subr.mxu0 0.0
  %395 = vmatpush1.msra.mxu0 %v369
  %396 = vmatprep.subr.mxu0 0.0
  %397 = vmatpush1.msra.mxu0 %v370
  %398 = vmatprep.subr.mxu0 0.0
  %399 = vmatpush1.msra.mxu0 0.0
  %400 = vmatprep.subr.mxu0 0.0
  %401 = vmatpush1.msra.mxu0 0.0
  %402 = vmatprep.subr.mxu0 0.0
  %403 = vmatpush1.msra.mxu0 0.0
  %404 = vmatprep.subr.mxu0 0.0
  %405 = vmatpush1.msra.mxu0 0.0
  %406 = vmatprep.subr.mxu0 0.0
  %407 = vmatpush1.msra.mxu0 0.0
  %408 = vmatprep.subr.mxu0 0.0
  %409 = vmatpush1.msra.mxu0 0.0
  %410 = vmatprep.subr.mxu0 0.0
  %411 = vmatpush1.msra.mxu0 0.0
  %412 = vmatprep.subr.mxu0 0.0
  %413 = vmatpush1.msra.mxu0 0.0
  %414 = vmatprep.subr.mxu0 0.0
  %415 = vmatpush1.msra.mxu0 0.0
  %416 = vmatprep.subr.mxu0 0.0
  %417 = vmatpush1.msra.mxu0 0.0
  %418 = vmatprep.subr.mxu0 0.0
  %419 = vmatpush1.msra.mxu0 0.0
  %420 = vmatprep.subr.mxu0 0.0
  %421 = vmatpush1.msra.mxu0 0.0
  %422 = vmatprep.subr.mxu0 0.0
  %423 = vmatpush1.msra.mxu0 0.0
  %424 = vmatprep.subr.mxu0 0.0
  %425 = vmatpush1.msra.mxu0 0.0
  %426 = vmatprep.subr.mxu0 0.0
  %427 = vmatpush1.msra.mxu0 0.0
  %428 = vmatprep.subr.mxu0 0.0
  %429 = vmatpush1.msra.mxu0 0.0
  %430 = vmatprep.subr.mxu0 0.0
  %431 = vmatpush1.msra.mxu0 0.0
  %432 = vmatprep.subr.mxu0 0.0
  %433 = vmatpush1.msra.mxu0 0.0
  %434 = vmatprep.subr.mxu0 0.0
  %435 = vmatpush1.msra.mxu0 0.0
  %436 = vmatprep.subr.mxu0 0.0
  %437 = vmatpush1.msra.mxu0 0.0
  %438 = vmatprep.subr.mxu0 0.0
  %439 = vmatpush1.msra.mxu0 0.0
  %440 = vmatprep.subr.mxu0 0.0
  %441 = vmatpush1.msra.mxu0 0.0
  %442 = vmatprep.subr.mxu0 0.0
  %443 = vmatpush1.msra.mxu0 0.0
  %444 = vmatprep.subr.mxu0 0.0
  %445 = vmatpush1.msra.mxu0 0.0
  %446 = vmatprep.subr.mxu0 0.0
  %447 = vmatpush1.msra.mxu0 0.0
  %448 = vmatprep.subr.mxu0 0.0
  %449 = vmatpush1.msra.mxu0 0.0
  %450 = vmatprep.subr.mxu0 0.0
  %451 = vmatpush1.msra.mxu0 0.0
  %452 = vmatprep.subr.mxu0 0.0
  %453 = vmatpush1.msra.mxu0 0.0
  %454 = vmatprep.mubr.f32.mxu0 0.0
  %455 = vmatmul.mubr.f32.gmra.mrb[0].mxu0 %v379
  %v456 = vpop.f32.mrb[0].mxu0
  %v457 = vadd.f32 %v376, %v456
  %v458 = vpop.f32.mrb[0].mxu0
  %459 = vmatprep.mubr.f32.mxu0 0.0
  %460 = vmatmul.mubr.f32.gmra.mrb[0].mxu0 %v382
  %v461 = vpop.f32.mrb[0].mxu0
  %v462 = vadd.f32 %v376, %v461
  %v463 = vpop.f32.mrb[0].mxu0
  %464 = vmatprep.mubr.f32.mxu0 0.0
  %465 = vmatmul.mubr.f32.gmra.mrb[0].mxu0 %v385
  %v466 = vpop.f32.mrb[0].mxu0
  %v467 = vadd.f32 %v376, %v466
  %v468 = vpop.f32.mrb[0].mxu0
  %469 = vmatprep.mubr.f32.mxu0 0.0
  %470 = vmatmul.mubr.f32.gmra.mrb[0].mxu0 %v388
  %v471 = vpop.f32.mrb[0].mxu0
  %v472 = vadd.f32 %v376, %v471
  %v473 = vpop.f32.mrb[0].mxu0
  %474 = vdwg.mxu0
  %v475 = vld [vmem:[%s9] sm:$0xff]
  %v476 = vld [vmem:[%s9 + $0x8] sm:$0xff]
  %v477 = vld [vmem:[%s9 + $0x10] sm:$0xff]
  %v478 = vld [vmem:[%s9 + $0x18] sm:$0xff]
  %v479 = vmax.f32 %v475, 0.0
  %v480 = vmax.f32 %v476, 0.0
  %v481 = vmax.f32 %v477, 0.0
  %v482 = vmax.f32 %v478, 0.0
  %v483 = vmin.f32 %v479, 1.0
  %v484 = vmin.f32 %v480, 1.0
  %v485 = vmin.f32 %v481, 1.0
  %v486 = vmin.f32 %v482, 1.0
  %v487 = vmax.f32 %v483, 1e-05
  %v488 = vmax.f32 %v484, 1e-05
  %v489 = vmax.f32 %v485, 1e-05
  %v490 = vmax.f32 %v486, 1e-05
  %v491 = vsub.f32 1.0, %v483
  %v492 = vsub.f32 1.0, %v484
  %v493 = vsub.f32 1.0, %v485
  %v494 = vsub.f32 1.0, %v486
  %v495 = vmax.f32 %v491, 1e-05
  %v496 = vmax.f32 %v492, 1e-05
  %v497 = vmax.f32 %v493, 1e-05
  %v498 = vmax.f32 %v494, 1e-05
  %v499 = vrcp.pop %v495
  %v500 = vmul.f32 %v487, %v499
  %v501 = vrcp.pop %v496
  %v502 = vmul.f32 %v488, %v501
  %v503 = vrcp.pop %v497
  %v504 = vmul.f32 %v489, %v503
  %v505 = vrcp.pop %v498
  %v506 = vmul.f32 %v490, %v505
  %v507 = vlog2.pop %v500
  %v508 = vmul.f32 %v507, 0.6931472
  %v509 = vlog2.pop %v502
  %v510 = vmul.f32 %v509, 0.6931472
  %v511 = vlog2.pop %v504
  %v512 = vmul.f32 %v511, 0.6931472
  %v513 = vlog2.pop %v506
  %v514 = vmul.f32 %v513, 0.6931472
  %v515 = vadd.f32 %v457, %v508
  %v516 = vadd.f32 %v462, %v510
  %v517 = vadd.f32 %v467, %v512
  %v518 = vadd.f32 %v472, %v514
  %v519 = vxor.u32 %v515, 2147483648
  %v520 = vxor.u32 %v516, 2147483648
  %v521 = vxor.u32 %v517, 2147483648
  %v522 = vxor.u32 %v518, 2147483648
  %v523 = vmul.f32 %v519, 1.442695
  %v524 = vpow.pop %v523
  %v525 = vmul.f32 %v520, 1.442695
  %v526 = vpow.pop %v525
  %v527 = vmul.f32 %v521, 1.442695
  %v528 = vpow.pop %v527
  %v529 = vmul.f32 %v522, 1.442695
  %v530 = vpow.pop %v529
  %v531 = vadd.f32 %v524, 1.0
  %v532 = vadd.f32 %v526, 1.0
  %v533 = vadd.f32 %v528, 1.0
  %v534 = vadd.f32 %v530, 1.0
  %v535 = vrcp.pop %v531
  %v536 = vmul.f32 1.0, %v535
  %v537 = vrcp.pop %v532
  %v538 = vmul.f32 1.0, %v537
  %v539 = vrcp.pop %v533
  %v540 = vmul.f32 1.0, %v539
  %v541 = vrcp.pop %v534
  %v542 = vmul.f32 1.0, %v541
  %vm543 = vcmask 15360
  %544 = vst.msk [vmem:[%s11] sm:$0xff] %vm543, %v536
  %545 = vst.msk [vmem:[%s11 + $0x8] sm:$0xff] %vm543, %v538
  %546 = vst.msk [vmem:[%s11 + $0x10] sm:$0xff] %vm543, %v540
  %547 = vst.msk [vmem:[%s11 + $0x18] sm:$0xff] %vm543, %v542
  // Predicated region
  $region42: #{tadtr_forward.5} parent=0 // pred_check
    _
  $region43: #{tadtr_forward.5} parent=0 // pred_check_branch
    %549 = sbr.rel (0) target = $region45
  $region44: #{tadtr_forward.5} parent=0 // pred_region
    _
  $region45: #{tadtr_forward.5} parent=0 // pred_fallthru
    _
  // Predicated region
  $region46: #{tadtr_forward.5} parent=0 // pred_check
    _
  $region47: #{tadtr_forward.5} parent=0 // pred_check_branch
    %551 = sbr.rel (0) target = $region49
  $region48: #{tadtr_forward.5} parent=0 // pred_region
    _
  $region49: #{tadtr_forward.5} parent=0 // pred_fallthru
    _
  // Predicated region
  $region50: #{tadtr_forward.5} parent=0 // pred_check
    _
  $region51: #{tadtr_forward.5} parent=0 // pred_check_branch
    %553 = sbr.rel (0) target = $region53
  $region52: #{tadtr_forward.5} parent=0 // pred_region
    _
  $region53: #{tadtr_forward.5} parent=0 // pred_fallthru
    _
  // Predicated region
  $region54: #{tadtr_forward.5} parent=0 // pred_check
    _
  $region55: #{tadtr_forward.5} parent=0 // pred_check_branch
    %555 = sbr.rel (0) target = $region57
  $region56: #{tadtr_forward.5} parent=0 // pred_region
    _
  $region57: #{tadtr_forward.5} parent=0 // pred_fallthru
    _

// kernel: tadtr_forward.4
$region0: #{tadtr_forward.4}
  #allocation0 [shape = 'u32[]', space=smem, size = 0x4, offset = 0x4, fixed_abs, tag = 'smem constant byte address 0x4 - core index']
  #allocation1 [shape = 'u32[144,128]{1,0:T(1,128)}', space=vmem, size = 0x12000, scoped, tag = 'internal scratch']
  %s0 = inlined_call_operand.vmem [shape: f32[2,16,32], index: 0, kind: input, shape index: {}]
  %s1 = inlined_call_operand.vmem [shape: f32[8,2], index: 1, kind: input, shape index: {}]
  %s2 = inlined_call_operand.vmem [shape: f32[2,32], index: 2, kind: input, shape index: {}]
  %s3 = inlined_call_operand.vmem [shape: f32[1,32], index: 3, kind: input, shape index: {}]
  %s4 = inlined_call_operand.vmem [shape: f32[2,32,32], index: 4, kind: input, shape index: {}]
  %s5 = inlined_call_operand.vmem [shape: f32[2,1,32], index: 5, kind: input, shape index: {}]
  %s6 = inlined_call_operand.vmem [shape: f32[2,32,32], index: 6, kind: input, shape index: {}]
  %s7 = inlined_call_operand.vmem [shape: f32[2,1,32], index: 7, kind: input, shape index: {}]
  %s8 = inlined_call_operand.vmem [shape: f32[2,2,8,32], index: 8, kind: output, shape index: {0}]
  %s9 = inlined_call_operand.hbm [shape: f32[2,8,16], index: 9, kind: output, shape index: {1}]
  %s10 = inlined_call_operand.vmem [shape: f32[2,16,16], index: 10, kind: output, shape index: {2}]
  %11 = xla_tuple %s8, %s9, %s10
  %s12 = sld [smem:[#allocation0]]
  $region115: #{tadtr_forward.4} parent=0
    _
  %s14 = ssub.s32 1, %s12
  %s15 = scalar_select 0, %s14, %s12
  $region1: #{tadtr_forward.4} parent=0
    #allocation2 [shape = 'u8[16384]{0}', space=vmem, size = 0x4000, scoped, tag = 'output window, operand 0']
    #allocation3 [shape = 'u8[8192]{0}', space=vmem, size = 0x2000, scoped, tag = 'output window, operand 1']
    #allocation4 [shape = 's32[2]{0}', space=sflag, size = 0x8, scoped, tag = 'scoped memory for tadtr_forward.4']
    %16 = vsyncpa [#allocation4], 0
    %s17 = scalar_lea.sflag [#allocation4], 1
    %18 = vsyncpa %s17, 0
    loop: start=0, step=1, limit=4
    $region2: #{tadtr_forward.4} parent=1 // loop_pre_header
      _
    $region3: #{tadtr_forward.4} parent=1 // loop_header
      %s20 = sphi 0, %s24
      %p21 = scmp.ge.s32.totalorder %s20, 4
      %s30 = sphi 0, %s32
      %s33 = sphi 0, %s30
      %s34 = sphi 0, %s33
      %s50 = sphi 0, %s34
      %s54 = sphi 0, %s54
      %s56 = sphi 0, %s54
      %s57 = sphi 0, %s56
      %s71 = sphi 0, %s57
      %s75 = sphi 0, %s75
      %s77 = sphi 0, %s75
      %s78 = sphi 0, %s77
      %s92 = sphi 0, %s78
      %s96 = sphi 0, %s96
      %s98 = sphi 0, %s96
      %s99 = sphi 0, %s98
      %s113 = sphi 0, %s99
      %s117 = sphi 0, %s117
      %s119 = sphi 0, %s117
      %s120 = sphi 0, %s119
      %s134 = sphi 0, %s120
      %s138 = sphi 0, %s138
      %s140 = sphi 0, %s138
      %s141 = sphi 0, %s140
      %s155 = sphi 0, %s141
      %s159 = sphi 0, %s159
      %s161 = sphi 0, %s159
      %s162 = sphi 0, %s161
      %s176 = sphi 0, %s162
      %s180 = sphi 0, %s180
      %s182 = sphi 0, %s180
      %s183 = sphi 0, %s182
      %s197 = sphi 0, %s183
      %s203 = sphi 0, %s205
      %s206 = sphi 0, %s203
      %s207 = sphi 0, %s206
      %s223 = sphi 0, %s207
      %s229 = sphi 0, %s231
      %s232 = sphi 0, %s229
      %s233 = sphi 0, %s232
      %s249 = sphi 0, %s233
      %s255 = sphi 0, %s257
      %s258 = sphi 0, %s255
      %s259 = sphi 0, %s258
      %s275 = sphi 0, %s259
    $region4: #{tadtr_forward.4} parent=1 // loop_header_branch
      %23 = sbr.rel (%p21) target = $region8
    $region5: #{tadtr_forward.4} parent=1 // loop_body
      %s25 = ssub.s32 %s20, 1
      %s26 = ssub.s32 %s20, 2
      %s27 = sadd.s32 %s20, 1
      %s28 = ssub.s32 %s20, %s27
      %p29 = scmp.eq.s32.totalorder %s28, 0
      %s31 = sadd.s32 %s30, 1
      %s32 = scalar_select %p29, %s30, %s31
      %p35 = pneg %p29
      %p36 = scmp.eq.s32.totalorder %s20, 1
      %p37 = por %p35, %p36
      %p38 = scmp.ne.s32.totalorder %s30, %s33
      %p39 = scmp.eq.s32.totalorder %s20, 0
      %p40 = por %p38, %p39
      %p41 = scmp.ne.s32.totalorder %s30, %s33
      %p42 = scmp.eq.s32.totalorder %s25, 1
      %p43 = por %p41, %p42
      %p44 = scmp.ne.s32.totalorder %s33, %s34
      %p45 = scmp.eq.s32.totalorder %s25, 0
      %p46 = por %p44, %p45
      %p47 = scmp.ne.s32.totalorder %s33, %s34
      %p48 = scmp.eq.s32.totalorder %s26, 1
      %p49 = por %p47, %p48
      %p51 = scmp.ne.s32.totalorder %s34, %s50
      %p52 = scmp.eq.s32.totalorder %s26, 0
      %p53 = por %p51, %p52
      %s55 = sadd.s32 %s54, 1
      %p58 = scmp.eq.s32.totalorder %s20, 1
      %p59 = scmp.ne.s32.totalorder %s54, %s56
      %p60 = scmp.eq.s32.totalorder %s20, 0
      %p61 = por %p59, %p60
      %p62 = scmp.ne.s32.totalorder %s54, %s56
      %p63 = scmp.eq.s32.totalorder %s25, 1
      %p64 = por %p62, %p63
      %p65 = scmp.ne.s32.totalorder %s56, %s57
      %p66 = scmp.eq.s32.totalorder %s25, 0
      %p67 = por %p65, %p66
      %p68 = scmp.ne.s32.totalorder %s56, %s57
      %p69 = scmp.eq.s32.totalorder %s26, 1
      %p70 = por %p68, %p69
      %p72 = scmp.ne.s32.totalorder %s57, %s71
      %p73 = scmp.eq.s32.totalorder %s26, 0
      %p74 = por %p72, %p73
      %s76 = sadd.s32 %s75, 1
      %p79 = scmp.eq.s32.totalorder %s20, 1
      %p80 = scmp.ne.s32.totalorder %s75, %s77
      %p81 = scmp.eq.s32.totalorder %s20, 0
      %p82 = por %p80, %p81
      %p83 = scmp.ne.s32.totalorder %s75, %s77
      %p84 = scmp.eq.s32.totalorder %s25, 1
      %p85 = por %p83, %p84
      %p86 = scmp.ne.s32.totalorder %s77, %s78
      %p87 = scmp.eq.s32.totalorder %s25, 0
      %p88 = por %p86, %p87
      %p89 = scmp.ne.s32.totalorder %s77, %s78
      %p90 = scmp.eq.s32.totalorder %s26, 1
      %p91 = por %p89, %p90
      %p93 = scmp.ne.s32.totalorder %s78, %s92
      %p94 = scmp.eq.s32.totalorder %s26, 0
      %p95 = por %p93, %p94
      %s97 = sadd.s32 %s96, 1
      %p100 = scmp.eq.s32.totalorder %s20, 1
      %p101 = scmp.ne.s32.totalorder %s96, %s98
      %p102 = scmp.eq.s32.totalorder %s20, 0
      %p103 = por %p101, %p102
      %p104 = scmp.ne.s32.totalorder %s96, %s98
      %p105 = scmp.eq.s32.totalorder %s25, 1
      %p106 = por %p104, %p105
      %p107 = scmp.ne.s32.totalorder %s98, %s99
      %p108 = scmp.eq.s32.totalorder %s25, 0
      %p109 = por %p107, %p108
      %p110 = scmp.ne.s32.totalorder %s98, %s99
      %p111 = scmp.eq.s32.totalorder %s26, 1
      %p112 = por %p110, %p111
      %p114 = scmp.ne.s32.totalorder %s99, %s113
      %p115 = scmp.eq.s32.totalorder %s26, 0
      %p116 = por %p114, %p115
      %s118 = sadd.s32 %s117, 1
      %p121 = scmp.eq.s32.totalorder %s20, 1
      %p122 = scmp.ne.s32.totalorder %s117, %s119
      %p123 = scmp.eq.s32.totalorder %s20, 0
      %p124 = por %p122, %p123
      %p125 = scmp.ne.s32.totalorder %s117, %s119
      %p126 = scmp.eq.s32.totalorder %s25, 1
      %p127 = por %p125, %p126
      %p128 = scmp.ne.s32.totalorder %s119, %s120
      %p129 = scmp.eq.s32.totalorder %s25, 0
      %p130 = por %p128, %p129
      %p131 = scmp.ne.s32.totalorder %s119, %s120
      %p132 = scmp.eq.s32.totalorder %s26, 1
      %p133 = por %p131, %p132
      %p135 = scmp.ne.s32.totalorder %s120, %s134
      %p136 = scmp.eq.s32.totalorder %s26, 0
      %p137 = por %p135, %p136
      %s139 = sadd.s32 %s138, 1
      %p142 = scmp.eq.s32.totalorder %s20, 1
      %p143 = scmp.ne.s32.totalorder %s138, %s140
      %p144 = scmp.eq.s32.totalorder %s20, 0
      %p145 = por %p143, %p144
      %p146 = scmp.ne.s32.totalorder %s138, %s140
      %p147 = scmp.eq.s32.totalorder %s25, 1
      %p148 = por %p146, %p147
      %p149 = scmp.ne.s32.totalorder %s140, %s141
      %p150 = scmp.eq.s32.totalorder %s25, 0
      %p151 = por %p149, %p150
      %p152 = scmp.ne.s32.totalorder %s140, %s141
      %p153 = scmp.eq.s32.totalorder %s26, 1
      %p154 = por %p152, %p153
      %p156 = scmp.ne.s32.totalorder %s141, %s155
      %p157 = scmp.eq.s32.totalorder %s26, 0
      %p158 = por %p156, %p157
      %s160 = sadd.s32 %s159, 1
      %p163 = scmp.eq.s32.totalorder %s20, 1
      %p164 = scmp.ne.s32.totalorder %s159, %s161
      %p165 = scmp.eq.s32.totalorder %s20, 0
      %p166 = por %p164, %p165
      %p167 = scmp.ne.s32.totalorder %s159, %s161
      %p168 = scmp.eq.s32.totalorder %s25, 1
      %p169 = por %p167, %p168
      %p170 = scmp.ne.s32.totalorder %s161, %s162
      %p171 = scmp.eq.s32.totalorder %s25, 0
      %p172 = por %p170, %p171
      %p173 = scmp.ne.s32.totalorder %s161, %s162
      %p174 = scmp.eq.s32.totalorder %s26, 1
      %p175 = por %p173, %p174
      %p177 = scmp.ne.s32.totalorder %s162, %s176
      %p178 = scmp.eq.s32.totalorder %s26, 0
      %p179 = por %p177, %p178
      %s181 = sadd.s32 %s180, 1
      %p184 = scmp.eq.s32.totalorder %s20, 1
      %p185 = scmp.ne.s32.totalorder %s180, %s182
      %p186 = scmp.eq.s32.totalorder %s20, 0
      %p187 = por %p185, %p186
      %p188 = scmp.ne.s32.totalorder %s180, %s182
      %p189 = scmp.eq.s32.totalorder %s25, 1
      %p190 = por %p188, %p189
      %p191 = scmp.ne.s32.totalorder %s182, %s183
      %p192 = scmp.eq.s32.totalorder %s25, 0
      %p193 = por %p191, %p192
      %p194 = scmp.ne.s32.totalorder %s182, %s183
      %p195 = scmp.eq.s32.totalorder %s26, 1
      %p196 = por %p194, %p195
      %p198 = scmp.ne.s32.totalorder %s183, %s197
      %p199 = scmp.eq.s32.totalorder %s26, 0
      %p200 = por %p198, %p199
      %s201 = ssub.s32 %s20, %s27
      %p202 = scmp.eq.s32.totalorder %s201, 0
      %s204 = sadd.s32 %s203, 1
      %s205 = scalar_select %p202, %s203, %s204
      %p208 = pneg %p202
      %p209 = scmp.eq.s32.totalorder %s20, 1
      %p210 = por %p208, %p209
      %p211 = scmp.ne.s32.totalorder %s203, %s206
      %p212 = scmp.eq.s32.totalorder %s20, 0
      %p213 = por %p211, %p212
      %p214 = scmp.ne.s32.totalorder %s203, %s206
      %p215 = scmp.eq.s32.totalorder %s25, 1
      %p216 = por %p214, %p215
      %p217 = scmp.ne.s32.totalorder %s206, %s207
      %p218 = scmp.eq.s32.totalorder %s25, 0
      %p219 = por %p217, %p218
      %p220 = scmp.ne.s32.totalorder %s206, %s207
      %p221 = scmp.eq.s32.totalorder %s26, 1
      %p222 = por %p220, %p221
      %p224 = scmp.ne.s32.totalorder %s207, %s223
      %p225 = scmp.eq.s32.totalorder %s26, 0
      %p226 = por %p224, %p225
      %s227 = ssub.s32 %s20, %s27
      %p228 = scmp.eq.s32.totalorder %s227, 0
      %s230 = sadd.s32 %s229, 1
      %s231 = scalar_select %p228, %s229, %s230
      %p234 = pneg %p228
      %p235 = scmp.eq.s32.totalorder %s20, 1
      %p236 = por %p234, %p235
      %p237 = scmp.ne.s32.totalorder %s229, %s232
      %p238 = scmp.eq.s32.totalorder %s20, 0
      %p239 = por %p237, %p238
      %p240 = scmp.ne.s32.totalorder %s229, %s232
      %p241 = scmp.eq.s32.totalorder %s25, 1
      %p242 = por %p240, %p241
      %p243 = scmp.ne.s32.totalorder %s232, %s233
      %p244 = scmp.eq.s32.totalorder %s25, 0
      %p245 = por %p243, %p244
      %p246 = scmp.ne.s32.totalorder %s232, %s233
      %p247 = scmp.eq.s32.totalorder %s26, 1
      %p248 = por %p246, %p247
      %p250 = scmp.ne.s32.totalorder %s233, %s249
      %p251 = scmp.eq.s32.totalorder %s26, 0
      %p252 = por %p250, %p251
      %s253 = ssub.s32 %s20, %s27
      %p254 = scmp.eq.s32.totalorder %s253, 0
      %s256 = sadd.s32 %s255, 1
      %s257 = scalar_select %p254, %s255, %s256
      %p260 = pneg %p254
      %p261 = scmp.eq.s32.totalorder %s20, 1
      %p262 = por %p260, %p261
      %p263 = scmp.ne.s32.totalorder %s255, %s258
      %p264 = scmp.eq.s32.totalorder %s20, 0
      %p265 = por %p263, %p264
      %p266 = scmp.ne.s32.totalorder %s255, %s258
      %p267 = scmp.eq.s32.totalorder %s25, 1
      %p268 = por %p266, %p267
      %p269 = scmp.ne.s32.totalorder %s258, %s259
      %p270 = scmp.eq.s32.totalorder %s25, 0
      %p271 = por %p269, %p270
      %p272 = scmp.ne.s32.totalorder %s258, %s259
      %p273 = scmp.eq.s32.totalorder %s26, 1
      %p274 = por %p272, %p273
      %p276 = scmp.ne.s32.totalorder %s259, %s275
      %p277 = scmp.eq.s32.totalorder %s26, 0
      %p278 = por %p276, %p277
      %p279 = scmp.le.s32.totalorder 1, %s20
      %p280 = scmp.lt.s32.totalorder %s20, 3
      %p281 = pnand %p279, %p280
      %p282 = pneg %p281
      // Predicated region
      $region9: #{tadtr_forward.4} parent=5 // pred_check
        _
      $region10: #{tadtr_forward.4} parent=5 // pred_check_branch
        %284 = sbr.rel (%p281) target = $region12
      $region11: #{tadtr_forward.4} parent=5 // pred_region
        %s285 = ssub.s32 %s20, 1
        // Predicated region
        $region13: #{tadtr_forward.4} parent=11 // pred_check
          %p286 = pneg %p67
        $region14: #{tadtr_forward.4} parent=11 // pred_check_branch
          %288 = sbr.rel (%p286) target = $region16
        $region15: #{tadtr_forward.4} parent=11 // pred_region
          _
        $region16: #{tadtr_forward.4} parent=11 // pred_fallthru
          _
        // Predicated region
        $region17: #{tadtr_forward.4} parent=11 // pred_check
          %p289 = pneg %p88
        $region18: #{tadtr_forward.4} parent=11 // pred_check_branch
          %291 = sbr.rel (%p289) target = $region20
        $region19: #{tadtr_forward.4} parent=11 // pred_region
          _
        $region20: #{tadtr_forward.4} parent=11 // pred_fallthru
          _
        // Predicated region
        $region21: #{tadtr_forward.4} parent=11 // pred_check
          %p292 = pneg %p109
        $region22: #{tadtr_forward.4} parent=11 // pred_check_branch
          %294 = sbr.rel (%p292) target = $region24
        $region23: #{tadtr_forward.4} parent=11 // pred_region
          _
        $region24: #{tadtr_forward.4} parent=11 // pred_fallthru
          _
        // Predicated region
        $region25: #{tadtr_forward.4} parent=11 // pred_check
          %p295 = pneg %p130
        $region26: #{tadtr_forward.4} parent=11 // pred_check_branch
          %297 = sbr.rel (%p295) target = $region28
        $region27: #{tadtr_forward.4} parent=11 // pred_region
          _
        $region28: #{tadtr_forward.4} parent=11 // pred_fallthru
          _
        // Predicated region
        $region29: #{tadtr_forward.4} parent=11 // pred_check
          %p298 = pneg %p151
        $region30: #{tadtr_forward.4} parent=11 // pred_check_branch
          %300 = sbr.rel (%p298) target = $region32
        $region31: #{tadtr_forward.4} parent=11 // pred_region
          _
        $region32: #{tadtr_forward.4} parent=11 // pred_fallthru
          _
        // Predicated region
        $region33: #{tadtr_forward.4} parent=11 // pred_check
          %p301 = pneg %p172
        $region34: #{tadtr_forward.4} parent=11 // pred_check_branch
          %303 = sbr.rel (%p301) target = $region36
        $region35: #{tadtr_forward.4} parent=11 // pred_region
          _
        $region36: #{tadtr_forward.4} parent=11 // pred_fallthru
          _
        // Predicated region
        $region37: #{tadtr_forward.4} parent=11 // pred_check
          %p304 = pneg %p193
        $region38: #{tadtr_forward.4} parent=11 // pred_check_branch
          %306 = sbr.rel (%p304) target = $region40
        $region39: #{tadtr_forward.4} parent=11 // pred_region
          _
        $region40: #{tadtr_forward.4} parent=11 // pred_fallthru
          _
      $region12: #{tadtr_forward.4} parent=5 // pred_fallthru
        _
      %p307 = scmp.lt.s32.totalorder %s20, 2
      // Predicated region
      $region41: #{tadtr_forward.4} parent=5 // pred_check
        %p308 = pneg %p307
      $region42: #{tadtr_forward.4} parent=5 // pred_check_branch
        %310 = sbr.rel (%p308) target = $region44
      $region43: #{tadtr_forward.4} parent=5 // pred_region
        // Predicated region
        $region45: #{tadtr_forward.4} parent=43 // pred_check
          %p311 = pneg %p40
        $region46: #{tadtr_forward.4} parent=43 // pred_check_branch
          %313 = sbr.rel (%p311) target = $region48
        $region47: #{tadtr_forward.4} parent=43 // pred_region
          %p314 = scmp.lt.s32.totalorder %s20, 1
          %s315 = scalar_select %p314, %s20, 1
          %s316 = smul.addr %s315, 2
          %s317 = smul.addr %s316, 8
          %s318 = scalar_lea.vmem %s0, %s317
        $region48: #{tadtr_forward.4} parent=43 // pred_fallthru
          _
      $region44: #{tadtr_forward.4} parent=5 // pred_fallthru
        _
      %p319 = scmp.le.s32.totalorder 1, %s20
      %p320 = scmp.lt.s32.totalorder %s20, 3
      %p321 = pnand %p319, %p320
      %p322 = pneg %p321
      // Predicated region
      $region49: #{tadtr_forward.4} parent=5 // pred_check
        _
      $region50: #{tadtr_forward.4} parent=5 // pred_check_branch
        %324 = sbr.rel (%p321) target = $region52
      $region51: #{tadtr_forward.4} parent=5 // pred_region
        %s325 = ssub.s32 %s20, 1
        %p326 = scmp.lt.s32.totalorder %s25, 1
        %s327 = scalar_select %p326, %s25, 1
        %s328 = smul.addr %s327, 2
        %s329 = smul.addr %s328, 8
        %s330 = scalar_lea.vmem %s0, %s329
        %p331 = pneg %p46
        %p332 = pneg %p43
        %p333 = pneg %p67
        %p334 = pneg %p64
        %p335 = pneg %p88
        %p336 = pneg %p85
        %p337 = pneg %p109
        %p338 = pneg %p106
        %p339 = pneg %p130
        %p340 = pneg %p127
        %p341 = pneg %p151
        %p342 = pneg %p148
        %p343 = pneg %p172
        %p344 = pneg %p169
        %p345 = pneg %p193
        %p346 = pneg %p190
        %p347 = pneg %p219
        %p348 = pneg %p216
        %s349 = sand.u32 %s206, 1
        %s350 = sand.u32 %s206, 1
        %s351 = smul.addr %s350, 16
        %s352 = scalar_lea.vmem [#allocation2], %s351
        %p353 = pneg %p245
        %p354 = pneg %p242
        %s355 = sand.u32 %s232, 1
        %s356 = scalar_lea.sflag [#allocation4], %s355
        %s357 = sand.u32 %s232, 1
        %s358 = smul.addr %s357, 8
        %s359 = scalar_lea.vmem [#allocation3], %s358
        %p360 = pneg %p271
        %p361 = pneg %p268
        %p362 = scmp.lt.s32.totalorder %s25, 1
        %s363 = scalar_select %p362, %s25, 1
        %s364 = smul.addr %s363, 2
        %s365 = smul.addr %s364, 8
        %s366 = scalar_lea.vmem %s10, %s365
        %p367 = scmp.lt.s32.totalorder %s25, 1
        %s368 = scalar_select %p367, %s25, 1
        %s369 = smul.addr %s368, 2
        %s370 = smul.addr %s369, 8
        %s371 = scalar_lea.vmem %s0, %s370
        %p372 = scmp.lt.s32.totalorder %s25, 1
        %s373 = scalar_select %p372, %s25, 1
        %s374 = smul.addr %s373, 2
        %s375 = smul.addr %s374, 8
        %s376 = scalar_lea.vmem %s10, %s375
        %v377 = vld [vmem:[%s371] sm:$0xff]
        %v378 = vld [vmem:[%s371 + $0x8] sm:$0xff]
        %v379 = vld [vmem:[%s1] sm:$0xff]
        %v380 = vld [vmem:[%s2] sm:$0x3]
        %v381 = vld [vmem:[%s3] sm:$0x1]
        %v383 = vlaneseq
        %v384 = vshrl.u32 %v383, 7
        %v385 = vsub.s32 0, %v384
        %v386 = vrot.slane %v381, %v385
        %vm388 = vcmask 15360
        %v390 = vsel %vm388, %v379, 0
        %vm392 = vcmask 1041408
        %v394 = vsel %vm392, %v380, 0
        %396 = vmatprep.subr.mxu0 0.0
        %397 = vmatpush1.msra.mxu0 %v394
        %398 = vmatprep.subr.mxu0 0.0
        %399 = vmatpush1.msra.mxu0 0.0
        %400 = vmatprep.subr.mxu0 0.0
        %401 = vmatpush1.msra.mxu0 0.0
        %402 = vmatprep.subr.mxu0 0.0
        %403 = vmatpush1.msra.mxu0 0.0
        %404 = vmatprep.subr.mxu0 0.0
        %405 = vmatpush1.msra.mxu0 0.0
        %406 = vmatprep.subr.mxu0 0.0
        %407 = vmatpush1.msra.mxu0 0.0
        %408 = vmatprep.subr.mxu0 0.0
        %409 = vmatpush1.msra.mxu0 0.0
        %410 = vmatprep.subr.mxu0 0.0
        %411 = vmatpush1.msra.mxu0 0.0
        %412 = vmatprep.subr.mxu0 0.0
        %413 = vmatpush1.msra.mxu0 0.0
        %414 = vmatprep.subr.mxu0 0.0
        %415 = vmatpush1.msra.mxu0 0.0
        %416 = vmatprep.subr.mxu0 0.0
        %417 = vmatpush1.msra.mxu0 0.0
        %418 = vmatprep.subr.mxu0 0.0
        %419 = vmatpush1.msra.mxu0 0.0
        %420 = vmatprep.subr.mxu0 0.0
        %421 = vmatpush1.msra.mxu0 0.0
        %422 = vmatprep.subr.mxu0 0.0
        %423 = vmatpush1.msra.mxu0 0.0
        %424 = vmatprep.subr.mxu0 0.0
        %425 = vmatpush1.msra.mxu0 0.0
        %426 = vmatprep.subr.mxu0 0.0
        %427 = vmatpush1.msra.mxu0 0.0
        %428 = vmatprep.subr.mxu0 0.0
        %429 = vmatpush1.msra.mxu0 0.0
        %430 = vmatprep.subr.mxu0 0.0
        %431 = vmatpush1.msra.mxu0 0.0
        %432 = vmatprep.subr.mxu0 0.0
        %433 = vmatpush1.msra.mxu0 0.0
        %434 = vmatprep.subr.mxu0 0.0
        %435 = vmatpush1.msra.mxu0 0.0
        %436 = vmatprep.subr.mxu0 0.0
        %437 = vmatpush1.msra.mxu0 0.0
        %438 = vmatprep.subr.mxu0 0.0
        %439 = vmatpush1.msra.mxu0 0.0
        %440 = vmatprep.subr.mxu0 0.0
        %441 = vmatpush1.msra.mxu0 0.0
        %442 = vmatprep.subr.mxu0 0.0
        %443 = vmatpush1.msra.mxu0 0.0
        %444 = vmatprep.subr.mxu0 0.0
        %445 = vmatpush1.msra.mxu0 0.0
        %446 = vmatprep.subr.mxu0 0.0
        %447 = vmatpush1.msra.mxu0 0.0
        %448 = vmatprep.subr.mxu0 0.0
        %449 = vmatpush1.msra.mxu0 0.0
        %450 = vmatprep.subr.mxu0 0.0
        %451 = vmatpush1.msra.mxu0 0.0
        %452 = vmatprep.subr.mxu0 0.0
        %453 = vmatpush1.msra.mxu0 0.0
        %454 = vmatprep.subr.mxu0 0.0
        %455 = vmatpush1.msra.mxu0 0.0
        %456 = vmatprep.subr.mxu0 0.0
        %457 = vmatpush1.msra.mxu0 0.0
        %458 = vmatprep.subr.mxu0 0.0
        %459 = vmatpush1.msra.mxu0 0.0
        %460 = vmatprep.mubr.f32.mxu0 0.0
        %461 = vmatmul.mubr.f32.gmra.mrb[0].mxu0 %v390
        %v462 = vpop.f32.mrb[0].mxu0
        %v463 = vadd.f32 %v386, %v462
        %v464 = vpop.f32.mrb[0].mxu0
        %465 = vdwg.mxu0
        %v466 = vadd.f32 %v463, 0.0
        %vm467 = vcmask 261120
        %v469 = vsel %vm467, %v466, 0
        %v472 = vsel %vm467, %v377, 0
        %v475 = vsel %vm467, %v378, 0
        %477 = vmatprep.subr.mxu0 0.0
        %478 = vmatpush1.xpose.msra.mxu0 %v472
        %479 = vmatprep.subr.mxu0 0.0
        %480 = vmatpush1.xpose.msra.mxu0 %v475
        %481 = vmatprep.subr.mxu0 0.0
        %482 = vmatpush1.xpose.msra.mxu0 0.0
        %483 = vmatprep.subr.mxu0 0.0
        %484 = vmatpush1.xpose.msra.mxu0 0.0
        %485 = vmatprep.subr.mxu0 0.0
        %486 = vmatpush1.xpose.msra.mxu0 0.0
        %487 = vmatprep.subr.mxu0 0.0
        %488 = vmatpush1.xpose.msra.mxu0 0.0
        %489 = vmatprep.subr.mxu0 0.0
        %490 = vmatpush1.xpose.msra.mxu0 0.0
        %491 = vmatprep.subr.mxu0 0.0
        %492 = vmatpush1.xpose.msra.mxu0 0.0
        %493 = vmatprep.subr.mxu0 0.0
        %494 = vmatpush1.xpose.msra.mxu0 0.0
        %495 = vmatprep.subr.mxu0 0.0
        %496 = vmatpush1.xpose.msra.mxu0 0.0
        %497 = vmatprep.subr.mxu0 0.0
        %498 = vmatpush1.xpose.msra.mxu0 0.0
        %499 = vmatprep.subr.mxu0 0.0
        %500 = vmatpush1.xpose.msra.mxu0 0.0
        %501 = vmatprep.subr.mxu0 0.0
        %502 = vmatpush1.xpose.msra.mxu0 0.0
        %503 = vmatprep.subr.mxu0 0.0
        %504 = vmatpush1.xpose.msra.mxu0 0.0
        %505 = vmatprep.subr.mxu0 0.0
        %506 = vmatpush1.xpose.msra.mxu0 0.0
        %507 = vmatprep.subr.mxu0 0.0
        %508 = vmatpush1.xpose.msra.mxu0 0.0
        %509 = vmatprep.subr.mxu0 0.0
        %510 = vmatpush1.xpose.msra.mxu0 0.0
        %511 = vmatprep.subr.mxu0 0.0
        %512 = vmatpush1.xpose.msra.mxu0 0.0
        %513 = vmatprep.subr.mxu0 0.0
        %514 = vmatpush1.xpose.msra.mxu0 0.0
        %515 = vmatprep.subr.mxu0 0.0
        %516 = vmatpush1.xpose.msra.mxu0 0.0
        %517 = vmatprep.subr.mxu0 0.0
        %518 = vmatpush1.xpose.msra.mxu0 0.0
        %519 = vmatprep.subr.mxu0 0.0
        %520 = vmatpush1.xpose.msra.mxu0 0.0
        %521 = vmatprep.subr.mxu0 0.0
        %522 = vmatpush1.xpose.msra.mxu0 0.0
        %523 = vmatprep.subr.mxu0 0.0
        %524 = vmatpush1.xpose.msra.mxu0 0.0
        %525 = vmatprep.subr.mxu0 0.0
        %526 = vmatpush1.xpose.msra.mxu0 0.0
        %527 = vmatprep.subr.mxu0 0.0
        %528 = vmatpush1.xpose.msra.mxu0 0.0
        %529 = vmatprep.subr.mxu0 0.0
        %530 = vmatpush1.xpose.msra.mxu0 0.0
        %531 = vmatprep.subr.mxu0 0.0
        %532 = vmatpush1.xpose.msra.mxu0 0.0
        %533 = vmatprep.subr.mxu0 0.0
        %534 = vmatpush1.xpose.msra.mxu0 0.0
        %535 = vmatprep.subr.mxu0 0.0
        %536 = vmatpush1.xpose.msra.mxu0 0.0
        %537 = vmatprep.subr.mxu0 0.0
        %538 = vmatpush1.xpose.msra.mxu0 0.0
        %539 = vmatprep.subr.mxu0 0.0
        %540 = vmatpush1.xpose.msra.mxu0 0.0
        %541 = vmatprep.mubr.f32.mxu0 0.0
        %542 = vmatmul.mubr.f32.gmra.mrb[0].mxu0 %v469
        %v543 = vpop.f32.mrb[0].mxu0
        %v544 = vadd.f32 0.0, %v543
        %v545 = vpop.f32.mrb[0].mxu0
        %546 = vdwg.mxu0
        %v547 = vmul.f32 %v544, 0.17677669
        %vm548 = vcmask 130048
        %v549 = vsel %vm548, %v547, -inf
        %550 = vmax.xlane.f32.xlu0 %v549
        %v551 = vpop.xlane.xlu0 %550
        %v552 = vsub.f32 %v547, %v551
        %v553 = vmul.f32 %v552, 1.442695
        %v554 = vpow.pop %v553
        %v555 = vsel %vm548, %v554, 0.0
        %556 = vadd.xlane.f32.xlu0 %v555
        %v557 = vpop.xlane.xlu0 %556
        %v558 = vrcp.pop %v557
        %v559 = vmul.f32 %v554, %v558
        %v561 = vsel %vm548, %v559, 0
        %563 = vmatprep.subr.mxu0 0.0
        %564 = vmatpush1.msra.mxu0 %v377
        %565 = vmatprep.subr.mxu0 0.0
        %566 = vmatpush1.msra.mxu0 %v378
        %567 = vmatprep.subr.mxu0 0.0
        %568 = vmatpush1.msra.mxu0 0.0
        %569 = vmatprep.subr.mxu0 0.0
        %570 = vmatpush1.msra.mxu0 0.0
        %571 = vmatprep.subr.mxu0 0.0
        %572 = vmatpush1.msra.mxu0 0.0
        %573 = vmatprep.subr.mxu0 0.0
        %574 = vmatpush1.msra.mxu0 0.0
        %575 = vmatprep.subr.mxu0 0.0
        %576 = vmatpush1.msra.mxu0 0.0
        %577 = vmatprep.subr.mxu0 0.0
        %578 = vmatpush1.msra.mxu0 0.0
        %579 = vmatprep.subr.mxu0 0.0
        %580 = vmatpush1.msra.mxu0 0.0
        %581 = vmatprep.subr.mxu0 0.0
        %582 = vmatpush1.msra.mxu0 0.0
        %583 = vmatprep.subr.mxu0 0.0
        %584 = vmatpush1.msra.mxu0 0.0
        %585 = vmatprep.subr.mxu0 0.0
        %586 = vmatpush1.msra.mxu0 0.0
        %587 = vmatprep.subr.mxu0 0.0
        %588 = vmatpush1.msra.mxu0 0.0
        %589 = vmatprep.subr.mxu0 0.0
        %590 = vmatpush1.msra.mxu0 0.0
        %591 = vmatprep.subr.mxu0 0.0
        %592 = vmatpush1.msra.mxu0 0.0
        %593 = vmatprep.subr.mxu0 0.0
        %594 = vmatpush1.msra.mxu0 0.0
        %595 = vmatprep.subr.mxu0 0.0
        %596 = vmatpush1.msra.mxu0 0.0
        %597 = vmatprep.subr.mxu0 0.0
        %598 = vmatpush1.msra.mxu0 0.0
        %599 = vmatprep.subr.mxu0 0.0
        %600 = vmatpush1.msra.mxu0 0.0
        %601 = vmatprep.subr.mxu0 0.0
        %602 = vmatpush1.msra.mxu0 0.0
        %603 = vmatprep.subr.mxu0 0.0
        %604 = vmatpush1.msra.mxu0 0.0
        %605 = vmatprep.subr.mxu0 0.0
        %606 = vmatpush1.msra.mxu0 0.0
        %607 = vmatprep.subr.mxu0 0.0
        %608 = vmatpush1.msra.mxu0 0.0
        %609 = vmatprep.subr.mxu0 0.0
        %610 = vmatpush1.msra.mxu0 0.0
        %611 = vmatprep.subr.mxu0 0.0
        %612 = vmatpush1.msra.mxu0 0.0
        %613 = vmatprep.subr.mxu0 0.0
        %614 = vmatpush1.msra.mxu0 0.0
        %615 = vmatprep.subr.mxu0 0.0
        %616 = vmatpush1.msra.mxu0 0.0
        %617 = vmatprep.subr.mxu0 0.0
        %618 = vmatpush1.msra.mxu0 0.0
        %619 = vmatprep.subr.mxu0 0.0
        %620 = vmatpush1.msra.mxu0 0.0
        %621 = vmatprep.subr.mxu0 0.0
        %622 = vmatpush1.msra.mxu0 0.0
        %623 = vmatprep.subr.mxu0 0.0
        %624 = vmatpush1.msra.mxu0 0.0
        %625 = vmatprep.subr.mxu0 0.0
        %626 = vmatpush1.msra.mxu0 0.0
        %627 = vmatprep.mubr.f32.mxu0 0.0
        %628 = vmatmul.mubr.f32.gmra.mrb[0].mxu0 %v561
        %v629 = vpop.f32.mrb[0].mxu0
        %v630 = vadd.f32 0.0, %v629
        %v631 = vpop.f32.mrb[0].mxu0
        %632 = vdwg.mxu0
        %v633 = vld [vmem:[%s4] sm:$0xff]
        %v634 = vld [vmem:[%s4 + $0x8] sm:$0xff]
        %v635 = vld [vmem:[%s4 + $0x10] sm:$0xff]
        %v636 = vld [vmem:[%s4 + $0x18] sm:$0xff]
        %v637 = vld [vmem:[%s5] sm:$0x1]
        %v639 = vlaneseq
        %v640 = vshrl.u32 %v639, 7
        %v641 = vsub.s32 0, %v640
        %v642 = vrot.slane %v637, %v641
        %v645 = vsel %vm467, %v630, 0
        %647 = vmatprep.subr.mxu0 0.0
        %648 = vmatpush1.msra.mxu0 %v633
        %649 = vmatprep.subr.mxu0 0.0
        %650 = vmatpush1.msra.mxu0 %v634
        %651 = vmatprep.subr.mxu0 0.0
        %652 = vmatpush1.msra.mxu0 %v635
        %653 = vmatprep.subr.mxu0 0.0
        %654 = vmatpush1.msra.mxu0 %v636
        %655 = vmatprep.subr.mxu0 0.0
        %656 = vmatpush1.msra.mxu0 0.0
        %657 = vmatprep.subr.mxu0 0.0
        %658 = vmatpush1.msra.mxu0 0.0
        %659 = vmatprep.subr.mxu0 0.0
        %660 = vmatpush1.msra.mxu0 0.0
        %661 = vmatprep.subr.mxu0 0.0
        %662 = vmatpush1.msra.mxu0 0.0
        %663 = vmatprep.subr.mxu0 0.0
        %664 = vmatpush1.msra.mxu0 0.0
        %665 = vmatprep.subr.mxu0 0.0
        %666 = vmatpush1.msra.mxu0 0.0
        %667 = vmatprep.subr.mxu0 0.0
        %668 = vmatpush1.msra.mxu0 0.0
        %669 = vmatprep.subr.mxu0 0.0
        %670 = vmatpush1.msra.mxu0 0.0
        %671 = vmatprep.subr.mxu0 0.0
        %672 = vmatpush1.msra.mxu0 0.0
        %673 = vmatprep.subr.mxu0 0.0
        %674 = vmatpush1.msra.mxu0 0.0
        %675 = vmatprep.subr.mxu0 0.0
        %676 = vmatpush1.msra.mxu0 0.0
        %677 = vmatprep.subr.mxu0 0.0
        %678 = vmatpush1.msra.mxu0 0.0
        %679 = vmatprep.subr.mxu0 0.0
        %680 = vmatpush1.msra.mxu0 0.0
        %681 = vmatprep.subr.mxu0 0.0
        %682 = vmatpush1.msra.mxu0 0.0
        %683 = vmatprep.subr.mxu0 0.0
        %684 = vmatpush1.msra.mxu0 0.0
        %685 = vmatprep.subr.mxu0 0.0
        %686 = vmatpush1.msra.mxu0 0.0
        %687 = vmatprep.subr.mxu0 0.0
        %688 = vmatpush1.msra.mxu0 0.0
        %689 = vmatprep.subr.mxu0 0.0
        %690 = vmatpush1.msra.mxu0 0.0
        %691 = vmatprep.subr.mxu0 0.0
        %692 = vmatpush1.msra.mxu0 0.0
        %693 = vmatprep.subr.mxu0 0.0
        %694 = vmatpush1.msra.mxu0 0.0
        %695 = vmatprep.subr.mxu0 0.0
        %696 = vmatpush1.msra.mxu0 0.0
        %697 = vmatprep.subr.mxu0 0.0
        %698 = vmatpush1.msra.mxu0 0.0
        %699 = vmatprep.subr.mxu0 0.0
        %700 = vmatpush1.msra.mxu0 0.0
        %701 = vmatprep.subr.mxu0 0.0
        %702 = vmatpush1.msra.mxu0 0.0
        %703 = vmatprep.subr.mxu0 0.0
        %704 = vmatpush1.msra.mxu0 0.0
        %705 = vmatprep.subr.mxu0 0.0
        %706 = vmatpush1.msra.mxu0 0.0
        %707 = vmatprep.subr.mxu0 0.0
        %708 = vmatpush1.msra.mxu0 0.0
        %709 = vmatprep.subr.mxu0 0.0
        %710 = vmatpush1.msra.mxu0 0.0
        %711 = vmatprep.mubr.f32.mxu0 0.0
        %712 = vmatmul.mubr.f32.gmra.mrb[0].mxu0 %v645
        %v713 = vpop.f32.mrb[0].mxu0
        %v714 = vadd.f32 %v642, %v713
        %v715 = vpop.f32.mrb[0].mxu0
        %716 = vdwg.mxu0
        %v717 = vmax.f32 %v714, 0.0
        %v718 = vld [vmem:[%s6] sm:$0xff]
        %v719 = vld [vmem:[%s6 + $0x8] sm:$0xff]
        %v720 = vld [vmem:[%s6 + $0x10] sm:$0xff]
        %v721 = vld [vmem:[%s6 + $0x18] sm:$0xff]
        %v722 = vld [vmem:[%s7] sm:$0x1]
        %v724 = vlaneseq
        %v725 = vshrl.u32 %v724, 7
        %v726 = vsub.s32 0, %v725
        %v727 = vrot.slane %v722, %v726
        %v730 = vsel %vm467, %v717, 0
        %732 = vmatprep.subr.mxu0 0.0
        %733 = vmatpush1.msra.mxu0 %v718
        %734 = vmatprep.subr.mxu0 0.0
        %735 = vmatpush1.msra.mxu0 %v719
        %736 = vmatprep.subr.mxu0 0.0
        %737 = vmatpush1.msra.mxu0 %v720
        %738 = vmatprep.subr.mxu0 0.0
        %739 = vmatpush1.msra.mxu0 %v721
        %740 = vmatprep.subr.mxu0 0.0
        %741 = vmatpush1.msra.mxu0 0.0
        %742 = vmatprep.subr.mxu0 0.0
        %743 = vmatpush1.msra.mxu0 0.0
        %744 = vmatprep.subr.mxu0 0.0
        %745 = vmatpush1.msra.mxu0 0.0
        %746 = vmatprep.subr.mxu0 0.0
        %747 = vmatpush1.msra.mxu0 0.0
        %748 = vmatprep.subr.mxu0 0.0
        %749 = vmatpush1.msra.mxu0 0.0
        %750 = vmatprep.subr.mxu0 0.0
        %751 = vmatpush1.msra.mxu0 0.0
        %752 = vmatprep.subr.mxu0 0.0
        %753 = vmatpush1.msra.mxu0 0.0
        %754 = vmatprep.subr.mxu0 0.0
        %755 = vmatpush1.msra.mxu0 0.0
        %756 = vmatprep.subr.mxu0 0.0
        %757 = vmatpush1.msra.mxu0 0.0
        %758 = vmatprep.subr.mxu0 0.0
        %759 = vmatpush1.msra.mxu0 0.0
        %760 = vmatprep.subr.mxu0 0.0
        %761 = vmatpush1.msra.mxu0 0.0
        %762 = vmatprep.subr.mxu0 0.0
        %763 = vmatpush1.msra.mxu0 0.0
        %764 = vmatprep.subr.mxu0 0.0
        %765 = vmatpush1.msra.mxu0 0.0
        %766 = vmatprep.subr.mxu0 0.0
        %767 = vmatpush1.msra.mxu0 0.0
        %768 = vmatprep.subr.mxu0 0.0
        %769 = vmatpush1.msra.mxu0 0.0
        %770 = vmatprep.subr.mxu0 0.0
        %771 = vmatpush1.msra.mxu0 0.0
        %772 = vmatprep.subr.mxu0 0.0
        %773 = vmatpush1.msra.mxu0 0.0
        %774 = vmatprep.subr.mxu0 0.0
        %775 = vmatpush1.msra.mxu0 0.0
        %776 = vmatprep.subr.mxu0 0.0
        %777 = vmatpush1.msra.mxu0 0.0
        %778 = vmatprep.subr.mxu0 0.0
        %779 = vmatpush1.msra.mxu0 0.0
        %780 = vmatprep.subr.mxu0 0.0
        %781 = vmatpush1.msra.mxu0 0.0
        %782 = vmatprep.subr.mxu0 0.0
        %783 = vmatpush1.msra.mxu0 0.0
        %784 = vmatprep.subr.mxu0 0.0
        %785 = vmatpush1.msra.mxu0 0.0
        %786 = vmatprep.subr.mxu0 0.0
        %787 = vmatpush1.msra.mxu0 0.0
        %788 = vmatprep.subr.mxu0 0.0
        %789 = vmatpush1.msra.mxu0 0.0
        %790 = vmatprep.subr.mxu0 0.0
        %791 = vmatpush1.msra.mxu0 0.0
        %792 = vmatprep.subr.mxu0 0.0
        %793 = vmatpush1.msra.mxu0 0.0
        %794 = vmatprep.subr.mxu0 0.0
        %795 = vmatpush1.msra.mxu0 0.0
        %796 = vmatprep.mubr.f32.mxu0 0.0
        %797 = vmatmul.mubr.f32.gmra.mrb[0].mxu0 %v730
        %v798 = vpop.f32.mrb[0].mxu0
        %v799 = vadd.f32 %v727, %v798
        %v800 = vpop.f32.mrb[0].mxu0
        %801 = vdwg.mxu0
        %v802 = vadd.f32 %v630, %v799
        %803 = vst.msk [vmem:[%s352] sm:$0xff] %vm467, %v802
        %v804 = vadd.f32 %v802, %v463
        %v806 = vsel %vm467, %v804, 0
        %808 = vmatprep.subr.mxu0 0.0
        %809 = vmatpush1.xpose.msra.mxu0 %v472
        %810 = vmatprep.subr.mxu0 0.0
        %811 = vmatpush1.xpose.msra.mxu0 %v475
        %812 = vmatprep.subr.mxu0 0.0
        %813 = vmatpush1.xpose.msra.mxu0 0.0
        %814 = vmatprep.subr.mxu0 0.0
        %815 = vmatpush1.xpose.msra.mxu0 0.0
        %816 = vmatprep.subr.mxu0 0.0
        %817 = vmatpush1.xpose.msra.mxu0 0.0
        %818 = vmatprep.subr.mxu0 0.0
        %819 = vmatpush1.xpose.msra.mxu0 0.0
        %820 = vmatprep.subr.mxu0 0.0
        %821 = vmatpush1.xpose.msra.mxu0 0.0
        %822 = vmatprep.subr.mxu0 0.0
        %823 = vmatpush1.xpose.msra.mxu0 0.0
        %824 = vmatprep.subr.mxu0 0.0
        %825 = vmatpush1.xpose.msra.mxu0 0.0
        %826 = vmatprep.subr.mxu0 0.0
        %827 = vmatpush1.xpose.msra.mxu0 0.0
        %828 = vmatprep.subr.mxu0 0.0
        %829 = vmatpush1.xpose.msra.mxu0 0.0
        %830 = vmatprep.subr.mxu0 0.0
        %831 = vmatpush1.xpose.msra.mxu0 0.0
        %832 = vmatprep.subr.mxu0 0.0
        %833 = vmatpush1.xpose.msra.mxu0 0.0
        %834 = vmatprep.subr.mxu0 0.0
        %835 = vmatpush1.xpose.msra.mxu0 0.0
        %836 = vmatprep.subr.mxu0 0.0
        %837 = vmatpush1.xpose.msra.mxu0 0.0
        %838 = vmatprep.subr.mxu0 0.0
        %839 = vmatpush1.xpose.msra.mxu0 0.0
        %840 = vmatprep.subr.mxu0 0.0
        %841 = vmatpush1.xpose.msra.mxu0 0.0
        %842 = vmatprep.subr.mxu0 0.0
        %843 = vmatpush1.xpose.msra.mxu0 0.0
        %844 = vmatprep.subr.mxu0 0.0
        %845 = vmatpush1.xpose.msra.mxu0 0.0
        %846 = vmatprep.subr.mxu0 0.0
        %847 = vmatpush1.xpose.msra.mxu0 0.0
        %848 = vmatprep.subr.mxu0 0.0
        %849 = vmatpush1.xpose.msra.mxu0 0.0
        %850 = vmatprep.subr.mxu0 0.0
        %851 = vmatpush1.xpose.msra.mxu0 0.0
        %852 = vmatprep.subr.mxu0 0.0
        %853 = vmatpush1.xpose.msra.mxu0 0.0
        %854 = vmatprep.subr.mxu0 0.0
        %855 = vmatpush1.xpose.msra.mxu0 0.0
        %856 = vmatprep.subr.mxu0 0.0
        %857 = vmatpush1.xpose.msra.mxu0 0.0
        %858 = vmatprep.subr.mxu0 0.0
        %859 = vmatpush1.xpose.msra.mxu0 0.0
        %860 = vmatprep.subr.mxu0 0.0
        %861 = vmatpush1.xpose.msra.mxu0 0.0
        %862 = vmatprep.subr.mxu0 0.0
        %863 = vmatpush1.xpose.msra.mxu0 0.0
        %864 = vmatprep.subr.mxu0 0.0
        %865 = vmatpush1.xpose.msra.mxu0 0.0
        %866 = vmatprep.subr.mxu0 0.0
        %867 = vmatpush1.xpose.msra.mxu0 0.0
        %868 = vmatprep.subr.mxu0 0.0
        %869 = vmatpush1.xpose.msra.mxu0 0.0
        %870 = vmatprep.subr.mxu0 0.0
        %871 = vmatpush1.xpose.msra.mxu0 0.0
        %872 = vmatprep.mubr.f32.mxu0 0.0
        %873 = vmatmul.mubr.f32.gmra.mrb[0].mxu0 %v806
        %v874 = vpop.f32.mrb[0].mxu0
        %v875 = vadd.f32 0.0, %v874
        %v876 = vpop.f32.mrb[0].mxu0
        %877 = vdwg.mxu0
        %v878 = vmul.f32 %v875, 0.17677669
        %v879 = vsel %vm548, %v878, -inf
        %880 = vmax.xlane.f32.xlu0 %v879
        %v881 = vpop.xlane.xlu0 %880
        %v882 = vsub.f32 %v878, %v881
        %v883 = vmul.f32 %v882, 1.442695
        %v884 = vpow.pop %v883
        %v885 = vsel %vm548, %v884, 0.0
        %886 = vadd.xlane.f32.xlu0 %v885
        %v887 = vpop.xlane.xlu0 %886
        %v888 = vrcp.pop %v887
        %v889 = vmul.f32 %v884, %v888
        %v891 = vsel %vm548, %v889, 0
        %893 = vmatprep.subr.mxu0 0.0
        %894 = vmatpush1.msra.mxu0 %v377
        %895 = vmatprep.subr.mxu0 0.0
        %896 = vmatpush1.msra.mxu0 %v378
        %897 = vmatprep.subr.mxu0 0.0
        %898 = vmatpush1.msra.mxu0 0.0
        %899 = vmatprep.subr.mxu0 0.0
        %900 = vmatpush1.msra.mxu0 0.0
        %901 = vmatprep.subr.mxu0 0.0
        %902 = vmatpush1.msra.mxu0 0.0
        %903 = vmatprep.subr.mxu0 0.0
        %904 = vmatpush1.msra.mxu0 0.0
        %905 = vmatprep.subr.mxu0 0.0
        %906 = vmatpush1.msra.mxu0 0.0
        %907 = vmatprep.subr.mxu0 0.0
        %908 = vmatpush1.msra.mxu0 0.0
        %909 = vmatprep.subr.mxu0 0.0
        %910 = vmatpush1.msra.mxu0 0.0
        %911 = vmatprep.subr.mxu0 0.0
        %912 = vmatpush1.msra.mxu0 0.0
        %913 = vmatprep.subr.mxu0 0.0
        %914 = vmatpush1.msra.mxu0 0.0
        %915 = vmatprep.subr.mxu0 0.0
        %916 = vmatpush1.msra.mxu0 0.0
        %917 = vmatprep.subr.mxu0 0.0
        %918 = vmatpush1.msra.mxu0 0.0
        %919 = vmatprep.subr.mxu0 0.0
        %920 = vmatpush1.msra.mxu0 0.0
        %921 = vmatprep.subr.mxu0 0.0
        %922 = vmatpush1.msra.mxu0 0.0
        %923 = vmatprep.subr.mxu0 0.0
        %924 = vmatpush1.msra.mxu0 0.0
        %925 = vmatprep.subr.mxu0 0.0
        %926 = vmatpush1.msra.mxu0 0.0
        %927 = vmatprep.subr.mxu0 0.0
        %928 = vmatpush1.msra.mxu0 0.0
        %929 = vmatprep.subr.mxu0 0.0
        %930 = vmatpush1.msra.mxu0 0.0
        %931 = vmatprep.subr.mxu0 0.0
        %932 = vmatpush1.msra.mxu0 0.0
        %933 = vmatprep.subr.mxu0 0.0
        %934 = vmatpush1.msra.mxu0 0.0
        %935 = vmatprep.subr.mxu0 0.0
        %936 = vmatpush1.msra.mxu0 0.0
        %937 = vmatprep.subr.mxu0 0.0
        %938 = vmatpush1.msra.mxu0 0.0
        %939 = vmatprep.subr.mxu0 0.0
        %940 = vmatpush1.msra.mxu0 0.0
        %941 = vmatprep.subr.mxu0 0.0
        %942 = vmatpush1.msra.mxu0 0.0
        %943 = vmatprep.subr.mxu0 0.0
        %944 = vmatpush1.msra.mxu0 0.0
        %945 = vmatprep.subr.mxu0 0.0
        %946 = vmatpush1.msra.mxu0 0.0
        %947 = vmatprep.subr.mxu0 0.0
        %948 = vmatpush1.msra.mxu0 0.0
        %949 = vmatprep.subr.mxu0 0.0
        %950 = vmatpush1.msra.mxu0 0.0
        %951 = vmatprep.subr.mxu0 0.0
        %952 = vmatpush1.msra.mxu0 0.0
        %953 = vmatprep.subr.mxu0 0.0
        %954 = vmatpush1.msra.mxu0 0.0
        %955 = vmatprep.subr.mxu0 0.0
        %956 = vmatpush1.msra.mxu0 0.0
        %957 = vmatprep.mubr.f32.mxu0 0.0
        %958 = vmatmul.mubr.f32.gmra.mrb[0].mxu0 %v891
        %v959 = vpop.f32.mrb[0].mxu0
        %v960 = vadd.f32 0.0, %v959
        %v961 = vpop.f32.mrb[0].mxu0
        %962 = vdwg.mxu0
        %v963 = vadd.f32 %v802, %v960
        %s964 = scalar_lea.vmem %s4, 32
        %v965 = vld [vmem:[%s964] sm:$0xff]
        %v966 = vld [vmem:[%s964 + $0x8] sm:$0xff]
        %v967 = vld [vmem:[%s964 + $0x10] sm:$0xff]
        %v968 = vld [vmem:[%s964 + $0x18] sm:$0xff]
        %s969 = scalar_lea.vmem %s5, 1
        %v970 = vld [vmem:[%s969] sm:$0x1]
        %v972 = vlaneseq
        %v973 = vshrl.u32 %v972, 7
        %v974 = vsub.s32 0, %v973
        %v975 = vrot.slane %v970, %v974
        %v978 = vsel %vm467, %v963, 0
        %980 = vmatprep.subr.mxu0 0.0
        %981 = vmatpush1.msra.mxu0 %v965
        %982 = vmatprep.subr.mxu0 0.0
        %983 = vmatpush1.msra.mxu0 %v966
        %984 = vmatprep.subr.mxu0 0.0
        %985 = vmatpush1.msra.mxu0 %v967
        %986 = vmatprep.subr.mxu0 0.0
        %987 = vmatpush1.msra.mxu0 %v968
        %988 = vmatprep.subr.mxu0 0.0
        %989 = vmatpush1.msra.mxu0 0.0
        %990 = vmatprep.subr.mxu0 0.0
        %991 = vmatpush1.msra.mxu0 0.0
        %992 = vmatprep.subr.mxu0 0.0
        %993 = vmatpush1.msra.mxu0 0.0
        %994 = vmatprep.subr.mxu0 0.0
        %995 = vmatpush1.msra.mxu0 0.0
        %996 = vmatprep.subr.mxu0 0.0
        %997 = vmatpush1.msra.mxu0 0.0
        %998 = vmatprep.subr.mxu0 0.0
        %999 = vmatpush1.msra.mxu0 0.0
        %1000 = vmatprep.subr.mxu0 0.0
        %1001 = vmatpush1.msra.mxu0 0.0
        %1002 = vmatprep.subr.mxu0 0.0
        %1003 = vmatpush1.msra.mxu0 0.0
        %1004 = vmatprep.subr.mxu0 0.0
        %1005 = vmatpush1.msra.mxu0 0.0
        %1006 = vmatprep.subr.mxu0 0.0
        %1007 = vmatpush1.msra.mxu0 0.0
        %1008 = vmatprep.subr.mxu0 0.0
        %1009 = vmatpush1.msra.mxu0 0.0
        %1010 = vmatprep.subr.mxu0 0.0
        %1011 = vmatpush1.msra.mxu0 0.0
        %1012 = vmatprep.subr.mxu0 0.0
        %1013 = vmatpush1.msra.mxu0 0.0
        %1014 = vmatprep.subr.mxu0 0.0
        %1015 = vmatpush1.msra.mxu0 0.0
        %1016 = vmatprep.subr.mxu0 0.0
        %1017 = vmatpush1.msra.mxu0 0.0
        %1018 = vmatprep.subr.mxu0 0.0
        %1019 = vmatpush1.msra.mxu0 0.0
        %1020 = vmatprep.subr.mxu0 0.0
        %1021 = vmatpush1.msra.mxu0 0.0
        %1022 = vmatprep.subr.mxu0 0.0
        %1023 = vmatpush1.msra.mxu0 0.0
        %1024 = vmatprep.subr.mxu0 0.0
        %1025 = vmatpush1.msra.mxu0 0.0
        %1026 = vmatprep.subr.mxu0 0.0
        %1027 = vmatpush1.msra.mxu0 0.0
        %1028 = vmatprep.subr.mxu0 0.0
        %1029 = vmatpush1.msra.mxu0 0.0
        %1030 = vmatprep.subr.mxu0 0.0
        %1031 = vmatpush1.msra.mxu0 0.0
        %1032 = vmatprep.subr.mxu0 0.0
        %1033 = vmatpush1.msra.mxu0 0.0
        %1034 = vmatprep.subr.mxu0 0.0
        %1035 = vmatpush1.msra.mxu0 0.0
        %1036 = vmatprep.subr.mxu0 0.0
        %1037 = vmatpush1.msra.mxu0 0.0
        %1038 = vmatprep.subr.mxu0 0.0
        %1039 = vmatpush1.msra.mxu0 0.0
        %1040 = vmatprep.subr.mxu0 0.0
        %1041 = vmatpush1.msra.mxu0 0.0
        %1042 = vmatprep.subr.mxu0 0.0
        %1043 = vmatpush1.msra.mxu0 0.0
        %1044 = vmatprep.mubr.f32.mxu0 0.0
        %1045 = vmatmul.mubr.f32.gmra.mrb[0].mxu0 %v978
        %v1046 = vpop.f32.mrb[0].mxu0
        %v1047 = vadd.f32 %v975, %v1046
        %v1048 = vpop.f32.mrb[0].mxu0
        %1049 = vdwg.mxu0
        %v1050 = vmax.f32 %v1047, 0.0
        %s1051 = scalar_lea.vmem %s6, 32
        %v1052 = vld [vmem:[%s1051] sm:$0xff]
        %v1053 = vld [vmem:[%s1051 + $0x8] sm:$0xff]
        %v1054 = vld [vmem:[%s1051 + $0x10] sm:$0xff]
        %v1055 = vld [vmem:[%s1051 + $0x18] sm:$0xff]
        %s1056 = scalar_lea.vmem %s7, 1
        %v1057 = vld [vmem:[%s1056] sm:$0x1]
        %v1059 = vlaneseq
        %v1060 = vshrl.u32 %v1059, 7
        %v1061 = vsub.s32 0, %v1060
        %v1062 = vrot.slane %v1057, %v1061
        %v1065 = vsel %vm467, %v1050, 0
        %1067 = vmatprep.subr.mxu0 0.0
        %1068 = vmatpush1.msra.mxu0 %v1052
        %1069 = vmatprep.subr.mxu0 0.0
        %1070 = vmatpush1.msra.mxu0 %v1053
        %1071 = vmatprep.subr.mxu0 0.0
        %1072 = vmatpush1.msra.mxu0 %v1054
        %1073 = vmatprep.subr.mxu0 0.0
        %1074 = vmatpush1.msra.mxu0 %v1055
        %1075 = vmatprep.subr.mxu0 0.0
        %1076 = vmatpush1.msra.mxu0 0.0
        %1077 = vmatprep.subr.mxu0 0.0
        %1078 = vmatpush1.msra.mxu0 0.0
        %1079 = vmatprep.subr.mxu0 0.0
        %1080 = vmatpush1.msra.mxu0 0.0
        %1081 = vmatprep.subr.mxu0 0.0
        %1082 = vmatpush1.msra.mxu0 0.0
        %1083 = vmatprep.subr.mxu0 0.0
        %1084 = vmatpush1.msra.mxu0 0.0
        %1085 = vmatprep.subr.mxu0 0.0
        %1086 = vmatpush1.msra.mxu0 0.0
        %1087 = vmatprep.subr.mxu0 0.0
        %1088 = vmatpush1.msra.mxu0 0.0
        %1089 = vmatprep.subr.mxu0 0.0
        %1090 = vmatpush1.msra.mxu0 0.0
        %1091 = vmatprep.subr.mxu0 0.0
        %1092 = vmatpush1.msra.mxu0 0.0
        %1093 = vmatprep.subr.mxu0 0.0
        %1094 = vmatpush1.msra.mxu0 0.0
        %1095 = vmatprep.subr.mxu0 0.0
        %1096 = vmatpush1.msra.mxu0 0.0
        %1097 = vmatprep.subr.mxu0 0.0
        %1098 = vmatpush1.msra.mxu0 0.0
        %1099 = vmatprep.subr.mxu0 0.0
        %1100 = vmatpush1.msra.mxu0 0.0
        %1101 = vmatprep.subr.mxu0 0.0
        %1102 = vmatpush1.msra.mxu0 0.0
        %1103 = vmatprep.subr.mxu0 0.0
        %1104 = vmatpush1.msra.mxu0 0.0
        %1105 = vmatprep.subr.mxu0 0.0
        %1106 = vmatpush1.msra.mxu0 0.0
        %1107 = vmatprep.subr.mxu0 0.0
        %1108 = vmatpush1.msra.mxu0 0.0
        %1109 = vmatprep.subr.mxu0 0.0
        %1110 = vmatpush1.msra.mxu0 0.0
        %1111 = vmatprep.subr.mxu0 0.0
        %1112 = vmatpush1.msra.mxu0 0.0
        %1113 = vmatprep.subr.mxu0 0.0
        %1114 = vmatpush1.msra.mxu0 0.0
        %1115 = vmatprep.subr.mxu0 0.0
        %1116 = vmatpush1.msra.mxu0 0.0
        %1117 = vmatprep.subr.mxu0 0.0
        %1118 = vmatpush1.msra.mxu0 0.0
        %1119 = vmatprep.subr.mxu0 0.0
        %1120 = vmatpush1.msra.mxu0 0.0
        %1121 = vmatprep.subr.mxu0 0.0
        %1122 = vmatpush1.msra.mxu0 0.0
        %1123 = vmatprep.subr.mxu0 0.0
        %1124 = vmatpush1.msra.mxu0 0.0
        %1125 = vmatprep.subr.mxu0 0.0
        %1126 = vmatpush1.msra.mxu0 0.0
        %1127 = vmatprep.subr.mxu0 0.0
        %1128 = vmatpush1.msra.mxu0 0.0
        %1129 = vmatprep.subr.mxu0 0.0
        %1130 = vmatpush1.msra.mxu0 0.0
        %1131 = vmatprep.mubr.f32.mxu0 0.0
        %1132 = vmatmul.mubr.f32.gmra.mrb[0].mxu0 %v1065
        %v1133 = vpop.f32.mrb[0].mxu0
        %v1134 = vadd.f32 %v1062, %v1133
        %v1135 = vpop.f32.mrb[0].mxu0
        %1136 = vdwg.mxu0
        %v1137 = vadd.f32 %v963, %v1134
        %s1138 = scalar_lea.vmem %s352, 8 [#allocation2]
        %1139 = vst.msk [vmem:[%s1138] sm:$0xff] %vm467, %v1137
        %1140 = vst.msk [vmem:[%s359] sm:$0xff] %vm548, %v889
        %1141 = vmatprep.subr.mxu0 0.0
        %1142 = vmatpush1.xpose.msra.mxu0 %v472
        %1143 = vmatprep.subr.mxu0 0.0
        %1144 = vmatpush1.xpose.msra.mxu0 %v475
        %1145 = vmatprep.subr.mxu0 0.0
        %1146 = vmatpush1.xpose.msra.mxu0 0.0
        %1147 = vmatprep.subr.mxu0 0.0
        %1148 = vmatpush1.xpose.msra.mxu0 0.0
        %1149 = vmatprep.subr.mxu0 0.0
        %1150 = vmatpush1.xpose.msra.mxu0 0.0
        %1151 = vmatprep.subr.mxu0 0.0
        %1152 = vmatpush1.xpose.msra.mxu0 0.0
        %1153 = vmatprep.subr.mxu0 0.0
        %1154 = vmatpush1.xpose.msra.mxu0 0.0
        %1155 = vmatprep.subr.mxu0 0.0
        %1156 = vmatpush1.xpose.msra.mxu0 0.0
        %1157 = vmatprep.subr.mxu0 0.0
        %1158 = vmatpush1.xpose.msra.mxu0 0.0
        %1159 = vmatprep.subr.mxu0 0.0
        %1160 = vmatpush1.xpose.msra.mxu0 0.0
        %1161 = vmatprep.subr.mxu0 0.0
        %1162 = vmatpush1.xpose.msra.mxu0 0.0
        %1163 = vmatprep.subr.mxu0 0.0
        %1164 = vmatpush1.xpose.msra.mxu0 0.0
        %1165 = vmatprep.subr.mxu0 0.0
        %1166 = vmatpush1.xpose.msra.mxu0 0.0
        %1167 = vmatprep.subr.mxu0 0.0
        %1168 = vmatpush1.xpose.msra.mxu0 0.0
        %1169 = vmatprep.subr.mxu0 0.0
        %1170 = vmatpush1.xpose.msra.mxu0 0.0
        %1171 = vmatprep.subr.mxu0 0.0
        %1172 = vmatpush1.xpose.msra.mxu0 0.0
        %1173 = vmatprep.subr.mxu0 0.0
        %1174 = vmatpush1.xpose.msra.mxu0 0.0
        %1175 = vmatprep.subr.mxu0 0.0
        %1176 = vmatpush1.xpose.msra.mxu0 0.0
        %1177 = vmatprep.subr.mxu0 0.0
        %1178 = vmatpush1.xpose.msra.mxu0 0.0
        %1179 = vmatprep.subr.mxu0 0.0
        %1180 = vmatpush1.xpose.msra.mxu0 0.0
        %1181 = vmatprep.subr.mxu0 0.0
        %1182 = vmatpush1.xpose.msra.mxu0 0.0
        %1183 = vmatprep.subr.mxu0 0.0
        %1184 = vmatpush1.xpose.msra.mxu0 0.0
        %1185 = vmatprep.subr.mxu0 0.0
        %1186 = vmatpush1.xpose.msra.mxu0 0.0
        %1187 = vmatprep.subr.mxu0 0.0
        %1188 = vmatpush1.xpose.msra.mxu0 0.0
        %1189 = vmatprep.subr.mxu0 0.0
        %1190 = vmatpush1.xpose.msra.mxu0 0.0
        %1191 = vmatprep.subr.mxu0 0.0
        %1192 = vmatpush1.xpose.msra.mxu0 0.0
        %1193 = vmatprep.subr.mxu0 0.0
        %1194 = vmatpush1.xpose.msra.mxu0 0.0
        %1195 = vmatprep.subr.mxu0 0.0
        %1196 = vmatpush1.xpose.msra.mxu0 0.0
        %1197 = vmatprep.subr.mxu0 0.0
        %1198 = vmatpush1.xpose.msra.mxu0 0.0
        %1199 = vmatprep.subr.mxu0 0.0
        %1200 = vmatpush1.xpose.msra.mxu0 0.0
        %1201 = vmatprep.subr.mxu0 0.0
        %1202 = vmatpush1.xpose.msra.mxu0 0.0
        %1203 = vmatprep.subr.mxu0 0.0
        %1204 = vmatpush1.xpose.msra.mxu0 0.0
        %1205 = vmatprep.mubr.f32.mxu0 0.0
        %1206 = vmatmul.mubr.f32.gmra.mrb[0].mxu0 %v472
        %v1207 = vpop.f32.mrb[0].mxu0
        %v1208 = vadd.f32 0.0, %v1207
        %v1209 = vpop.f32.mrb[0].mxu0
        %1210 = vmatprep.mubr.f32.mxu0 0.0
        %1211 = vmatmul.mubr.f32.gmra.mrb[0].mxu0 %v475
        %v1212 = vpop.f32.mrb[0].mxu0
        %v1213 = vadd.f32 0.0, %v1212
        %v1214 = vpop.f32.mrb[0].mxu0
        %1215 = vdwg.mxu0
        %v1216 = vmul.f32 %v1208, 0.17677669
        %v1217 = vmul.f32 %v1213, 0.17677669
        %v1218 = vsel %vm548, %v1216, -inf
        %1219 = vmax.xlane.f32.xlu0 %v1218
        %v1220 = vpop.xlane.xlu0 %1219
        %v1221 = vsel %vm548, %v1217, -inf
        %1222 = vmax.xlane.f32.xlu0 %v1221
        %v1223 = vpop.xlane.xlu0 %1222
        %v1224 = vsub.f32 %v1216, %v1220
        %v1225 = vsub.f32 %v1217, %v1223
        %v1226 = vmul.f32 %v1224, 1.442695
        %v1227 = vpow.pop %v1226
        %v1228 = vmul.f32 %v1225, 1.442695
        %v1229 = vpow.pop %v1228
        %v1230 = vsel %vm548, %v1227, 0.0
        %1231 = vadd.xlane.f32.xlu0 %v1230
        %v1232 = vpop.xlane.xlu0 %1231
        %v1233 = vsel %vm548, %v1229, 0.0
        %1234 = vadd.xlane.f32.xlu0 %v1233
        %v1235 = vpop.xlane.xlu0 %1234
        %v1236 = vrcp.pop %v1232
        %v1237 = vrcp.pop %v1235
        %v1238 = vmul.f32 %v1227, %v1236
        %v1239 = vmul.f32 %v1229, %v1237
        %1240 = vst.msk [vmem:[%s376] sm:$0xff] %vm548, %v1238
        %1241 = vst.msk [vmem:[%s376 + $0x8] sm:$0xff] %vm548, %v1239
        %s1242 = sand.u32 %s206, 1
        %s1243 = sand.u32 %s206, 1
        %s1244 = smul.addr %s1243, 16
        %s1245 = scalar_lea.vmem [#allocation2], %s1244
        %s1246 = sand.u32 %s232, 1
        %s1247 = scalar_lea.sflag [#allocation4], %s1246
        %s1248 = sand.u32 %s232, 1
        %s1249 = smul.addr %s1248, 8
        %s1250 = scalar_lea.vmem [#allocation3], %s1249
        %p1251 = scmp.lt.s32.totalorder %s25, 1
        %s1252 = scalar_select %p1251, %s25, 1
        %s1253 = smul.addr %s1252, 2
        %s1254 = smul.addr %s1253, 8
        %s1255 = scalar_lea.vmem %s10, %s1254
        // Predicated region
        $region53: #{tadtr_forward.4} parent=51 // pred_check
          %p1256 = pneg %p216
        $region54: #{tadtr_forward.4} parent=51 // pred_check_branch
          %1258 = sbr.rel (%p1256) target = $region56
        $region55: #{tadtr_forward.4} parent=51 // pred_region
          %s1259 = smul.addr %s25, 8
          %s1260 = scalar_lea.vmem %s8, %s1259
          // Predicated region
          $region57: #{tadtr_forward.4} parent=55 // pred_check
            _
          $region58: #{tadtr_forward.4} parent=55 // pred_check_branch
            %1262 = sbr.rel (0) target = $region60
          $region59: #{tadtr_forward.4} parent=55 // pred_region
            // Predicated region
            $region61: #{tadtr_forward.4} parent=59 // pred_check
              _
            $region62: #{tadtr_forward.4} parent=59 // pred_check_branch
              %1264 = sbr.rel (0) target = $region64
            $region63: #{tadtr_forward.4} parent=59 // pred_region
              // Predicated region
              $region76: #{tadtr_forward.4} parent=63 // pred_check
                _
              $region77: #{tadtr_forward.4} parent=63 // pred_check_branch
                %1281 = sbr.rel (0) target = $region79
              $region78: #{tadtr_forward.4} parent=63 // pred_region
                loop: start=0, step=1, limit=1
                $region80: #{tadtr_forward.4} parent=78 // loop_pre_header
                  _
                $region81: #{tadtr_forward.4} parent=78 // loop_header
                  %s1283 = sphi 0, %s1287
                  %p1284 = scmp.ge.s32.totalorder %s1283, 1
                  %s1288 = sphi %s1245, %s1245
                  %s1289 = sphi %s1260, %s1260
                $region82: #{tadtr_forward.4} parent=78 // loop_header_branch
                  %1286 = sbr.rel (%p1284) target = $region86
                $region83: #{tadtr_forward.4} parent=78 // loop_body
                  %v1290 = vld [vmem:[%s1288] sm:$0xff]
                  %1291 = vst [vmem:[%s1289] sm:$0xff] %v1290
                  %v1292 = vld [vmem:[%s1288 + $0x8] sm:$0xff]
                  %1293 = vst [vmem:[%s1289 + $0x10] sm:$0xff] %v1292
                $region84: #{tadtr_forward.4} parent=78 // loop_footer
                  %s1287 = sadd.s32 1, %s1283
                $region85: #{tadtr_forward.4} parent=78 // loop_footer_branch
                  %1282 = sbr.rel target = $region81
                $region86: #{tadtr_forward.4} parent=78 // loop_exit
                  _
              $region79: #{tadtr_forward.4} parent=63 // pred_fallthru
                _
              // Predicated region
              $region87: #{tadtr_forward.4} parent=63 // pred_check
                _
              $region88: #{tadtr_forward.4} parent=63 // pred_check_branch
                %1295 = sbr.rel target = $region90
              $region89: #{tadtr_forward.4} parent=63 // pred_region
                _
              $region90: #{tadtr_forward.4} parent=63 // pred_fallthru
                _
            $region64: #{tadtr_forward.4} parent=59 // pred_fallthru
              _
            // Predicated region
            $region65: #{tadtr_forward.4} parent=59 // pred_check
              _
            $region66: #{tadtr_forward.4} parent=59 // pred_check_branch
              %1266 = sbr.rel target = $region68
            $region67: #{tadtr_forward.4} parent=59 // pred_region
              loop: start=0, step=1, limit=1
              $region69: #{tadtr_forward.4} parent=67 // loop_pre_header
                _
              $region70: #{tadtr_forward.4} parent=67 // loop_header
                %s1269 = sphi 0, %s1273
                %p1270 = scmp.ge.s32.totalorder %s1269, 1
                %s1274 = sphi %s1245, %s1245
                %s1275 = sphi %s1260, %s1260
              $region71: #{tadtr_forward.4} parent=67 // loop_header_branch
                %1272 = sbr.rel (%p1270) target = $region75
              $region72: #{tadtr_forward.4} parent=67 // loop_body
                %v1276 = vld [vmem:[%s1274] sm:$0xff]
                %1277 = vst [vmem:[%s1275] sm:$0xff] %v1276
                %v1278 = vld [vmem:[%s1274 + $0x8] sm:$0xff]
                %1279 = vst [vmem:[%s1275 + $0x10] sm:$0xff] %v1278
              $region73: #{tadtr_forward.4} parent=67 // loop_footer
                %s1273 = sadd.s32 1, %s1269
              $region74: #{tadtr_forward.4} parent=67 // loop_footer_branch
                %1268 = sbr.rel target = $region70
              $region75: #{tadtr_forward.4} parent=67 // loop_exit
                _
            $region68: #{tadtr_forward.4} parent=59 // pred_fallthru
              _
          $region60: #{tadtr_forward.4} parent=55 // pred_fallthru
            _
          %1296 = vnop
        $region56: #{tadtr_forward.4} parent=51 // pred_fallthru
          _
        // Predicated region
        $region91: #{tadtr_forward.4} parent=51 // pred_check
          %p1297 = pneg %p242
        $region92: #{tadtr_forward.4} parent=51 // pred_check_branch
          %1299 = sbr.rel (%p1297) target = $region94
        $region93: #{tadtr_forward.4} parent=51 // pred_region
          %s1301 = ssub.s32 128, 128
          %1302 = vsyncadd %s1247, %s1301
          %s1303 = smul.addr %s25, 128
          %s1304 = scalar_lea.hbm %s9, %s1303
          %s1306 = sshll.u32 %s1250, 4
          %s1307 = int_to_ptr.vmem [resolvable:$true] %s1306
          %1309 = dma.vmem_to_hbm [thread:$0]  %s1307, 128, %s1304, %s1247
        $region94: #{tadtr_forward.4} parent=51 // pred_fallthru
          _
        // Predicated region
        $region95: #{tadtr_forward.4} parent=51 // pred_check
          %p1310 = pneg %p268
        $region96: #{tadtr_forward.4} parent=51 // pred_check_branch
          %1312 = sbr.rel (%p1310) target = $region98
        $region97: #{tadtr_forward.4} parent=51 // pred_region
          _
        $region98: #{tadtr_forward.4} parent=51 // pred_fallthru
          _
      $region52: #{tadtr_forward.4} parent=5 // pred_fallthru
        _
      %p1313 = scmp.le.s32.totalorder 2, %s20
      // Predicated region
      $region99: #{tadtr_forward.4} parent=5 // pred_check
        %p1314 = pneg %p1313
      $region100: #{tadtr_forward.4} parent=5 // pred_check_branch
        %1316 = sbr.rel (%p1314) target = $region102
      $region101: #{tadtr_forward.4} parent=5 // pred_region
        %s1317 = ssub.s32 %s20, 2
        // Predicated region
        $region103: #{tadtr_forward.4} parent=101 // pred_check
          %p1318 = pneg %p222
        $region104: #{tadtr_forward.4} parent=101 // pred_check_branch
          %1320 = sbr.rel (%p1318) target = $region106
        $region105: #{tadtr_forward.4} parent=101 // pred_region
          %s1321 = sand.u32 %s207, 1
          %s1322 = sand.u32 %s207, 1
          %s1323 = smul.addr %s1322, 16
          %s1324 = scalar_lea.vmem [#allocation2], %s1323
        $region106: #{tadtr_forward.4} parent=101 // pred_fallthru
          _
        // Predicated region
        $region107: #{tadtr_forward.4} parent=101 // pred_check
          %p1325 = pneg %p248
        $region108: #{tadtr_forward.4} parent=101 // pred_check_branch
          %1327 = sbr.rel (%p1325) target = $region110
        $region109: #{tadtr_forward.4} parent=101 // pred_region
          %s1328 = sand.u32 %s233, 1
          %s1329 = scalar_lea.sflag [#allocation4], %s1328
          %s1330 = sand.u32 %s233, 1
          %s1331 = smul.addr %s1330, 8
          %s1332 = scalar_lea.vmem [#allocation3], %s1331
          %1333 = dma.done %s1329, 128
        $region110: #{tadtr_forward.4} parent=101 // pred_fallthru
          _
        // Predicated region
        $region111: #{tadtr_forward.4} parent=101 // pred_check
          %p1334 = pneg %p274
        $region112: #{tadtr_forward.4} parent=101 // pred_check_branch
          %1336 = sbr.rel (%p1334) target = $region114
        $region113: #{tadtr_forward.4} parent=101 // pred_region
          %p1337 = scmp.lt.s32.totalorder %s26, 1
          %s1338 = scalar_select %p1337, %s26, 1
          %s1339 = smul.addr %s1338, 2
          %s1340 = smul.addr %s1339, 8
          %s1341 = scalar_lea.vmem %s10, %s1340
        $region114: #{tadtr_forward.4} parent=101 // pred_fallthru
          _
      $region102: #{tadtr_forward.4} parent=5 // pred_fallthru
        _
    $region6: #{tadtr_forward.4} parent=1 // loop_footer
      %s24 = sadd.s32 1, %s20
    $region7: #{tadtr_forward.4} parent=1 // loop_footer_branch
      %19 = sbr.rel target = $region3
    $region8: #{tadtr_forward.4} parent=1 // loop_exit
      _
    %1342 = vsyncpa [#allocation4], 1
    %s1343 = scalar_lea.sflag [#allocation4], 1
    %1344 = vsyncpa %s1343, 1

// kernel: tadtr_forward.3
$region0: #{tadtr_forward.3}
  #allocation0 [shape = 'u32[]', space=smem, size = 0x4, offset = 0x4, fixed_abs, tag = 'smem constant byte address 0x4 - core index']
  #allocation1 [shape = 'u32[144,128]{1,0:T(1,128)}', space=vmem, size = 0x12000, scoped, tag = 'internal scratch']
  %s0 = inlined_call_operand.vmem [shape: f32[2,2048,16], index: 0, kind: input, shape index: {}]
  %s1 = inlined_call_operand.vmem [shape: f32[32,2048], index: 1, kind: input, shape index: {}]
  %s2 = inlined_call_operand.vmem [shape: f32[32,1], index: 2, kind: input, shape index: {}]
  %s3 = inlined_call_operand.vmem [shape: f32[32,1], index: 3, kind: input, shape index: {}]
  %s4 = inlined_call_operand.vmem [shape: f32[32,1], index: 4, kind: input, shape index: {}]
  %s5 = inlined_call_operand.vmem [shape: f32[32,16], index: 5, kind: input, shape index: {}]
  %s6 = inlined_call_operand.vmem [shape: f32[2,1,16], index: 6, kind: input, shape index: {}]
  %s7 = inlined_call_operand.vmem [shape: f32[32,32], index: 7, kind: input, shape index: {}]
  %s8 = inlined_call_operand.vmem [shape: f32[2,16,32], index: 8, kind: output, shape index: {}]
  %s9 = sld [smem:[#allocation0]]
  $region65: #{tadtr_forward.3} parent=0
    _
  %s11 = ssub.s32 1, %s9
  %s12 = scalar_select 0, %s11, %s9
  loop: start=0, step=1, limit=4
  $region2: #{tadtr_forward.3} parent=0 // loop_pre_header
    _
  $region3: #{tadtr_forward.3} parent=0 // loop_header
    %s14 = sphi 0, %s18
    %p15 = scmp.ge.s32.totalorder %s14, 4
    %s24 = sphi 0, %s26
    %s27 = sphi 0, %s24
    %s28 = sphi 0, %s27
    %s44 = sphi 0, %s28
    %s48 = sphi 0, %s48
    %s50 = sphi 0, %s48
    %s51 = sphi 0, %s50
    %s65 = sphi 0, %s51
    %s69 = sphi 0, %s69
    %s71 = sphi 0, %s69
    %s72 = sphi 0, %s71
    %s86 = sphi 0, %s72
    %s90 = sphi 0, %s90
    %s92 = sphi 0, %s90
    %s93 = sphi 0, %s92
    %s107 = sphi 0, %s93
    %s111 = sphi 0, %s111
    %s113 = sphi 0, %s111
    %s114 = sphi 0, %s113
    %s128 = sphi 0, %s114
    %s132 = sphi 0, %s132
    %s134 = sphi 0, %s132
    %s135 = sphi 0, %s134
    %s149 = sphi 0, %s135
    %s155 = sphi 0, %s157
    %s158 = sphi 0, %s155
    %s159 = sphi 0, %s158
    %s175 = sphi 0, %s159
    %s179 = sphi 0, %s179
    %s181 = sphi 0, %s179
    %s182 = sphi 0, %s181
    %s196 = sphi 0, %s182
    %s202 = sphi 0, %s204
    %s205 = sphi 0, %s202
    %s206 = sphi 0, %s205
    %s222 = sphi 0, %s206
  $region4: #{tadtr_forward.3} parent=0 // loop_header_branch
    %17 = sbr.rel (%p15) target = $region8
  $region5: #{tadtr_forward.3} parent=0 // loop_body
    %s19 = ssub.s32 %s14, 1
    %s20 = ssub.s32 %s14, 2
    %s21 = sadd.s32 %s14, 1
    %s22 = ssub.s32 %s14, %s21
    %p23 = scmp.eq.s32.totalorder %s22, 0
    %s25 = sadd.s32 %s24, 1
    %s26 = scalar_select %p23, %s24, %s25
    %p29 = pneg %p23
    %p30 = scmp.eq.s32.totalorder %s14, 1
    %p31 = por %p29, %p30
    %p32 = scmp.ne.s32.totalorder %s24, %s27
    %p33 = scmp.eq.s32.totalorder %s14, 0
    %p34 = por %p32, %p33
    %p35 = scmp.ne.s32.totalorder %s24, %s27
    %p36 = scmp.eq.s32.totalorder %s19, 1
    %p37 = por %p35, %p36
    %p38 = scmp.ne.s32.totalorder %s27, %s28
    %p39 = scmp.eq.s32.totalorder %s19, 0
    %p40 = por %p38, %p39
    %p41 = scmp.ne.s32.totalorder %s27, %s28
    %p42 = scmp.eq.s32.totalorder %s20, 1
    %p43 = por %p41, %p42
    %p45 = scmp.ne.s32.totalorder %s28, %s44
    %p46 = scmp.eq.s32.totalorder %s20, 0
    %p47 = por %p45, %p46
    %s49 = sadd.s32 %s48, 1
    %p52 = scmp.eq.s32.totalorder %s14, 1
    %p53 = scmp.ne.s32.totalorder %s48, %s50
    %p54 = scmp.eq.s32.totalorder %s14, 0
    %p55 = por %p53, %p54
    %p56 = scmp.ne.s32.totalorder %s48, %s50
    %p57 = scmp.eq.s32.totalorder %s19, 1
    %p58 = por %p56, %p57
    %p59 = scmp.ne.s32.totalorder %s50, %s51
    %p60 = scmp.eq.s32.totalorder %s19, 0
    %p61 = por %p59, %p60
    %p62 = scmp.ne.s32.totalorder %s50, %s51
    %p63 = scmp.eq.s32.totalorder %s20, 1
    %p64 = por %p62, %p63
    %p66 = scmp.ne.s32.totalorder %s51, %s65
    %p67 = scmp.eq.s32.totalorder %s20, 0
    %p68 = por %p66, %p67
    %s70 = sadd.s32 %s69, 1
    %p73 = scmp.eq.s32.totalorder %s14, 1
    %p74 = scmp.ne.s32.totalorder %s69, %s71
    %p75 = scmp.eq.s32.totalorder %s14, 0
    %p76 = por %p74, %p75
    %p77 = scmp.ne.s32.totalorder %s69, %s71
    %p78 = scmp.eq.s32.totalorder %s19, 1
    %p79 = por %p77, %p78
    %p80 = scmp.ne.s32.totalorder %s71, %s72
    %p81 = scmp.eq.s32.totalorder %s19, 0
    %p82 = por %p80, %p81
    %p83 = scmp.ne.s32.totalorder %s71, %s72
    %p84 = scmp.eq.s32.totalorder %s20, 1
    %p85 = por %p83, %p84
    %p87 = scmp.ne.s32.totalorder %s72, %s86
    %p88 = scmp.eq.s32.totalorder %s20, 0
    %p89 = por %p87, %p88
    %s91 = sadd.s32 %s90, 1
    %p94 = scmp.eq.s32.totalorder %s14, 1
    %p95 = scmp.ne.s32.totalorder %s90, %s92
    %p96 = scmp.eq.s32.totalorder %s14, 0
    %p97 = por %p95, %p96
    %p98 = scmp.ne.s32.totalorder %s90, %s92
    %p99 = scmp.eq.s32.totalorder %s19, 1
    %p100 = por %p98, %p99
    %p101 = scmp.ne.s32.totalorder %s92, %s93
    %p102 = scmp.eq.s32.totalorder %s19, 0
    %p103 = por %p101, %p102
    %p104 = scmp.ne.s32.totalorder %s92, %s93
    %p105 = scmp.eq.s32.totalorder %s20, 1
    %p106 = por %p104, %p105
    %p108 = scmp.ne.s32.totalorder %s93, %s107
    %p109 = scmp.eq.s32.totalorder %s20, 0
    %p110 = por %p108, %p109
    %s112 = sadd.s32 %s111, 1
    %p115 = scmp.eq.s32.totalorder %s14, 1
    %p116 = scmp.ne.s32.totalorder %s111, %s113
    %p117 = scmp.eq.s32.totalorder %s14, 0
    %p118 = por %p116, %p117
    %p119 = scmp.ne.s32.totalorder %s111, %s113
    %p120 = scmp.eq.s32.totalorder %s19, 1
    %p121 = por %p119, %p120
    %p122 = scmp.ne.s32.totalorder %s113, %s114
    %p123 = scmp.eq.s32.totalorder %s19, 0
    %p124 = por %p122, %p123
    %p125 = scmp.ne.s32.totalorder %s113, %s114
    %p126 = scmp.eq.s32.totalorder %s20, 1
    %p127 = por %p125, %p126
    %p129 = scmp.ne.s32.totalorder %s114, %s128
    %p130 = scmp.eq.s32.totalorder %s20, 0
    %p131 = por %p129, %p130
    %s133 = sadd.s32 %s132, 1
    %p136 = scmp.eq.s32.totalorder %s14, 1
    %p137 = scmp.ne.s32.totalorder %s132, %s134
    %p138 = scmp.eq.s32.totalorder %s14, 0
    %p139 = por %p137, %p138
    %p140 = scmp.ne.s32.totalorder %s132, %s134
    %p141 = scmp.eq.s32.totalorder %s19, 1
    %p142 = por %p140, %p141
    %p143 = scmp.ne.s32.totalorder %s134, %s135
    %p144 = scmp.eq.s32.totalorder %s19, 0
    %p145 = por %p143, %p144
    %p146 = scmp.ne.s32.totalorder %s134, %s135
    %p147 = scmp.eq.s32.totalorder %s20, 1
    %p148 = por %p146, %p147
    %p150 = scmp.ne.s32.totalorder %s135, %s149
    %p151 = scmp.eq.s32.totalorder %s20, 0
    %p152 = por %p150, %p151
    %s153 = ssub.s32 %s14, %s21
    %p154 = scmp.eq.s32.totalorder %s153, 0
    %s156 = sadd.s32 %s155, 1
    %s157 = scalar_select %p154, %s155, %s156
    %p160 = pneg %p154
    %p161 = scmp.eq.s32.totalorder %s14, 1
    %p162 = por %p160, %p161
    %p163 = scmp.ne.s32.totalorder %s155, %s158
    %p164 = scmp.eq.s32.totalorder %s14, 0
    %p165 = por %p163, %p164
    %p166 = scmp.ne.s32.totalorder %s155, %s158
    %p167 = scmp.eq.s32.totalorder %s19, 1
    %p168 = por %p166, %p167
    %p169 = scmp.ne.s32.totalorder %s158, %s159
    %p170 = scmp.eq.s32.totalorder %s19, 0
    %p171 = por %p169, %p170
    %p172 = scmp.ne.s32.totalorder %s158, %s159
    %p173 = scmp.eq.s32.totalorder %s20, 1
    %p174 = por %p172, %p173
    %p176 = scmp.ne.s32.totalorder %s159, %s175
    %p177 = scmp.eq.s32.totalorder %s20, 0
    %p178 = por %p176, %p177
    %s180 = sadd.s32 %s179, 1
    %p183 = scmp.eq.s32.totalorder %s14, 1
    %p184 = scmp.ne.s32.totalorder %s179, %s181
    %p185 = scmp.eq.s32.totalorder %s14, 0
    %p186 = por %p184, %p185
    %p187 = scmp.ne.s32.totalorder %s179, %s181
    %p188 = scmp.eq.s32.totalorder %s19, 1
    %p189 = por %p187, %p188
    %p190 = scmp.ne.s32.totalorder %s181, %s182
    %p191 = scmp.eq.s32.totalorder %s19, 0
    %p192 = por %p190, %p191
    %p193 = scmp.ne.s32.totalorder %s181, %s182
    %p194 = scmp.eq.s32.totalorder %s20, 1
    %p195 = por %p193, %p194
    %p197 = scmp.ne.s32.totalorder %s182, %s196
    %p198 = scmp.eq.s32.totalorder %s20, 0
    %p199 = por %p197, %p198
    %s200 = ssub.s32 %s14, %s21
    %p201 = scmp.eq.s32.totalorder %s200, 0
    %s203 = sadd.s32 %s202, 1
    %s204 = scalar_select %p201, %s202, %s203
    %p207 = pneg %p201
    %p208 = scmp.eq.s32.totalorder %s14, 1
    %p209 = por %p207, %p208
    %p210 = scmp.ne.s32.totalorder %s202, %s205
    %p211 = scmp.eq.s32.totalorder %s14, 0
    %p212 = por %p210, %p211
    %p213 = scmp.ne.s32.totalorder %s202, %s205
    %p214 = scmp.eq.s32.totalorder %s19, 1
    %p215 = por %p213, %p214
    %p216 = scmp.ne.s32.totalorder %s205, %s206
    %p217 = scmp.eq.s32.totalorder %s19, 0
    %p218 = por %p216, %p217
    %p219 = scmp.ne.s32.totalorder %s205, %s206
    %p220 = scmp.eq.s32.totalorder %s20, 1
    %p221 = por %p219, %p220
    %p223 = scmp.ne.s32.totalorder %s206, %s222
    %p224 = scmp.eq.s32.totalorder %s20, 0
    %p225 = por %p223, %p224
    %p226 = scmp.le.s32.totalorder 1, %s14
    %p227 = scmp.lt.s32.totalorder %s14, 3
    %p228 = pnand %p226, %p227
    %p229 = pneg %p228
    // Predicated region
    $region9: #{tadtr_forward.3} parent=5 // pred_check
      _
    $region10: #{tadtr_forward.3} parent=5 // pred_check_branch
      %231 = sbr.rel (%p228) target = $region12
    $region11: #{tadtr_forward.3} parent=5 // pred_region
      %s232 = ssub.s32 %s14, 1
      // Predicated region
      $region13: #{tadtr_forward.3} parent=11 // pred_check
        %p233 = pneg %p61
      $region14: #{tadtr_forward.3} parent=11 // pred_check_branch
        %235 = sbr.rel (%p233) target = $region16
      $region15: #{tadtr_forward.3} parent=11 // pred_region
        _
      $region16: #{tadtr_forward.3} parent=11 // pred_fallthru
        _
      // Predicated region
      $region17: #{tadtr_forward.3} parent=11 // pred_check
        %p236 = pneg %p82
      $region18: #{tadtr_forward.3} parent=11 // pred_check_branch
        %238 = sbr.rel (%p236) target = $region20
      $region19: #{tadtr_forward.3} parent=11 // pred_region
        _
      $region20: #{tadtr_forward.3} parent=11 // pred_fallthru
        _
      // Predicated region
      $region21: #{tadtr_forward.3} parent=11 // pred_check
        %p239 = pneg %p103
      $region22: #{tadtr_forward.3} parent=11 // pred_check_branch
        %241 = sbr.rel (%p239) target = $region24
      $region23: #{tadtr_forward.3} parent=11 // pred_region
        _
      $region24: #{tadtr_forward.3} parent=11 // pred_fallthru
        _
      // Predicated region
      $region25: #{tadtr_forward.3} parent=11 // pred_check
        %p242 = pneg %p124
      $region26: #{tadtr_forward.3} parent=11 // pred_check_branch
        %244 = sbr.rel (%p242) target = $region28
      $region27: #{tadtr_forward.3} parent=11 // pred_region
        _
      $region28: #{tadtr_forward.3} parent=11 // pred_fallthru
        _
      // Predicated region
      $region29: #{tadtr_forward.3} parent=11 // pred_check
        %p245 = pneg %p145
      $region30: #{tadtr_forward.3} parent=11 // pred_check_branch
        %247 = sbr.rel (%p245) target = $region32
      $region31: #{tadtr_forward.3} parent=11 // pred_region
        _
      $region32: #{tadtr_forward.3} parent=11 // pred_fallthru
        _
      // Predicated region
      $region33: #{tadtr_forward.3} parent=11 // pred_check
        %p248 = pneg %p192
      $region34: #{tadtr_forward.3} parent=11 // pred_check_branch
        %250 = sbr.rel (%p248) target = $region36
      $region35: #{tadtr_forward.3} parent=11 // pred_region
        _
      $region36: #{tadtr_forward.3} parent=11 // pred_fallthru
        _
    $region12: #{tadtr_forward.3} parent=5 // pred_fallthru
      _
    %p251 = scmp.lt.s32.totalorder %s14, 2
    // Predicated region
    $region37: #{tadtr_forward.3} parent=5 // pred_check
      %p252 = pneg %p251
    $region38: #{tadtr_forward.3} parent=5 // pred_check_branch
      %254 = sbr.rel (%p252) target = $region40
    $region39: #{tadtr_forward.3} parent=5 // pred_region
      // Predicated region
      $region41: #{tadtr_forward.3} parent=39 // pred_check
        %p255 = pneg %p34
      $region42: #{tadtr_forward.3} parent=39 // pred_check_branch
        %257 = sbr.rel (%p255) target = $region44
      $region43: #{tadtr_forward.3} parent=39 // pred_region
        %p258 = scmp.lt.s32.totalorder %s14, 1
        %s259 = scalar_select %p258, %s14, 1
        %s260 = smul.addr %s259, 256
        %s261 = smul.addr %s260, 8
        %s262 = scalar_lea.vmem %s0, %s261
      $region44: #{tadtr_forward.3} parent=39 // pred_fallthru
        _
      // Predicated region
      $region45: #{tadtr_forward.3} parent=39 // pred_check
        %p263 = pneg %p165
      $region46: #{tadtr_forward.3} parent=39 // pred_check_branch
        %265 = sbr.rel (%p263) target = $region48
      $region47: #{tadtr_forward.3} parent=39 // pred_region
        %p266 = scmp.lt.s32.totalorder %s14, 1
        %s267 = scalar_select %p266, %s14, 1
        %s268 = scalar_lea.vmem %s6, %s267
      $region48: #{tadtr_forward.3} parent=39 // pred_fallthru
        _
    $region40: #{tadtr_forward.3} parent=5 // pred_fallthru
      _
    %p269 = scmp.le.s32.totalorder 1, %s14
    %p270 = scmp.lt.s32.totalorder %s14, 3
    %p271 = pnand %p269, %p270
    %p272 = pneg %p271
    // Predicated region
    $region49: #{tadtr_forward.3} parent=5 // pred_check
      _
    $region50: #{tadtr_forward.3} parent=5 // pred_check_branch
      %274 = sbr.rel (%p271) target = $region52
    $region51: #{tadtr_forward.3} parent=5 // pred_region
      %s275 = ssub.s32 %s14, 1
      %p276 = scmp.lt.s32.totalorder %s19, 1
      %s277 = scalar_select %p276, %s19, 1
      %s278 = smul.addr %s277, 256
      %s279 = smul.addr %s278, 8
      %s280 = scalar_lea.vmem %s0, %s279
      %p281 = pneg %p40
      %p282 = pneg %p37
      %p283 = pneg %p61
      %p284 = pneg %p58
      %p285 = pneg %p82
      %p286 = pneg %p79
      %p287 = pneg %p103
      %p288 = pneg %p100
      %p289 = pneg %p124
      %p290 = pneg %p121
      %p291 = pneg %p145
      %p292 = pneg %p142
      %p293 = scmp.lt.s32.totalorder %s19, 1
      %s294 = scalar_select %p293, %s19, 1
      %s295 = scalar_lea.vmem %s6, %s294
      %p296 = pneg %p171
      %p297 = pneg %p168
      %p298 = pneg %p192
      %p299 = pneg %p189
      %p300 = pneg %p218
      %p301 = pneg %p215
      %p302 = scmp.lt.s32.totalorder %s19, 1
      %s303 = scalar_select %p302, %s19, 1
      %s304 = smul.addr %s303, 2
      %s305 = smul.addr %s304, 8
      %s306 = scalar_lea.vmem %s8, %s305
      %p307 = scmp.lt.s32.totalorder %s19, 1
      %s308 = scalar_select %p307, %s19, 1
      %s309 = smul.addr %s308, 256
      %s310 = smul.addr %s309, 8
      %s311 = scalar_lea.vmem %s0, %s310
      %p312 = scmp.lt.s32.totalorder %s19, 1
      %s313 = scalar_select %p312, %s19, 1
      %s314 = scalar_lea.vmem %s6, %s313
      %p315 = scmp.lt.s32.totalorder %s19, 1
      %s316 = scalar_select %p315, %s19, 1
      %s317 = smul.addr %s316, 2
      %s318 = smul.addr %s317, 8
      %s319 = scalar_lea.vmem %s8, %s318
      %v321 = vld [vmem:[%s311] sm:$0xff]
      %v322 = vld [vmem:[%s311 + $0x8] sm:$0xff]
      %v323 = vld [vmem:[%s311 + $0x10] sm:$0xff]
      %v324 = vld [vmem:[%s311 + $0x18] sm:$0xff]
      %v325 = vld [vmem:[%s311 + $0x20] sm:$0xff]
      %v326 = vld [vmem:[%s311 + $0x28] sm:$0xff]
      %v327 = vld [vmem:[%s311 + $0x30] sm:$0xff]
      %v328 = vld [vmem:[%s311 + $0x38] sm:$0xff]
      %v329 = vld [vmem:[%s311 + $0x40] sm:$0xff]
      %v330 = vld [vmem:[%s311 + $0x48] sm:$0xff]
      %v331 = vld [vmem:[%s311 + $0x50] sm:$0xff]
      %v332 = vld [vmem:[%s311 + $0x58] sm:$0xff]
      %v333 = vld [vmem:[%s311 + $0x60] sm:$0xff]
      %v334 = vld [vmem:[%s311 + $0x68] sm:$0xff]
      %v335 = vld [vmem:[%s311 + $0x70] sm:$0xff]
      %v336 = vld [vmem:[%s311 + $0x78] sm:$0xff]
      %v337 = vld [vmem:[%s311 + $0x80] sm:$0xff]
      %v338 = vld [vmem:[%s311 + $0x88] sm:$0xff]
      %v339 = vld [vmem:[%s311 + $0x90] sm:$0xff]
      %v340 = vld [vmem:[%s311 + $0x98] sm:$0xff]
      %v341 = vld [vmem:[%s311 + $0xa0] sm:$0xff]
      %v342 = vld [vmem:[%s311 + $0xa8] sm:$0xff]
      %v343 = vld [vmem:[%s311 + $0xb0] sm:$0xff]
      %v344 = vld [vmem:[%s311 + $0xb8] sm:$0xff]
      %v345 = vld [vmem:[%s311 + $0xc0] sm:$0xff]
      %v346 = vld [vmem:[%s311 + $0xc8] sm:$0xff]
      %v347 = vld [vmem:[%s311 + $0xd0] sm:$0xff]
      %v348 = vld [vmem:[%s311 + $0xd8] sm:$0xff]
      %v349 = vld [vmem:[%s311 + $0xe0] sm:$0xff]
      %v350 = vld [vmem:[%s311 + $0xe8] sm:$0xff]
      %v351 = vld [vmem:[%s311 + $0xf0] sm:$0xff]
      %v352 = vld [vmem:[%s311 + $0xf8] sm:$0xff]
      %v353 = vld [vmem:[%s311 + $0x100] sm:$0xff]
      %v354 = vld [vmem:[%s311 + $0x108] sm:$0xff]
      %v355 = vld [vmem:[%s311 + $0x110] sm:$0xff]
      %v356 = vld [vmem:[%s311 + $0x118] sm:$0xff]
      %v357 = vld [vmem:[%s311 + $0x120] sm:$0xff]
      %v358 = vld [vmem:[%s311 + $0x128] sm:$0xff]
      %v359 = vld [vmem:[%s311 + $0x130] sm:$0xff]
      %v360 = vld [vmem:[%s311 + $0x138] sm:$0xff]
      %v361 = vld [vmem:[%s311 + $0x140] sm:$0xff]
      %v362 = vld [vmem:[%s311 + $0x148] sm:$0xff]
      %v363 = vld [vmem:[%s311 + $0x150] sm:$0xff]
      %v364 = vld [vmem:[%s311 + $0x158] sm:$0xff]
      %v365 = vld [vmem:[%s311 + $0x160] sm:$0xff]
      %v366 = vld [vmem:[%s311 + $0x168] sm:$0xff]
      %v367 = vld [vmem:[%s311 + $0x170] sm:$0xff]
      %v368 = vld [vmem:[%s311 + $0x178] sm:$0xff]
      %v369 = vld [vmem:[%s311 + $0x180] sm:$0xff]
      %v370 = vld [vmem:[%s311 + $0x188] sm:$0xff]
      %v371 = vld [vmem:[%s311 + $0x190] sm:$0xff]
      %v372 = vld [vmem:[%s311 + $0x198] sm:$0xff]
      %v373 = vld [vmem:[%s311 + $0x1a0] sm:$0xff]
      %v374 = vld [vmem:[%s311 + $0x1a8] sm:$0xff]
      %v375 = vld [vmem:[%s311 + $0x1b0] sm:$0xff]
      %v376 = vld [vmem:[%s311 + $0x1b8] sm:$0xff]
      %v377 = vld [vmem:[%s311 + $0x1c0] sm:$0xff]
      %v378 = vld [vmem:[%s311 + $0x1c8] sm:$0xff]
      %v379 = vld [vmem:[%s311 + $0x1d0] sm:$0xff]
      %v380 = vld [vmem:[%s311 + $0x1d8] sm:$0xff]
      %v381 = vld [vmem:[%s311 + $0x1e0] sm:$0xff]
      %v382 = vld [vmem:[%s311 + $0x1e8] sm:$0xff]
      %v383 = vld [vmem:[%s311 + $0x1f0] sm:$0xff]
      %v384 = vld [vmem:[%s311 + $0x1f8] sm:$0xff]
      %v385 = vld [vmem:[%s311 + $0x200] sm:$0xff]
      %v386 = vld [vmem:[%s311 + $0x208] sm:$0xff]
      %v387 = vld [vmem:[%s311 + $0x210] sm:$0xff]
      %v388 = vld [vmem:[%s311 + $0x218] sm:$0xff]
      %v389 = vld [vmem:[%s311 + $0x220] sm:$0xff]
      %v390 = vld [vmem:[%s311 + $0x228] sm:$0xff]
      %v391 = vld [vmem:[%s311 + $0x230] sm:$0xff]
      %v392 = vld [vmem:[%s311 + $0x238] sm:$0xff]
      %v393 = vld [vmem:[%s311 + $0x240] sm:$0xff]
      %v394 = vld [vmem:[%s311 + $0x248] sm:$0xff]
      %v395 = vld [vmem:[%s311 + $0x250] sm:$0xff]
      %v396 = vld [vmem:[%s311 + $0x258] sm:$0xff]
      %v397 = vld [vmem:[%s311 + $0x260] sm:$0xff]
      %v398 = vld [vmem:[%s311 + $0x268] sm:$0xff]
      %v399 = vld [vmem:[%s311 + $0x270] sm:$0xff]
      %v400 = vld [vmem:[%s311 + $0x278] sm:$0xff]
      %v401 = vld [vmem:[%s311 + $0x280] sm:$0xff]
      %v402 = vld [vmem:[%s311 + $0x288] sm:$0xff]
      %v403 = vld [vmem:[%s311 + $0x290] sm:$0xff]
      %v404 = vld [vmem:[%s311 + $0x298] sm:$0xff]
      %v405 = vld [vmem:[%s311 + $0x2a0] sm:$0xff]
      %v406 = vld [vmem:[%s311 + $0x2a8] sm:$0xff]
      %v407 = vld [vmem:[%s311 + $0x2b0] sm:$0xff]
      %v408 = vld [vmem:[%s311 + $0x2b8] sm:$0xff]
      %v409 = vld [vmem:[%s311 + $0x2c0] sm:$0xff]
      %v410 = vld [vmem:[%s311 + $0x2c8] sm:$0xff]
      %v411 = vld [vmem:[%s311 + $0x2d0] sm:$0xff]
      %v412 = vld [vmem:[%s311 + $0x2d8] sm:$0xff]
      %v413 = vld [vmem:[%s311 + $0x2e0] sm:$0xff]
      %v414 = vld [vmem:[%s311 + $0x2e8] sm:$0xff]
      %v415 = vld [vmem:[%s311 + $0x2f0] sm:$0xff]
      %v416 = vld [vmem:[%s311 + $0x2f8] sm:$0xff]
      %v417 = vld [vmem:[%s311 + $0x300] sm:$0xff]
      %v418 = vld [vmem:[%s311 + $0x308] sm:$0xff]
      %v419 = vld [vmem:[%s311 + $0x310] sm:$0xff]
      %v420 = vld [vmem:[%s311 + $0x318] sm:$0xff]
      %v421 = vld [vmem:[%s311 + $0x320] sm:$0xff]
      %v422 = vld [vmem:[%s311 + $0x328] sm:$0xff]
      %v423 = vld [vmem:[%s311 + $0x330] sm:$0xff]
      %v424 = vld [vmem:[%s311 + $0x338] sm:$0xff]
      %v425 = vld [vmem:[%s311 + $0x340] sm:$0xff]
      %v426 = vld [vmem:[%s311 + $0x348] sm:$0xff]
      %v427 = vld [vmem:[%s311 + $0x350] sm:$0xff]
      %v428 = vld [vmem:[%s311 + $0x358] sm:$0xff]
      %v429 = vld [vmem:[%s311 + $0x360] sm:$0xff]
      %v430 = vld [vmem:[%s311 + $0x368] sm:$0xff]
      %v431 = vld [vmem:[%s311 + $0x370] sm:$0xff]
      %v432 = vld [vmem:[%s311 + $0x378] sm:$0xff]
      %v433 = vld [vmem:[%s311 + $0x380] sm:$0xff]
      %v434 = vld [vmem:[%s311 + $0x388] sm:$0xff]
      %v435 = vld [vmem:[%s311 + $0x390] sm:$0xff]
      %v436 = vld [vmem:[%s311 + $0x398] sm:$0xff]
      %v437 = vld [vmem:[%s311 + $0x3a0] sm:$0xff]
      %v438 = vld [vmem:[%s311 + $0x3a8] sm:$0xff]
      %v439 = vld [vmem:[%s311 + $0x3b0] sm:$0xff]
      %v440 = vld [vmem:[%s311 + $0x3b8] sm:$0xff]
      %v441 = vld [vmem:[%s311 + $0x3c0] sm:$0xff]
      %v442 = vld [vmem:[%s311 + $0x3c8] sm:$0xff]
      %v443 = vld [vmem:[%s311 + $0x3d0] sm:$0xff]
      %v444 = vld [vmem:[%s311 + $0x3d8] sm:$0xff]
      %v445 = vld [vmem:[%s311 + $0x3e0] sm:$0xff]
      %v446 = vld [vmem:[%s311 + $0x3e8] sm:$0xff]
      %v447 = vld [vmem:[%s311 + $0x3f0] sm:$0xff]
      %v448 = vld [vmem:[%s311 + $0x3f8] sm:$0xff]
      %v449 = vld [vmem:[%s311 + $0x400] sm:$0xff]
      %v450 = vld [vmem:[%s311 + $0x408] sm:$0xff]
      %v451 = vld [vmem:[%s311 + $0x410] sm:$0xff]
      %v452 = vld [vmem:[%s311 + $0x418] sm:$0xff]
      %v453 = vld [vmem:[%s311 + $0x420] sm:$0xff]
      %v454 = vld [vmem:[%s311 + $0x428] sm:$0xff]
      %v455 = vld [vmem:[%s311 + $0x430] sm:$0xff]
      %v456 = vld [vmem:[%s311 + $0x438] sm:$0xff]
      %v457 = vld [vmem:[%s311 + $0x440] sm:$0xff]
      %v458 = vld [vmem:[%s311 + $0x448] sm:$0xff]
      %v459 = vld [vmem:[%s311 + $0x450] sm:$0xff]
      %v460 = vld [vmem:[%s311 + $0x458] sm:$0xff]
      %v461 = vld [vmem:[%s311 + $0x460] sm:$0xff]
      %v462 = vld [vmem:[%s311 + $0x468] sm:$0xff]
      %v463 = vld [vmem:[%s311 + $0x470] sm:$0xff]
      %v464 = vld [vmem:[%s311 + $0x478] sm:$0xff]
      %v465 = vld [vmem:[%s311 + $0x480] sm:$0xff]
      %v466 = vld [vmem:[%s311 + $0x488] sm:$0xff]
      %v467 = vld [vmem:[%s311 + $0x490] sm:$0xff]
      %v468 = vld [vmem:[%s311 + $0x498] sm:$0xff]
      %v469 = vld [vmem:[%s311 + $0x4a0] sm:$0xff]
      %v470 = vld [vmem:[%s311 + $0x4a8] sm:$0xff]
      %v471 = vld [vmem:[%s311 + $0x4b0] sm:$0xff]
      %v472 = vld [vmem:[%s311 + $0x4b8] sm:$0xff]
      %v473 = vld [vmem:[%s311 + $0x4c0] sm:$0xff]
      %v474 = vld [vmem:[%s311 + $0x4c8] sm:$0xff]
      %v475 = vld [vmem:[%s311 + $0x4d0] sm:$0xff]
      %v476 = vld [vmem:[%s311 + $0x4d8] sm:$0xff]
      %v477 = vld [vmem:[%s311 + $0x4e0] sm:$0xff]
      %v478 = vld [vmem:[%s311 + $0x4e8] sm:$0xff]
      %v479 = vld [vmem:[%s311 + $0x4f0] sm:$0xff]
      %v480 = vld [vmem:[%s311 + $0x4f8] sm:$0xff]
      %v481 = vld [vmem:[%s311 + $0x500] sm:$0xff]
      %v482 = vld [vmem:[%s311 + $0x508] sm:$0xff]
      %v483 = vld [vmem:[%s311 + $0x510] sm:$0xff]
      %v484 = vld [vmem:[%s311 + $0x518] sm:$0xff]
      %v485 = vld [vmem:[%s311 + $0x520] sm:$0xff]
      %v486 = vld [vmem:[%s311 + $0x528] sm:$0xff]
      %v487 = vld [vmem:[%s311 + $0x530] sm:$0xff]
      %v488 = vld [vmem:[%s311 + $0x538] sm:$0xff]
      %v489 = vld [vmem:[%s311 + $0x540] sm:$0xff]
      %v490 = vld [vmem:[%s311 + $0x548] sm:$0xff]
      %v491 = vld [vmem:[%s311 + $0x550] sm:$0xff]
      %v492 = vld [vmem:[%s311 + $0x558] sm:$0xff]
      %v493 = vld [vmem:[%s311 + $0x560] sm:$0xff]
      %v494 = vld [vmem:[%s311 + $0x568] sm:$0xff]
      %v495 = vld [vmem:[%s311 + $0x570] sm:$0xff]
      %v496 = vld [vmem:[%s311 + $0x578] sm:$0xff]
      %v497 = vld [vmem:[%s311 + $0x580] sm:$0xff]
      %v498 = vld [vmem:[%s311 + $0x588] sm:$0xff]
      %v499 = vld [vmem:[%s311 + $0x590] sm:$0xff]
      %v500 = vld [vmem:[%s311 + $0x598] sm:$0xff]
      %v501 = vld [vmem:[%s311 + $0x5a0] sm:$0xff]
      %v502 = vld [vmem:[%s311 + $0x5a8] sm:$0xff]
      %v503 = vld [vmem:[%s311 + $0x5b0] sm:$0xff]
      %v504 = vld [vmem:[%s311 + $0x5b8] sm:$0xff]
      %v505 = vld [vmem:[%s311 + $0x5c0] sm:$0xff]
      %v506 = vld [vmem:[%s311 + $0x5c8] sm:$0xff]
      %v507 = vld [vmem:[%s311 + $0x5d0] sm:$0xff]
      %v508 = vld [vmem:[%s311 + $0x5d8] sm:$0xff]
      %v509 = vld [vmem:[%s311 + $0x5e0] sm:$0xff]
      %v510 = vld [vmem:[%s311 + $0x5e8] sm:$0xff]
      %v511 = vld [vmem:[%s311 + $0x5f0] sm:$0xff]
      %v512 = vld [vmem:[%s311 + $0x5f8] sm:$0xff]
      %v513 = vld [vmem:[%s311 + $0x600] sm:$0xff]
      %v514 = vld [vmem:[%s311 + $0x608] sm:$0xff]
      %v515 = vld [vmem:[%s311 + $0x610] sm:$0xff]
      %v516 = vld [vmem:[%s311 + $0x618] sm:$0xff]
      %v517 = vld [vmem:[%s311 + $0x620] sm:$0xff]
      %v518 = vld [vmem:[%s311 + $0x628] sm:$0xff]
      %v519 = vld [vmem:[%s311 + $0x630] sm:$0xff]
      %v520 = vld [vmem:[%s311 + $0x638] sm:$0xff]
      %v521 = vld [vmem:[%s311 + $0x640] sm:$0xff]
      %v522 = vld [vmem:[%s311 + $0x648] sm:$0xff]
      %v523 = vld [vmem:[%s311 + $0x650] sm:$0xff]
      %v524 = vld [vmem:[%s311 + $0x658] sm:$0xff]
      %v525 = vld [vmem:[%s311 + $0x660] sm:$0xff]
      %v526 = vld [vmem:[%s311 + $0x668] sm:$0xff]
      %v527 = vld [vmem:[%s311 + $0x670] sm:$0xff]
      %v528 = vld [vmem:[%s311 + $0x678] sm:$0xff]
      %v529 = vld [vmem:[%s311 + $0x680] sm:$0xff]
      %v530 = vld [vmem:[%s311 + $0x688] sm:$0xff]
      %v531 = vld [vmem:[%s311 + $0x690] sm:$0xff]
      %v532 = vld [vmem:[%s311 + $0x698] sm:$0xff]
      %v533 = vld [vmem:[%s311 + $0x6a0] sm:$0xff]
      %v534 = vld [vmem:[%s311 + $0x6a8] sm:$0xff]
      %v535 = vld [vmem:[%s311 + $0x6b0] sm:$0xff]
      %v536 = vld [vmem:[%s311 + $0x6b8] sm:$0xff]
      %v537 = vld [vmem:[%s311 + $0x6c0] sm:$0xff]
      %v538 = vld [vmem:[%s311 + $0x6c8] sm:$0xff]
      %v539 = vld [vmem:[%s311 + $0x6d0] sm:$0xff]
      %v540 = vld [vmem:[%s311 + $0x6d8] sm:$0xff]
      %v541 = vld [vmem:[%s311 + $0x6e0] sm:$0xff]
      %v542 = vld [vmem:[%s311 + $0x6e8] sm:$0xff]
      %v543 = vld [vmem:[%s311 + $0x6f0] sm:$0xff]
      %v544 = vld [vmem:[%s311 + $0x6f8] sm:$0xff]
      %v545 = vld [vmem:[%s311 + $0x700] sm:$0xff]
      %v546 = vld [vmem:[%s311 + $0x708] sm:$0xff]
      %v547 = vld [vmem:[%s311 + $0x710] sm:$0xff]
      %v548 = vld [vmem:[%s311 + $0x718] sm:$0xff]
      %v549 = vld [vmem:[%s311 + $0x720] sm:$0xff]
      %v550 = vld [vmem:[%s311 + $0x728] sm:$0xff]
      %v551 = vld [vmem:[%s311 + $0x730] sm:$0xff]
      %v552 = vld [vmem:[%s311 + $0x738] sm:$0xff]
      %v553 = vld [vmem:[%s311 + $0x740] sm:$0xff]
      %v554 = vld [vmem:[%s311 + $0x748] sm:$0xff]
      %v555 = vld [vmem:[%s311 + $0x750] sm:$0xff]
      %v556 = vld [vmem:[%s311 + $0x758] sm:$0xff]
      %v557 = vld [vmem:[%s311 + $0x760] sm:$0xff]
      %v558 = vld [vmem:[%s311 + $0x768] sm:$0xff]
      %v559 = vld [vmem:[%s311 + $0x770] sm:$0xff]
      %v560 = vld [vmem:[%s311 + $0x778] sm:$0xff]
      %v561 = vld [vmem:[%s311 + $0x780] sm:$0xff]
      %v562 = vld [vmem:[%s311 + $0x788] sm:$0xff]
      %v563 = vld [vmem:[%s311 + $0x790] sm:$0xff]
      %v564 = vld [vmem:[%s311 + $0x798] sm:$0xff]
      %v565 = vld [vmem:[%s311 + $0x7a0] sm:$0xff]
      %v566 = vld [vmem:[%s311 + $0x7a8] sm:$0xff]
      %v567 = vld [vmem:[%s311 + $0x7b0] sm:$0xff]
      %v568 = vld [vmem:[%s311 + $0x7b8] sm:$0xff]
      %v569 = vld [vmem:[%s311 + $0x7c0] sm:$0xff]
      %v570 = vld [vmem:[%s311 + $0x7c8] sm:$0xff]
      %v571 = vld [vmem:[%s311 + $0x7d0] sm:$0xff]
      %v572 = vld [vmem:[%s311 + $0x7d8] sm:$0xff]
      %v573 = vld [vmem:[%s311 + $0x7e0] sm:$0xff]
      %v574 = vld [vmem:[%s311 + $0x7e8] sm:$0xff]
      %v575 = vld [vmem:[%s311 + $0x7f0] sm:$0xff]
      %v576 = vld [vmem:[%s311 + $0x7f8] sm:$0xff]
      %v577 = vld [vmem:[%s1] sm:$0xff]
      %v578 = vld [vmem:[%s1 + $0x8] sm:$0xff]
      %v579 = vld [vmem:[%s1 + $0x10] sm:$0xff]
      %v580 = vld [vmem:[%s1 + $0x18] sm:$0xff]
      %v581 = vld [vmem:[%s1 + $0x20] sm:$0xff]
      %v582 = vld [vmem:[%s1 + $0x28] sm:$0xff]
      %v583 = vld [vmem:[%s1 + $0x30] sm:$0xff]
      %v584 = vld [vmem:[%s1 + $0x38] sm:$0xff]
      %v585 = vld [vmem:[%s1 + $0x40] sm:$0xff]
      %v586 = vld [vmem:[%s1 + $0x48] sm:$0xff]
      %v587 = vld [vmem:[%s1 + $0x50] sm:$0xff]
      %v588 = vld [vmem:[%s1 + $0x58] sm:$0xff]
      %v589 = vld [vmem:[%s1 + $0x60] sm:$0xff]
      %v590 = vld [vmem:[%s1 + $0x68] sm:$0xff]
      %v591 = vld [vmem:[%s1 + $0x70] sm:$0xff]
      %v592 = vld [vmem:[%s1 + $0x78] sm:$0xff]
      %v593 = vld [vmem:[%s1 + $0x80] sm:$0xff]
      %v594 = vld [vmem:[%s1 + $0x88] sm:$0xff]
      %v595 = vld [vmem:[%s1 + $0x90] sm:$0xff]
      %v596 = vld [vmem:[%s1 + $0x98] sm:$0xff]
      %v597 = vld [vmem:[%s1 + $0xa0] sm:$0xff]
      %v598 = vld [vmem:[%s1 + $0xa8] sm:$0xff]
      %v599 = vld [vmem:[%s1 + $0xb0] sm:$0xff]
      %v600 = vld [vmem:[%s1 + $0xb8] sm:$0xff]
      %v601 = vld [vmem:[%s1 + $0xc0] sm:$0xff]
      %v602 = vld [vmem:[%s1 + $0xc8] sm:$0xff]
      %v603 = vld [vmem:[%s1 + $0xd0] sm:$0xff]
      %v604 = vld [vmem:[%s1 + $0xd8] sm:$0xff]
      %v605 = vld [vmem:[%s1 + $0xe0] sm:$0xff]
      %v606 = vld [vmem:[%s1 + $0xe8] sm:$0xff]
      %v607 = vld [vmem:[%s1 + $0xf0] sm:$0xff]
      %v608 = vld [vmem:[%s1 + $0xf8] sm:$0xff]
      %v609 = vld [vmem:[%s1 + $0x100] sm:$0xff]
      %v610 = vld [vmem:[%s1 + $0x108] sm:$0xff]
      %v611 = vld [vmem:[%s1 + $0x110] sm:$0xff]
      %v612 = vld [vmem:[%s1 + $0x118] sm:$0xff]
      %v613 = vld [vmem:[%s1 + $0x120] sm:$0xff]
      %v614 = vld [vmem:[%s1 + $0x128] sm:$0xff]
      %v615 = vld [vmem:[%s1 + $0x130] sm:$0xff]
      %v616 = vld [vmem:[%s1 + $0x138] sm:$0xff]
      %v617 = vld [vmem:[%s1 + $0x140] sm:$0xff]
      %v618 = vld [vmem:[%s1 + $0x148] sm:$0xff]
      %v619 = vld [vmem:[%s1 + $0x150] sm:$0xff]
      %v620 = vld [vmem:[%s1 + $0x158] sm:$0xff]
      %v621 = vld [vmem:[%s1 + $0x160] sm:$0xff]
      %v622 = vld [vmem:[%s1 + $0x168] sm:$0xff]
      %v623 = vld [vmem:[%s1 + $0x170] sm:$0xff]
      %v624 = vld [vmem:[%s1 + $0x178] sm:$0xff]
      %v625 = vld [vmem:[%s1 + $0x180] sm:$0xff]
      %v626 = vld [vmem:[%s1 + $0x188] sm:$0xff]
      %v627 = vld [vmem:[%s1 + $0x190] sm:$0xff]
      %v628 = vld [vmem:[%s1 + $0x198] sm:$0xff]
      %v629 = vld [vmem:[%s1 + $0x1a0] sm:$0xff]
      %v630 = vld [vmem:[%s1 + $0x1a8] sm:$0xff]
      %v631 = vld [vmem:[%s1 + $0x1b0] sm:$0xff]
      %v632 = vld [vmem:[%s1 + $0x1b8] sm:$0xff]
      %v633 = vld [vmem:[%s1 + $0x1c0] sm:$0xff]
      %v634 = vld [vmem:[%s1 + $0x1c8] sm:$0xff]
      %v635 = vld [vmem:[%s1 + $0x1d0] sm:$0xff]
      %v636 = vld [vmem:[%s1 + $0x1d8] sm:$0xff]
      %v637 = vld [vmem:[%s1 + $0x1e0] sm:$0xff]
      %v638 = vld [vmem:[%s1 + $0x1e8] sm:$0xff]
      %v639 = vld [vmem:[%s1 + $0x1f0] sm:$0xff]
      %v640 = vld [vmem:[%s1 + $0x1f8] sm:$0xff]
      %v641 = vpack.c.bf16 %v593, %v577
      %v642 = vpack.c.bf16 %v594, %v578
      %v643 = vpack.c.bf16 %v595, %v579
      %v644 = vpack.c.bf16 %v596, %v580
      %v645 = vpack.c.bf16 %v597, %v581
      %v646 = vpack.c.bf16 %v598, %v582
      %v647 = vpack.c.bf16 %v599, %v583
      %v648 = vpack.c.bf16 %v600, %v584
      %v649 = vpack.c.bf16 %v601, %v585
      %v650 = vpack.c.bf16 %v602, %v586
      %v651 = vpack.c.bf16 %v603, %v587
      %v652 = vpack.c.bf16 %v604, %v588
      %v653 = vpack.c.bf16 %v605, %v589
      %v654 = vpack.c.bf16 %v606, %v590
      %v655 = vpack.c.bf16 %v607, %v591
      %v656 = vpack.c.bf16 %v608, %v592
      %v657 = vpack.c.bf16 %v625, %v609
      %v658 = vpack.c.bf16 %v626, %v610
      %v659 = vpack.c.bf16 %v627, %v611
      %v660 = vpack.c.bf16 %v628, %v612
      %v661 = vpack.c.bf16 %v629, %v613
      %v662 = vpack.c.bf16 %v630, %v614
      %v663 = vpack.c.bf16 %v631, %v615
      %v664 = vpack.c.bf16 %v632, %v616
      %v665 = vpack.c.bf16 %v633, %v617
      %v666 = vpack.c.bf16 %v634, %v618
      %v667 = vpack.c.bf16 %v635, %v619
      %v668 = vpack.c.bf16 %v636, %v620
      %v669 = vpack.c.bf16 %v637, %v621
      %v670 = vpack.c.bf16 %v638, %v622
      %v671 = vpack.c.bf16 %v639, %v623
      %v672 = vpack.c.bf16 %v640, %v624
      %v673 = vpack.c.bf16 %v322, %v321
      %v674 = vpack.c.bf16 %v324, %v323
      %v675 = vpack.c.bf16 %v326, %v325
      %v676 = vpack.c.bf16 %v328, %v327
      %v677 = vpack.c.bf16 %v330, %v329
      %v678 = vpack.c.bf16 %v332, %v331
      %v679 = vpack.c.bf16 %v334, %v333
      %v680 = vpack.c.bf16 %v336, %v335
      %v681 = vpack.c.bf16 %v338, %v337
      %v682 = vpack.c.bf16 %v340, %v339
      %v683 = vpack.c.bf16 %v342, %v341
      %v684 = vpack.c.bf16 %v344, %v343
      %v685 = vpack.c.bf16 %v346, %v345
      %v686 = vpack.c.bf16 %v348, %v347
      %v687 = vpack.c.bf16 %v350, %v349
      %v688 = vpack.c.bf16 %v352, %v351
      %v689 = vpack.c.bf16 %v354, %v353
      %v690 = vpack.c.bf16 %v356, %v355
      %v691 = vpack.c.bf16 %v358, %v357
      %v692 = vpack.c.bf16 %v360, %v359
      %v693 = vpack.c.bf16 %v362, %v361
      %v694 = vpack.c.bf16 %v364, %v363
      %v695 = vpack.c.bf16 %v366, %v365
      %v696 = vpack.c.bf16 %v368, %v367
      %v697 = vpack.c.bf16 %v370, %v369
      %v698 = vpack.c.bf16 %v372, %v371
      %v699 = vpack.c.bf16 %v374, %v373
      %v700 = vpack.c.bf16 %v376, %v375
      %v701 = vpack.c.bf16 %v378, %v377
      %v702 = vpack.c.bf16 %v380, %v379
      %v703 = vpack.c.bf16 %v382, %v381
      %v704 = vpack.c.bf16 %v384, %v383
      %v705 = vpack.c.bf16 %v386, %v385
      %v706 = vpack.c.bf16 %v388, %v387
      %v707 = vpack.c.bf16 %v390, %v389
      %v708 = vpack.c.bf16 %v392, %v391
      %v709 = vpack.c.bf16 %v394, %v393
      %v710 = vpack.c.bf16 %v396, %v395
      %v711 = vpack.c.bf16 %v398, %v397
      %v712 = vpack.c.bf16 %v400, %v399
      %v713 = vpack.c.bf16 %v402, %v401
      %v714 = vpack.c.bf16 %v404, %v403
      %v715 = vpack.c.bf16 %v406, %v405
      %v716 = vpack.c.bf16 %v408, %v407
      %v717 = vpack.c.bf16 %v410, %v409
      %v718 = vpack.c.bf16 %v412, %v411
      %v719 = vpack.c.bf16 %v414, %v413
      %v720 = vpack.c.bf16 %v416, %v415
      %v721 = vpack.c.bf16 %v418, %v417
      %v722 = vpack.c.bf16 %v420, %v419
      %v723 = vpack.c.bf16 %v422, %v421
      %v724 = vpack.c.bf16 %v424, %v423
      %v725 = vpack.c.bf16 %v426, %v425
      %v726 = vpack.c.bf16 %v428, %v427
      %v727 = vpack.c.bf16 %v430, %v429
      %v728 = vpack.c.bf16 %v432, %v431
      %v729 = vpack.c.bf16 %v434, %v433
      %v730 = vpack.c.bf16 %v436, %v435
      %v731 = vpack.c.bf16 %v438, %v437
      %v732 = vpack.c.bf16 %v440, %v439
      %v733 = vpack.c.bf16 %v442, %v441
      %v734 = vpack.c.bf16 %v444, %v443
      %v735 = vpack.c.bf16 %v446, %v445
      %v736 = vpack.c.bf16 %v448, %v447
      %v737 = vpack.c.bf16 %v450, %v449
      %v738 = vpack.c.bf16 %v452, %v451
      %v739 = vpack.c.bf16 %v454, %v453
      %v740 = vpack.c.bf16 %v456, %v455
      %v741 = vpack.c.bf16 %v458, %v457
      %v742 = vpack.c.bf16 %v460, %v459
      %v743 = vpack.c.bf16 %v462, %v461
      %v744 = vpack.c.bf16 %v464, %v463
      %v745 = vpack.c.bf16 %v466, %v465
      %v746 = vpack.c.bf16 %v468, %v467
      %v747 = vpack.c.bf16 %v470, %v469
      %v748 = vpack.c.bf16 %v472, %v471
      %v749 = vpack.c.bf16 %v474, %v473
      %v750 = vpack.c.bf16 %v476, %v475
      %v751 = vpack.c.bf16 %v478, %v477
      %v752 = vpack.c.bf16 %v480, %v479
      %v753 = vpack.c.bf16 %v482, %v481
      %v754 = vpack.c.bf16 %v484, %v483
      %v755 = vpack.c.bf16 %v486, %v485
      %v756 = vpack.c.bf16 %v488, %v487
      %v757 = vpack.c.bf16 %v490, %v489
      %v758 = vpack.c.bf16 %v492, %v491
      %v759 = vpack.c.bf16 %v494, %v493
      %v760 = vpack.c.bf16 %v496, %v495
      %v761 = vpack.c.bf16 %v498, %v497
      %v762 = vpack.c.bf16 %v500, %v499
      %v763 = vpack.c.bf16 %v502, %v501
      %v764 = vpack.c.bf16 %v504, %v503
      %v765 = vpack.c.bf16 %v506, %v505
      %v766 = vpack.c.bf16 %v508, %v507
      %v767 = vpack.c.bf16 %v510, %v509
      %v768 = vpack.c.bf16 %v512, %v511
      %v769 = vpack.c.bf16 %v514, %v513
      %v770 = vpack.c.bf16 %v516, %v515
      %v771 = vpack.c.bf16 %v518, %v517
      %v772 = vpack.c.bf16 %v520, %v519
      %v773 = vpack.c.bf16 %v522, %v521
      %v774 = vpack.c.bf16 %v524, %v523
      %v775 = vpack.c.bf16 %v526, %v525
      %v776 = vpack.c.bf16 %v528, %v527
      %v777 = vpack.c.bf16 %v530, %v529
      %v778 = vpack.c.bf16 %v532, %v531
      %v779 = vpack.c.bf16 %v534, %v533
      %v780 = vpack.c.bf16 %v536, %v535
      %v781 = vpack.c.bf16 %v538, %v537
      %v782 = vpack.c.bf16 %v540, %v539
      %v783 = vpack.c.bf16 %v542, %v541
      %v784 = vpack.c.bf16 %v544, %v543
      %v785 = vpack.c.bf16 %v546, %v545
      %v786 = vpack.c.bf16 %v548, %v547
      %v787 = vpack.c.bf16 %v550, %v549
      %v788 = vpack.c.bf16 %v552, %v551
      %v789 = vpack.c.bf16 %v554, %v553
      %v790 = vpack.c.bf16 %v556, %v555
      %v791 = vpack.c.bf16 %v558, %v557
      %v792 = vpack.c.bf16 %v560, %v559
      %v793 = vpack.c.bf16 %v562, %v561
      %v794 = vpack.c.bf16 %v564, %v563
      %v795 = vpack.c.bf16 %v566, %v565
      %v796 = vpack.c.bf16 %v568, %v567
      %v797 = vpack.c.bf16 %v570, %v569
      %v798 = vpack.c.bf16 %v572, %v571
      %v799 = vpack.c.bf16 %v574, %v573
      %v800 = vpack.c.bf16 %v576, %v575
      %v801 = vld [vmem:[%s2] sm:$0xff]
      %v802 = vld [vmem:[%s2 + $0x8] sm:$0xff]
      %v803 = vld [vmem:[%s2 + $0x10] sm:$0xff]
      %v804 = vld [vmem:[%s2 + $0x18] sm:$0xff]
      %806 = vset.pattern.permute.xlu0 0
      %807 = vperm.xlu0 %806, %v801
      %v808 = vpop.permute.xlu0 %807
      %811 = vset.pattern.permute.xlu0 0
      %812 = vperm.xlu0 %811, %v802
      %v813 = vpop.permute.xlu0 %812
      %816 = vset.pattern.permute.xlu0 0
      %817 = vperm.xlu0 %816, %v803
      %v818 = vpop.permute.xlu0 %817
      %821 = vset.pattern.permute.xlu0 0
      %822 = vperm.xlu0 %821, %v804
      %v823 = vpop.permute.xlu0 %822
      %825 = vmatprep.subr.bf16.mxu0 0
      %826 = vmatpush1.bf16.msra.mxu0 %v673
      %827 = vmatprep.subr.bf16.mxu0 0
      %828 = vmatpush1.bf16.msra.mxu0 %v674
      %829 = vmatprep.subr.bf16.mxu0 0
      %830 = vmatpush1.bf16.msra.mxu0 %v675
      %831 = vmatprep.subr.bf16.mxu0 0
      %832 = vmatpush1.bf16.msra.mxu0 %v676
      %833 = vmatprep.subr.bf16.mxu0 0
      %834 = vmatpush1.bf16.msra.mxu0 %v677
      %835 = vmatprep.subr.bf16.mxu0 0
      %836 = vmatpush1.bf16.msra.mxu0 %v678
      %837 = vmatprep.subr.bf16.mxu0 0
      %838 = vmatpush1.bf16.msra.mxu0 %v679
      %839 = vmatprep.subr.bf16.mxu0 0
      %840 = vmatpush1.bf16.msra.mxu0 %v680
      %841 = vmatprep.subr.bf16.mxu0 0
      %842 = vmatpush1.bf16.msra.mxu0 %v681
      %843 = vmatprep.subr.bf16.mxu0 0
      %844 = vmatpush1.bf16.msra.mxu0 %v682
      %845 = vmatprep.subr.bf16.mxu0 0
      %846 = vmatpush1.bf16.msra.mxu0 %v683
      %847 = vmatprep.subr.bf16.mxu0 0
      %848 = vmatpush1.bf16.msra.mxu0 %v684
      %849 = vmatprep.subr.bf16.mxu0 0
      %850 = vmatpush1.bf16.msra.mxu0 %v685
      %851 = vmatprep.subr.bf16.mxu0 0
      %852 = vmatpush1.bf16.msra.mxu0 %v686
      %853 = vmatprep.subr.bf16.mxu0 0
      %854 = vmatpush1.bf16.msra.mxu0 %v687
      %855 = vmatprep.subr.bf16.mxu0 0
      %856 = vmatpush1.bf16.msra.mxu0 %v688
      %857 = vmatprep.mubr.bf16.mxu0 %v642
      %858 = vmatmul.mubr.bf16.gmra.mrb[0].mxu0 %v641
      %v859 = vpop.f32.mrb[0].mxu0
      %v860 = vadd.f32 %v808, %v859
      %v861 = vpop.f32.mrb[0].mxu0
      %v862 = vpop.f32.mrb[0].mxu0
      %v863 = vadd.f32 %v813, %v862
      %v864 = vpop.f32.mrb[0].mxu0
      %865 = vmatprep.mubr.bf16.mxu0 %v658
      %866 = vmatmul.mubr.bf16.gmra.mrb[0].mxu0 %v657
      %v867 = vpop.f32.mrb[0].mxu0
      %v868 = vadd.f32 %v818, %v867
      %v869 = vpop.f32.mrb[0].mxu0
      %v870 = vpop.f32.mrb[0].mxu0
      %v871 = vadd.f32 %v823, %v870
      %v872 = vpop.f32.mrb[0].mxu0
      %873 = vdwg.mxu0
      %874 = vmatprep.subr.bf16.mxu0 0
      %875 = vmatpush1.bf16.msra.mxu0 %v689
      %876 = vmatprep.subr.bf16.mxu0 0
      %877 = vmatpush1.bf16.msra.mxu0 %v690
      %878 = vmatprep.subr.bf16.mxu0 0
      %879 = vmatpush1.bf16.msra.mxu0 %v691
      %880 = vmatprep.subr.bf16.mxu0 0
      %881 = vmatpush1.bf16.msra.mxu0 %v692
      %882 = vmatprep.subr.bf16.mxu0 0
      %883 = vmatpush1.bf16.msra.mxu0 %v693
      %884 = vmatprep.subr.bf16.mxu0 0
      %885 = vmatpush1.bf16.msra.mxu0 %v694
      %886 = vmatprep.subr.bf16.mxu0 0
      %887 = vmatpush1.bf16.msra.mxu0 %v695
      %888 = vmatprep.subr.bf16.mxu0 0
      %889 = vmatpush1.bf16.msra.mxu0 %v696
      %890 = vmatprep.subr.bf16.mxu0 0
      %891 = vmatpush1.bf16.msra.mxu0 %v697
      %892 = vmatprep.subr.bf16.mxu0 0
      %893 = vmatpush1.bf16.msra.mxu0 %v698
      %894 = vmatprep.subr.bf16.mxu0 0
      %895 = vmatpush1.bf16.msra.mxu0 %v699
      %896 = vmatprep.subr.bf16.mxu0 0
      %897 = vmatpush1.bf16.msra.mxu0 %v700
      %898 = vmatprep.subr.bf16.mxu0 0
      %899 = vmatpush1.bf16.msra.mxu0 %v701
      %900 = vmatprep.subr.bf16.mxu0 0
      %901 = vmatpush1.bf16.msra.mxu0 %v702
      %902 = vmatprep.subr.bf16.mxu0 0
      %903 = vmatpush1.bf16.msra.mxu0 %v703
      %904 = vmatprep.subr.bf16.mxu0 0
      %905 = vmatpush1.bf16.msra.mxu0 %v704
      %906 = vmatprep.mubr.bf16.mxu0 %v644
      %907 = vmatmul.mubr.bf16.gmra.mrb[0].mxu0 %v643
      %v908 = vpop.f32.mrb[0].mxu0
      %v909 = vadd.f32 %v860, %v908
      %v910 = vpop.f32.mrb[0].mxu0
      %v911 = vpop.f32.mrb[0].mxu0
      %v912 = vadd.f32 %v863, %v911
      %v913 = vpop.f32.mrb[0].mxu0
      %914 = vmatprep.mubr.bf16.mxu0 %v660
      %915 = vmatmul.mubr.bf16.gmra.mrb[0].mxu0 %v659
      %v916 = vpop.f32.mrb[0].mxu0
      %v917 = vadd.f32 %v868, %v916
      %v918 = vpop.f32.mrb[0].mxu0
      %v919 = vpop.f32.mrb[0].mxu0
      %v920 = vadd.f32 %v871, %v919
      %v921 = vpop.f32.mrb[0].mxu0
      %922 = vdwg.mxu0
      %923 = vmatprep.subr.bf16.mxu0 0
      %924 = vmatpush1.bf16.msra.mxu0 %v705
      %925 = vmatprep.subr.bf16.mxu0 0
      %926 = vmatpush1.bf16.msra.mxu0 %v706
      %927 = vmatprep.subr.bf16.mxu0 0
      %928 = vmatpush1.bf16.msra.mxu0 %v707
      %929 = vmatprep.subr.bf16.mxu0 0
      %930 = vmatpush1.bf16.msra.mxu0 %v708
      %931 = vmatprep.subr.bf16.mxu0 0
      %932 = vmatpush1.bf16.msra.mxu0 %v709
      %933 = vmatprep.subr.bf16.mxu0 0
      %934 = vmatpush1.bf16.msra.mxu0 %v710
      %935 = vmatprep.subr.bf16.mxu0 0
      %936 = vmatpush1.bf16.msra.mxu0 %v711
      %937 = vmatprep.subr.bf16.mxu0 0
      %938 = vmatpush1.bf16.msra.mxu0 %v712
      %939 = vmatprep.subr.bf16.mxu0 0
      %940 = vmatpush1.bf16.msra.mxu0 %v713
      %941 = vmatprep.subr.bf16.mxu0 0
      %942 = vmatpush1.bf16.msra.mxu0 %v714
      %943 = vmatprep.subr.bf16.mxu0 0
      %944 = vmatpush1.bf16.msra.mxu0 %v715
      %945 = vmatprep.subr.bf16.mxu0 0
      %946 = vmatpush1.bf16.msra.mxu0 %v716
      %947 = vmatprep.subr.bf16.mxu0 0
      %948 = vmatpush1.bf16.msra.mxu0 %v717
      %949 = vmatprep.subr.bf16.mxu0 0
      %950 = vmatpush1.bf16.msra.mxu0 %v718
      %951 = vmatprep.subr.bf16.mxu0 0
      %952 = vmatpush1.bf16.msra.mxu0 %v719
      %953 = vmatprep.subr.bf16.mxu0 0
      %954 = vmatpush1.bf16.msra.mxu0 %v720
      %955 = vmatprep.mubr.bf16.mxu0 %v646
      %956 = vmatmul.mubr.bf16.gmra.mrb[0].mxu0 %v645
      %v957 = vpop.f32.mrb[0].mxu0
      %v958 = vadd.f32 %v909, %v957
      %v959 = vpop.f32.mrb[0].mxu0
      %v960 = vpop.f32.mrb[0].mxu0
      %v961 = vadd.f32 %v912, %v960
      %v962 = vpop.f32.mrb[0].mxu0
      %963 = vmatprep.mubr.bf16.mxu0 %v662
      %964 = vmatmul.mubr.bf16.gmra.mrb[0].mxu0 %v661
      %v965 = vpop.f32.mrb[0].mxu0
      %v966 = vadd.f32 %v917, %v965
      %v967 = vpop.f32.mrb[0].mxu0
      %v968 = vpop.f32.mrb[0].mxu0
      %v969 = vadd.f32 %v920, %v968
      %v970 = vpop.f32.mrb[0].mxu0
      %971 = vdwg.mxu0
      %972 = vmatprep.subr.bf16.mxu0 0
      %973 = vmatpush1.bf16.msra.mxu0 %v721
      %974 = vmatprep.subr.bf16.mxu0 0
      %975 = vmatpush1.bf16.msra.mxu0 %v722
      %976 = vmatprep.subr.bf16.mxu0 0
      %977 = vmatpush1.bf16.msra.mxu0 %v723
      %978 = vmatprep.subr.bf16.mxu0 0
      %979 = vmatpush1.bf16.msra.mxu0 %v724
      %980 = vmatprep.subr.bf16.mxu0 0
      %981 = vmatpush1.bf16.msra.mxu0 %v725
      %982 = vmatprep.subr.bf16.mxu0 0
      %983 = vmatpush1.bf16.msra.mxu0 %v726
      %984 = vmatprep.subr.bf16.mxu0 0
      %985 = vmatpush1.bf16.msra.mxu0 %v727
      %986 = vmatprep.subr.bf16.mxu0 0
      %987 = vmatpush1.bf16.msra.mxu0 %v728
      %988 = vmatprep.subr.bf16.mxu0 0
      %989 = vmatpush1.bf16.msra.mxu0 %v729
      %990 = vmatprep.subr.bf16.mxu0 0
      %991 = vmatpush1.bf16.msra.mxu0 %v730
      %992 = vmatprep.subr.bf16.mxu0 0
      %993 = vmatpush1.bf16.msra.mxu0 %v731
      %994 = vmatprep.subr.bf16.mxu0 0
      %995 = vmatpush1.bf16.msra.mxu0 %v732
      %996 = vmatprep.subr.bf16.mxu0 0
      %997 = vmatpush1.bf16.msra.mxu0 %v733
      %998 = vmatprep.subr.bf16.mxu0 0
      %999 = vmatpush1.bf16.msra.mxu0 %v734
      %1000 = vmatprep.subr.bf16.mxu0 0
      %1001 = vmatpush1.bf16.msra.mxu0 %v735
      %1002 = vmatprep.subr.bf16.mxu0 0
      %1003 = vmatpush1.bf16.msra.mxu0 %v736
      %1004 = vmatprep.mubr.bf16.mxu0 %v648
      %1005 = vmatmul.mubr.bf16.gmra.mrb[0].mxu0 %v647
      %v1006 = vpop.f32.mrb[0].mxu0
      %v1007 = vadd.f32 %v958, %v1006
      %v1008 = vpop.f32.mrb[0].mxu0
      %v1009 = vpop.f32.mrb[0].mxu0
      %v1010 = vadd.f32 %v961, %v1009
      %v1011 = vpop.f32.mrb[0].mxu0
      %1012 = vmatprep.mubr.bf16.mxu0 %v664
      %1013 = vmatmul.mubr.bf16.gmra.mrb[0].mxu0 %v663
      %v1014 = vpop.f32.mrb[0].mxu0
      %v1015 = vadd.f32 %v966, %v1014
      %v1016 = vpop.f32.mrb[0].mxu0
      %v1017 = vpop.f32.mrb[0].mxu0
      %v1018 = vadd.f32 %v969, %v1017
      %v1019 = vpop.f32.mrb[0].mxu0
      %1020 = vdwg.mxu0
      %1021 = vmatprep.subr.bf16.mxu0 0
      %1022 = vmatpush1.bf16.msra.mxu0 %v737
      %1023 = vmatprep.subr.bf16.mxu0 0
      %1024 = vmatpush1.bf16.msra.mxu0 %v738
      %1025 = vmatprep.subr.bf16.mxu0 0
      %1026 = vmatpush1.bf16.msra.mxu0 %v739
      %1027 = vmatprep.subr.bf16.mxu0 0
      %1028 = vmatpush1.bf16.msra.mxu0 %v740
      %1029 = vmatprep.subr.bf16.mxu0 0
      %1030 = vmatpush1.bf16.msra.mxu0 %v741
      %1031 = vmatprep.subr.bf16.mxu0 0
      %1032 = vmatpush1.bf16.msra.mxu0 %v742
      %1033 = vmatprep.subr.bf16.mxu0 0
      %1034 = vmatpush1.bf16.msra.mxu0 %v743
      %1035 = vmatprep.subr.bf16.mxu0 0
      %1036 = vmatpush1.bf16.msra.mxu0 %v744
      %1037 = vmatprep.subr.bf16.mxu0 0
      %1038 = vmatpush1.bf16.msra.mxu0 %v745
      %1039 = vmatprep.subr.bf16.mxu0 0
      %1040 = vmatpush1.bf16.msra.mxu0 %v746
      %1041 = vmatprep.subr.bf16.mxu0 0
      %1042 = vmatpush1.bf16.msra.mxu0 %v747
      %1043 = vmatprep.subr.bf16.mxu0 0
      %1044 = vmatpush1.bf16.msra.mxu0 %v748
      %1045 = vmatprep.subr.bf16.mxu0 0
      %1046 = vmatpush1.bf16.msra.mxu0 %v749
      %1047 = vmatprep.subr.bf16.mxu0 0
      %1048 = vmatpush1.bf16.msra.mxu0 %v750
      %1049 = vmatprep.subr.bf16.mxu0 0
      %1050 = vmatpush1.bf16.msra.mxu0 %v751
      %1051 = vmatprep.subr.bf16.mxu0 0
      %1052 = vmatpush1.bf16.msra.mxu0 %v752
      %1053 = vmatprep.mubr.bf16.mxu0 %v650
      %1054 = vmatmul.mubr.bf16.gmra.mrb[0].mxu0 %v649
      %v1055 = vpop.f32.mrb[0].mxu0
      %v1056 = vadd.f32 %v1007, %v1055
      %v1057 = vpop.f32.mrb[0].mxu0
      %v1058 = vpop.f32.mrb[0].mxu0
      %v1059 = vadd.f32 %v1010, %v1058
      %v1060 = vpop.f32.mrb[0].mxu0
      %1061 = vmatprep.mubr.bf16.mxu0 %v666
      %1062 = vmatmul.mubr.bf16.gmra.mrb[0].mxu0 %v665
      %v1063 = vpop.f32.mrb[0].mxu0
      %v1064 = vadd.f32 %v1015, %v1063
      %v1065 = vpop.f32.mrb[0].mxu0
      %v1066 = vpop.f32.mrb[0].mxu0
      %v1067 = vadd.f32 %v1018, %v1066
      %v1068 = vpop.f32.mrb[0].mxu0
      %1069 = vdwg.mxu0
      %1070 = vmatprep.subr.bf16.mxu0 0
      %1071 = vmatpush1.bf16.msra.mxu0 %v753
      %1072 = vmatprep.subr.bf16.mxu0 0
      %1073 = vmatpush1.bf16.msra.mxu0 %v754
      %1074 = vmatprep.subr.bf16.mxu0 0
      %1075 = vmatpush1.bf16.msra.mxu0 %v755
      %1076 = vmatprep.subr.bf16.mxu0 0
      %1077 = vmatpush1.bf16.msra.mxu0 %v756
      %1078 = vmatprep.subr.bf16.mxu0 0
      %1079 = vmatpush1.bf16.msra.mxu0 %v757
      %1080 = vmatprep.subr.bf16.mxu0 0
      %1081 = vmatpush1.bf16.msra.mxu0 %v758
      %1082 = vmatprep.subr.bf16.mxu0 0
      %1083 = vmatpush1.bf16.msra.mxu0 %v759
      %1084 = vmatprep.subr.bf16.mxu0 0
      %1085 = vmatpush1.bf16.msra.mxu0 %v760
      %1086 = vmatprep.subr.bf16.mxu0 0
      %1087 = vmatpush1.bf16.msra.mxu0 %v761
      %1088 = vmatprep.subr.bf16.mxu0 0
      %1089 = vmatpush1.bf16.msra.mxu0 %v762
      %1090 = vmatprep.subr.bf16.mxu0 0
      %1091 = vmatpush1.bf16.msra.mxu0 %v763
      %1092 = vmatprep.subr.bf16.mxu0 0
      %1093 = vmatpush1.bf16.msra.mxu0 %v764
      %1094 = vmatprep.subr.bf16.mxu0 0
      %1095 = vmatpush1.bf16.msra.mxu0 %v765
      %1096 = vmatprep.subr.bf16.mxu0 0
      %1097 = vmatpush1.bf16.msra.mxu0 %v766
      %1098 = vmatprep.subr.bf16.mxu0 0
      %1099 = vmatpush1.bf16.msra.mxu0 %v767
      %1100 = vmatprep.subr.bf16.mxu0 0
      %1101 = vmatpush1.bf16.msra.mxu0 %v768
      %1102 = vmatprep.mubr.bf16.mxu0 %v652
      %1103 = vmatmul.mubr.bf16.gmra.mrb[0].mxu0 %v651
      %v1104 = vpop.f32.mrb[0].mxu0
      %v1105 = vadd.f32 %v1056, %v1104
      %v1106 = vpop.f32.mrb[0].mxu0
      %v1107 = vpop.f32.mrb[0].mxu0
      %v1108 = vadd.f32 %v1059, %v1107
      %v1109 = vpop.f32.mrb[0].mxu0
      %1110 = vmatprep.mubr.bf16.mxu0 %v668
      %1111 = vmatmul.mubr.bf16.gmra.mrb[0].mxu0 %v667
      %v1112 = vpop.f32.mrb[0].mxu0
      %v1113 = vadd.f32 %v1064, %v1112
      %v1114 = vpop.f32.mrb[0].mxu0
      %v1115 = vpop.f32.mrb[0].mxu0
      %v1116 = vadd.f32 %v1067, %v1115
      %v1117 = vpop.f32.mrb[0].mxu0
      %1118 = vdwg.mxu0
      %1119 = vmatprep.subr.bf16.mxu0 0
      %1120 = vmatpush1.bf16.msra.mxu0 %v769
      %1121 = vmatprep.subr.bf16.mxu0 0
      %1122 = vmatpush1.bf16.msra.mxu0 %v770
      %1123 = vmatprep.subr.bf16.mxu0 0
      %1124 = vmatpush1.bf16.msra.mxu0 %v771
      %1125 = vmatprep.subr.bf16.mxu0 0
      %1126 = vmatpush1.bf16.msra.mxu0 %v772
      %1127 = vmatprep.subr.bf16.mxu0 0
      %1128 = vmatpush1.bf16.msra.mxu0 %v773
      %1129 = vmatprep.subr.bf16.mxu0 0
      %1130 = vmatpush1.bf16.msra.mxu0 %v774
      %1131 = vmatprep.subr.bf16.mxu0 0
      %1132 = vmatpush1.bf16.msra.mxu0 %v775
      %1133 = vmatprep.subr.bf16.mxu0 0
      %1134 = vmatpush1.bf16.msra.mxu0 %v776
      %1135 = vmatprep.subr.bf16.mxu0 0
      %1136 = vmatpush1.bf16.msra.mxu0 %v777
      %1137 = vmatprep.subr.bf16.mxu0 0
      %1138 = vmatpush1.bf16.msra.mxu0 %v778
      %1139 = vmatprep.subr.bf16.mxu0 0
      %1140 = vmatpush1.bf16.msra.mxu0 %v779
      %1141 = vmatprep.subr.bf16.mxu0 0
      %1142 = vmatpush1.bf16.msra.mxu0 %v780
      %1143 = vmatprep.subr.bf16.mxu0 0
      %1144 = vmatpush1.bf16.msra.mxu0 %v781
      %1145 = vmatprep.subr.bf16.mxu0 0
      %1146 = vmatpush1.bf16.msra.mxu0 %v782
      %1147 = vmatprep.subr.bf16.mxu0 0
      %1148 = vmatpush1.bf16.msra.mxu0 %v783
      %1149 = vmatprep.subr.bf16.mxu0 0
      %1150 = vmatpush1.bf16.msra.mxu0 %v784
      %1151 = vmatprep.mubr.bf16.mxu0 %v654
      %1152 = vmatmul.mubr.bf16.gmra.mrb[0].mxu0 %v653
      %v1153 = vpop.f32.mrb[0].mxu0
      %v1154 = vadd.f32 %v1105, %v1153
      %v1155 = vpop.f32.mrb[0].mxu0
      %v1156 = vpop.f32.mrb[0].mxu0
      %v1157 = vadd.f32 %v1108, %v1156
      %v1158 = vpop.f32.mrb[0].mxu0
      %1159 = vmatprep.mubr.bf16.mxu0 %v670
      %1160 = vmatmul.mubr.bf16.gmra.mrb[0].mxu0 %v669
      %v1161 = vpop.f32.mrb[0].mxu0
      %v1162 = vadd.f32 %v1113, %v1161
      %v1163 = vpop.f32.mrb[0].mxu0
      %v1164 = vpop.f32.mrb[0].mxu0
      %v1165 = vadd.f32 %v1116, %v1164
      %v1166 = vpop.f32.mrb[0].mxu0
      %1167 = vdwg.mxu0
      %1168 = vmatprep.subr.bf16.mxu0 0
      %1169 = vmatpush1.bf16.msra.mxu0 %v785
      %1170 = vmatprep.subr.bf16.mxu0 0
      %1171 = vmatpush1.bf16.msra.mxu0 %v786
      %1172 = vmatprep.subr.bf16.mxu0 0
      %1173 = vmatpush1.bf16.msra.mxu0 %v787
      %1174 = vmatprep.subr.bf16.mxu0 0
      %1175 = vmatpush1.bf16.msra.mxu0 %v788
      %1176 = vmatprep.subr.bf16.mxu0 0
      %1177 = vmatpush1.bf16.msra.mxu0 %v789
      %1178 = vmatprep.subr.bf16.mxu0 0
      %1179 = vmatpush1.bf16.msra.mxu0 %v790
      %1180 = vmatprep.subr.bf16.mxu0 0
      %1181 = vmatpush1.bf16.msra.mxu0 %v791
      %1182 = vmatprep.subr.bf16.mxu0 0
      %1183 = vmatpush1.bf16.msra.mxu0 %v792
      %1184 = vmatprep.subr.bf16.mxu0 0
      %1185 = vmatpush1.bf16.msra.mxu0 %v793
      %1186 = vmatprep.subr.bf16.mxu0 0
      %1187 = vmatpush1.bf16.msra.mxu0 %v794
      %1188 = vmatprep.subr.bf16.mxu0 0
      %1189 = vmatpush1.bf16.msra.mxu0 %v795
      %1190 = vmatprep.subr.bf16.mxu0 0
      %1191 = vmatpush1.bf16.msra.mxu0 %v796
      %1192 = vmatprep.subr.bf16.mxu0 0
      %1193 = vmatpush1.bf16.msra.mxu0 %v797
      %1194 = vmatprep.subr.bf16.mxu0 0
      %1195 = vmatpush1.bf16.msra.mxu0 %v798
      %1196 = vmatprep.subr.bf16.mxu0 0
      %1197 = vmatpush1.bf16.msra.mxu0 %v799
      %1198 = vmatprep.subr.bf16.mxu0 0
      %1199 = vmatpush1.bf16.msra.mxu0 %v800
      %1200 = vmatprep.mubr.bf16.mxu0 %v656
      %1201 = vmatmul.mubr.bf16.gmra.mrb[0].mxu0 %v655
      %v1202 = vpop.f32.mrb[0].mxu0
      %v1203 = vadd.f32 %v1154, %v1202
      %v1204 = vpop.f32.mrb[0].mxu0
      %v1205 = vpop.f32.mrb[0].mxu0
      %v1206 = vadd.f32 %v1157, %v1205
      %v1207 = vpop.f32.mrb[0].mxu0
      %1208 = vmatprep.mubr.bf16.mxu0 %v672
      %1209 = vmatmul.mubr.bf16.gmra.mrb[0].mxu0 %v671
      %v1210 = vpop.f32.mrb[0].mxu0
      %v1211 = vadd.f32 %v1162, %v1210
      %v1212 = vpop.f32.mrb[0].mxu0
      %v1213 = vpop.f32.mrb[0].mxu0
      %v1214 = vadd.f32 %v1165, %v1213
      %v1215 = vpop.f32.mrb[0].mxu0
      %1216 = vdwg.mxu0
      %vm1217 = vcmask 130048
      %v1218 = vsel %vm1217, %v1203, 0.0
      %1219 = vadd.xlane.f32.xlu0 %v1218
      %v1220 = vpop.xlane.xlu0 %1219
      %v1221 = vsel %vm1217, %v1206, 0.0
      %1222 = vadd.xlane.f32.xlu0 %v1221
      %v1223 = vpop.xlane.xlu0 %1222
      %v1224 = vsel %vm1217, %v1211, 0.0
      %1225 = vadd.xlane.f32.xlu0 %v1224
      %v1226 = vpop.xlane.xlu0 %1225
      %v1227 = vsel %vm1217, %v1214, 0.0
      %1228 = vadd.xlane.f32.xlu0 %v1227
      %v1229 = vpop.xlane.xlu0 %1228
      %v1230 = vmul.f32 %v1203, %v1203
      %v1231 = vmul.f32 %v1206, %v1206
      %v1232 = vmul.f32 %v1211, %v1211
      %v1233 = vmul.f32 %v1214, %v1214
      %v1234 = vsel %vm1217, %v1230, 0.0
      %1235 = vadd.xlane.f32.xlu0 %v1234
      %v1236 = vpop.xlane.xlu0 %1235
      %v1237 = vsel %vm1217, %v1231, 0.0
      %1238 = vadd.xlane.f32.xlu0 %v1237
      %v1239 = vpop.xlane.xlu0 %1238
      %v1240 = vsel %vm1217, %v1232, 0.0
      %1241 = vadd.xlane.f32.xlu0 %v1240
      %v1242 = vpop.xlane.xlu0 %1241
      %v1243 = vsel %vm1217, %v1233, 0.0
      %1244 = vadd.xlane.f32.xlu0 %v1243
      %v1245 = vpop.xlane.xlu0 %1244
      %v1246 = vld [vmem:[%s7] sm:$0xff]
      %v1247 = vld [vmem:[%s7 + $0x8] sm:$0xff]
      %v1248 = vld [vmem:[%s7 + $0x10] sm:$0xff]
      %v1249 = vld [vmem:[%s7 + $0x18] sm:$0xff]
      %vm1250 = vcmask 261120
      %v1252 = vsel %vm1250, %v1246, 0
      %v1255 = vsel %vm1250, %v1247, 0
      %v1258 = vsel %vm1250, %v1248, 0
      %v1261 = vsel %vm1250, %v1249, 0
      %1263 = vmatprep.subr.mxu0 0.0
      %1264 = vmatpush1.msra.mxu0 %v1220
      %1265 = vmatprep.subr.mxu0 0.0
      %1266 = vmatpush1.msra.mxu0 %v1223
      %1267 = vmatprep.subr.mxu0 0.0
      %1268 = vmatpush1.msra.mxu0 %v1226
      %1269 = vmatprep.subr.mxu0 0.0
      %1270 = vmatpush1.msra.mxu0 %v1229
      %1271 = vmatprep.subr.mxu0 0.0
      %1272 = vmatpush1.msra.mxu0 0.0
      %1273 = vmatprep.subr.mxu0 0.0
      %1274 = vmatpush1.msra.mxu0 0.0
      %1275 = vmatprep.subr.mxu0 0.0
      %1276 = vmatpush1.msra.mxu0 0.0
      %1277 = vmatprep.subr.mxu0 0.0
      %1278 = vmatpush1.msra.mxu0 0.0
      %1279 = vmatprep.subr.mxu0 0.0
      %1280 = vmatpush1.msra.mxu0 0.0
      %1281 = vmatprep.subr.mxu0 0.0
      %1282 = vmatpush1.msra.mxu0 0.0
      %1283 = vmatprep.subr.mxu0 0.0
      %1284 = vmatpush1.msra.mxu0 0.0
      %1285 = vmatprep.subr.mxu0 0.0
      %1286 = vmatpush1.msra.mxu0 0.0
      %1287 = vmatprep.subr.mxu0 0.0
      %1288 = vmatpush1.msra.mxu0 0.0
      %1289 = vmatprep.subr.mxu0 0.0
      %1290 = vmatpush1.msra.mxu0 0.0
      %1291 = vmatprep.subr.mxu0 0.0
      %1292 = vmatpush1.msra.mxu0 0.0
      %1293 = vmatprep.subr.mxu0 0.0
      %1294 = vmatpush1.msra.mxu0 0.0
      %1295 = vmatprep.subr.mxu0 0.0
      %1296 = vmatpush1.msra.mxu0 0.0
      %1297 = vmatprep.subr.mxu0 0.0
      %1298 = vmatpush1.msra.mxu0 0.0
      %1299 = vmatprep.subr.mxu0 0.0
      %1300 = vmatpush1.msra.mxu0 0.0
      %1301 = vmatprep.subr.mxu0 0.0
      %1302 = vmatpush1.msra.mxu0 0.0
      %1303 = vmatprep.subr.mxu0 0.0
      %1304 = vmatpush1.msra.mxu0 0.0
      %1305 = vmatprep.subr.mxu0 0.0
      %1306 = vmatpush1.msra.mxu0 0.0
      %1307 = vmatprep.subr.mxu0 0.0
      %1308 = vmatpush1.msra.mxu0 0.0
      %1309 = vmatprep.subr.mxu0 0.0
      %1310 = vmatpush1.msra.mxu0 0.0
      %1311 = vmatprep.subr.mxu0 0.0
      %1312 = vmatpush1.msra.mxu0 0.0
      %1313 = vmatprep.subr.mxu0 0.0
      %1314 = vmatpush1.msra.mxu0 0.0
      %1315 = vmatprep.subr.mxu0 0.0
      %1316 = vmatpush1.msra.mxu0 0.0
      %1317 = vmatprep.subr.mxu0 0.0
      %1318 = vmatpush1.msra.mxu0 0.0
      %1319 = vmatprep.subr.mxu0 0.0
      %1320 = vmatpush1.msra.mxu0 0.0
      %1321 = vmatprep.subr.mxu0 0.0
      %1322 = vmatpush1.msra.mxu0 0.0
      %1323 = vmatprep.subr.mxu0 0.0
      %1324 = vmatpush1.msra.mxu0 0.0
      %1325 = vmatprep.subr.mxu0 0.0
      %1326 = vmatpush1.msra.mxu0 0.0
      %1327 = vmatprep.mubr.f32.mxu0 0.0
      %1328 = vmatmul.mubr.f32.gmra.mrb[0].mxu0 %v1252
      %v1329 = vpop.f32.mrb[0].mxu0
      %v1330 = vadd.f32 0.0, %v1329
      %v1331 = vpop.f32.mrb[0].mxu0
      %1332 = vmatprep.mubr.f32.mxu0 0.0
      %1333 = vmatmul.mubr.f32.gmra.mrb[0].mxu0 %v1255
      %v1334 = vpop.f32.mrb[0].mxu0
      %v1335 = vadd.f32 0.0, %v1334
      %v1336 = vpop.f32.mrb[0].mxu0
      %1337 = vmatprep.mubr.f32.mxu0 0.0
      %1338 = vmatmul.mubr.f32.gmra.mrb[0].mxu0 %v1258
      %v1339 = vpop.f32.mrb[0].mxu0
      %v1340 = vadd.f32 0.0, %v1339
      %v1341 = vpop.f32.mrb[0].mxu0
      %1342 = vmatprep.mubr.f32.mxu0 0.0
      %1343 = vmatmul.mubr.f32.gmra.mrb[0].mxu0 %v1261
      %v1344 = vpop.f32.mrb[0].mxu0
      %v1345 = vadd.f32 0.0, %v1344
      %v1346 = vpop.f32.mrb[0].mxu0
      %1347 = vdwg.mxu0
      %v1348 = vrcp.pop 16.0
      %v1349 = vmul.f32 %v1330, %v1348
      %v1350 = vmul.f32 %v1335, %v1348
      %v1351 = vmul.f32 %v1340, %v1348
      %v1352 = vmul.f32 %v1345, %v1348
      %1353 = vmatprep.subr.mxu0 0.0
      %1354 = vmatpush1.msra.mxu0 %v1236
      %1355 = vmatprep.subr.mxu0 0.0
      %1356 = vmatpush1.msra.mxu0 %v1239
      %1357 = vmatprep.subr.mxu0 0.0
      %1358 = vmatpush1.msra.mxu0 %v1242
      %1359 = vmatprep.subr.mxu0 0.0
      %1360 = vmatpush1.msra.mxu0 %v1245
      %1361 = vmatprep.subr.mxu0 0.0
      %1362 = vmatpush1.msra.mxu0 0.0
      %1363 = vmatprep.subr.mxu0 0.0
      %1364 = vmatpush1.msra.mxu0 0.0
      %1365 = vmatprep.subr.mxu0 0.0
      %1366 = vmatpush1.msra.mxu0 0.0
      %1367 = vmatprep.subr.mxu0 0.0
      %1368 = vmatpush1.msra.mxu0 0.0
      %1369 = vmatprep.subr.mxu0 0.0
      %1370 = vmatpush1.msra.mxu0 0.0
      %1371 = vmatprep.subr.mxu0 0.0
      %1372 = vmatpush1.msra.mxu0 0.0
      %1373 = vmatprep.subr.mxu0 0.0
      %1374 = vmatpush1.msra.mxu0 0.0
      %1375 = vmatprep.subr.mxu0 0.0
      %1376 = vmatpush1.msra.mxu0 0.0
      %1377 = vmatprep.subr.mxu0 0.0
      %1378 = vmatpush1.msra.mxu0 0.0
      %1379 = vmatprep.subr.mxu0 0.0
      %1380 = vmatpush1.msra.mxu0 0.0
      %1381 = vmatprep.subr.mxu0 0.0
      %1382 = vmatpush1.msra.mxu0 0.0
      %1383 = vmatprep.subr.mxu0 0.0
      %1384 = vmatpush1.msra.mxu0 0.0
      %1385 = vmatprep.subr.mxu0 0.0
      %1386 = vmatpush1.msra.mxu0 0.0
      %1387 = vmatprep.subr.mxu0 0.0
      %1388 = vmatpush1.msra.mxu0 0.0
      %1389 = vmatprep.subr.mxu0 0.0
      %1390 = vmatpush1.msra.mxu0 0.0
      %1391 = vmatprep.subr.mxu0 0.0
      %1392 = vmatpush1.msra.mxu0 0.0
      %1393 = vmatprep.subr.mxu0 0.0
      %1394 = vmatpush1.msra.mxu0 0.0
      %1395 = vmatprep.subr.mxu0 0.0
      %1396 = vmatpush1.msra.mxu0 0.0
      %1397 = vmatprep.subr.mxu0 0.0
      %1398 = vmatpush1.msra.mxu0 0.0
      %1399 = vmatprep.subr.mxu0 0.0
      %1400 = vmatpush1.msra.mxu0 0.0
      %1401 = vmatprep.subr.mxu0 0.0
      %1402 = vmatpush1.msra.mxu0 0.0
      %1403 = vmatprep.subr.mxu0 0.0
      %1404 = vmatpush1.msra.mxu0 0.0
      %1405 = vmatprep.subr.mxu0 0.0
      %1406 = vmatpush1.msra.mxu0 0.0
      %1407 = vmatprep.subr.mxu0 0.0
      %1408 = vmatpush1.msra.mxu0 0.0
      %1409 = vmatprep.subr.mxu0 0.0
      %1410 = vmatpush1.msra.mxu0 0.0
      %1411 = vmatprep.subr.mxu0 0.0
      %1412 = vmatpush1.msra.mxu0 0.0
      %1413 = vmatprep.subr.mxu0 0.0
      %1414 = vmatpush1.msra.mxu0 0.0
      %1415 = vmatprep.subr.mxu0 0.0
      %1416 = vmatpush1.msra.mxu0 0.0
      %1417 = vmatprep.mubr.f32.mxu0 0.0
      %1418 = vmatmul.mubr.f32.gmra.mrb[0].mxu0 %v1252
      %v1419 = vpop.f32.mrb[0].mxu0
      %v1420 = vadd.f32 0.0, %v1419
      %v1421 = vpop.f32.mrb[0].mxu0
      %1422 = vmatprep.mubr.f32.mxu0 0.0
      %1423 = vmatmul.mubr.f32.gmra.mrb[0].mxu0 %v1255
      %v1424 = vpop.f32.mrb[0].mxu0
      %v1425 = vadd.f32 0.0, %v1424
      %v1426 = vpop.f32.mrb[0].mxu0
      %1427 = vmatprep.mubr.f32.mxu0 0.0
      %1428 = vmatmul.mubr.f32.gmra.mrb[0].mxu0 %v1258
      %v1429 = vpop.f32.mrb[0].mxu0
      %v1430 = vadd.f32 0.0, %v1429
      %v1431 = vpop.f32.mrb[0].mxu0
      %1432 = vmatprep.mubr.f32.mxu0 0.0
      %1433 = vmatmul.mubr.f32.gmra.mrb[0].mxu0 %v1261
      %v1434 = vpop.f32.mrb[0].mxu0
      %v1435 = vadd.f32 0.0, %v1434
      %v1436 = vpop.f32.mrb[0].mxu0
      %1437 = vdwg.mxu0
      %v1438 = vmul.f32 %v1420, %v1348
      %v1439 = vmul.f32 %v1425, %v1348
      %v1440 = vmul.f32 %v1430, %v1348
      %v1441 = vmul.f32 %v1435, %v1348
      %v1442 = vmul.f32 %v1349, %v1349
      %v1443 = vmul.f32 %v1350, %v1350
      %v1444 = vmul.f32 %v1351, %v1351
      %v1445 = vmul.f32 %v1352, %v1352
      %v1446 = vsub.f32 %v1438, %v1442
      %v1447 = vsub.f32 %v1439, %v1443
      %v1448 = vsub.f32 %v1440, %v1444
      %v1449 = vsub.f32 %v1441, %v1445
      %v1450 = vmax.f32 %v1446, 0.0
      %v1451 = vmax.f32 %v1447, 0.0
      %v1452 = vmax.f32 %v1448, 0.0
      %v1453 = vmax.f32 %v1449, 0.0
      %1455 = vset.pattern.permute.xlu0 0
      %1456 = vperm.xlu0 %1455, %v1349
      %v1457 = vpop.permute.xlu0 %1456
      %1460 = vset.pattern.permute.xlu0 0
      %1461 = vperm.xlu0 %1460, %v1350
      %v1462 = vpop.permute.xlu0 %1461
      %1465 = vset.pattern.permute.xlu0 0
      %1466 = vperm.xlu0 %1465, %v1351
      %v1467 = vpop.permute.xlu0 %1466
      %1470 = vset.pattern.permute.xlu0 0
      %1471 = vperm.xlu0 %1470, %v1352
      %v1472 = vpop.permute.xlu0 %1471
      %v1474 = vsub.f32 %v1203, %v1457
      %v1475 = vsub.f32 %v1206, %v1462
      %v1476 = vsub.f32 %v1211, %v1467
      %v1477 = vsub.f32 %v1214, %v1472
      %v1478 = vadd.f32 %v1450, 1e-05
      %v1479 = vadd.f32 %v1451, 1e-05
      %v1480 = vadd.f32 %v1452, 1e-05
      %v1481 = vadd.f32 %v1453, 1e-05
      %v1482 = vrsqrt.pop %v1478
      %v1483 = vrsqrt.pop %v1479
      %v1484 = vrsqrt.pop %v1480
      %v1485 = vrsqrt.pop %v1481
      %1487 = vset.pattern.permute.xlu0 0
      %1488 = vperm.xlu0 %1487, %v1482
      %v1489 = vpop.permute.xlu0 %1488
      %1492 = vset.pattern.permute.xlu0 0
      %1493 = vperm.xlu0 %1492, %v1483
      %v1494 = vpop.permute.xlu0 %1493
      %1497 = vset.pattern.permute.xlu0 0
      %1498 = vperm.xlu0 %1497, %v1484
      %v1499 = vpop.permute.xlu0 %1498
      %1502 = vset.pattern.permute.xlu0 0
      %1503 = vperm.xlu0 %1502, %v1485
      %v1504 = vpop.permute.xlu0 %1503
      %v1506 = vmul.f32 %v1474, %v1489
      %v1507 = vmul.f32 %v1475, %v1494
      %v1508 = vmul.f32 %v1476, %v1499
      %v1509 = vmul.f32 %v1477, %v1504
      %v1510 = vld [vmem:[%s3] sm:$0xff]
      %v1511 = vld [vmem:[%s3 + $0x8] sm:$0xff]
      %v1512 = vld [vmem:[%s3 + $0x10] sm:$0xff]
      %v1513 = vld [vmem:[%s3 + $0x18] sm:$0xff]
      %1515 = vset.pattern.permute.xlu0 0
      %1516 = vperm.xlu0 %1515, %v1510
      %v1517 = vpop.permute.xlu0 %1516
      %1520 = vset.pattern.permute.xlu0 0
      %1521 = vperm.xlu0 %1520, %v1511
      %v1522 = vpop.permute.xlu0 %1521
      %1525 = vset.pattern.permute.xlu0 0
      %1526 = vperm.xlu0 %1525, %v1512
      %v1527 = vpop.permute.xlu0 %1526
      %1530 = vset.pattern.permute.xlu0 0
      %1531 = vperm.xlu0 %1530, %v1513
      %v1532 = vpop.permute.xlu0 %1531
      %v1534 = vmul.f32 %v1506, %v1517
      %v1535 = vmul.f32 %v1507, %v1522
      %v1536 = vmul.f32 %v1508, %v1527
      %v1537 = vmul.f32 %v1509, %v1532
      %v1538 = vld [vmem:[%s4] sm:$0xff]
      %v1539 = vld [vmem:[%s4 + $0x8] sm:$0xff]
      %v1540 = vld [vmem:[%s4 + $0x10] sm:$0xff]
      %v1541 = vld [vmem:[%s4 + $0x18] sm:$0xff]
      %1543 = vset.pattern.permute.xlu0 0
      %1544 = vperm.xlu0 %1543, %v1538
      %v1545 = vpop.permute.xlu0 %1544
      %1548 = vset.pattern.permute.xlu0 0
      %1549 = vperm.xlu0 %1548, %v1539
      %v1550 = vpop.permute.xlu0 %1549
      %1553 = vset.pattern.permute.xlu0 0
      %1554 = vperm.xlu0 %1553, %v1540
      %v1555 = vpop.permute.xlu0 %1554
      %1558 = vset.pattern.permute.xlu0 0
      %1559 = vperm.xlu0 %1558, %v1541
      %v1560 = vpop.permute.xlu0 %1559
      %v1562 = vadd.f32 %v1534, %v1545
      %v1563 = vadd.f32 %v1535, %v1550
      %v1564 = vadd.f32 %v1536, %v1555
      %v1565 = vadd.f32 %v1537, %v1560
      %v1566 = vld [vmem:[%s5] sm:$0xff]
      %v1567 = vld [vmem:[%s5 + $0x8] sm:$0xff]
      %v1568 = vld [vmem:[%s5 + $0x10] sm:$0xff]
      %v1569 = vld [vmem:[%s5 + $0x18] sm:$0xff]
      %v1570 = vadd.f32 %v1562, %v1566
      %v1571 = vadd.f32 %v1563, %v1567
      %v1572 = vadd.f32 %v1564, %v1568
      %v1573 = vadd.f32 %v1565, %v1569
      %v1574 = vld [vmem:[%s314] sm:$0x1]
      %v1576 = vlaneseq
      %v1577 = vshrl.u32 %v1576, 7
      %v1578 = vsub.s32 0, %v1577
      %v1579 = vrot.slane %v1574, %v1578
      %v1581 = vmul.f32 %v1570, %v1579
      %v1582 = vmul.f32 %v1571, %v1579
      %v1583 = vmul.f32 %v1572, %v1579
      %v1584 = vmul.f32 %v1573, %v1579
      %1585 = vxpose.xlu0.b32.start [1/16] %v1581, 128
      %1586 = vxpose.xlu0.b32.cont [2/16] %v1582, 128
      %1587 = vxpose.xlu0.b32.cont [3/16] %v1583, 128
      %1588 = vxpose.xlu0.b32.cont [4/16] %v1584, 128
      %1589 = vxpose.xlu0.b32.cont [5/16] 0.0, 128
      %1590 = vxpose.xlu0.b32.cont [6/16] 0.0, 128
      %1591 = vxpose.xlu0.b32.cont [7/16] 0.0, 128
      %1592 = vxpose.xlu0.b32.cont [8/16] 0.0, 128
      %1593 = vxpose.xlu0.b32.cont [9/16] 0.0, 128
      %1594 = vxpose.xlu0.b32.cont [10/16] 0.0, 128
      %1595 = vxpose.xlu0.b32.cont [11/16] 0.0, 128
      %1596 = vxpose.xlu0.b32.cont [12/16] 0.0, 128
      %1597 = vxpose.xlu0.b32.cont [13/16] 0.0, 128
      %1598 = vxpose.xlu0.b32.cont [14/16] 0.0, 128
      %1599 = vxpose.xlu0.b32.cont [15/16] 0.0, 128
      %1600 = vxpose.xlu0.b32.end [16/16] 0.0, 128
      %v1601 = vpop.trf.xlu0
      %v1602 = vpop.trf.xlu0
      %v1603 = vpop.trf.xlu0
      %v1604 = vpop.trf.xlu0
      %v1605 = vpop.trf.xlu0
      %v1606 = vpop.trf.xlu0
      %v1607 = vpop.trf.xlu0
      %v1608 = vpop.trf.xlu0
      %v1609 = vpop.trf.xlu0
      %v1610 = vpop.trf.xlu0
      %v1611 = vpop.trf.xlu0
      %v1612 = vpop.trf.xlu0
      %v1613 = vpop.trf.xlu0
      %v1614 = vpop.trf.xlu0
      %v1615 = vpop.trf.xlu0
      %v1616 = vpop.trf.xlu0
      %1617 = vst.msk [vmem:[%s319] sm:$0xff] %vm1250, %v1601
      %1618 = vst.msk [vmem:[%s319 + $0x8] sm:$0xff] %vm1250, %v1602
      %p1619 = scmp.lt.s32.totalorder %s19, 1
      %s1620 = scalar_select %p1619, %s19, 1
      %s1621 = smul.addr %s1620, 2
      %s1622 = smul.addr %s1621, 8
      %s1623 = scalar_lea.vmem %s8, %s1622
      // Predicated region
      $region53: #{tadtr_forward.3} parent=51 // pred_check
        %p1624 = pneg %p215
      $region54: #{tadtr_forward.3} parent=51 // pred_check_branch
        %1626 = sbr.rel (%p1624) target = $region56
      $region55: #{tadtr_forward.3} parent=51 // pred_region
        _
      $region56: #{tadtr_forward.3} parent=51 // pred_fallthru
        _
    $region52: #{tadtr_forward.3} parent=5 // pred_fallthru
      _
    %p1627 = scmp.le.s32.totalorder 2, %s14
    // Predicated region
    $region57: #{tadtr_forward.3} parent=5 // pred_check
      %p1628 = pneg %p1627
    $region58: #{tadtr_forward.3} parent=5 // pred_check_branch
      %1630 = sbr.rel (%p1628) target = $region60
    $region59: #{tadtr_forward.3} parent=5 // pred_region
      %s1631 = ssub.s32 %s14, 2
      // Predicated region
      $region61: #{tadtr_forward.3} parent=59 // pred_check
        %p1632 = pneg %p221
      $region62: #{tadtr_forward.3} parent=59 // pred_check_branch
        %1634 = sbr.rel (%p1632) target = $region64
      $region63: #{tadtr_forward.3} parent=59 // pred_region
        %p1635 = scmp.lt.s32.totalorder %s20, 1
        %s1636 = scalar_select %p1635, %s20, 1
        %s1637 = smul.addr %s1636, 2
        %s1638 = smul.addr %s1637, 8
        %s1639 = scalar_lea.vmem %s8, %s1638
      $region64: #{tadtr_forward.3} parent=59 // pred_fallthru
        _
    $region60: #{tadtr_forward.3} parent=5 // pred_fallthru
      _
  $region6: #{tadtr_forward.3} parent=0 // loop_footer
    %s18 = sadd.s32 1, %s14
  $region7: #{tadtr_forward.3} parent=0 // loop_footer_branch
    %13 = sbr.rel target = $region3
  $region8: #{tadtr_forward.3} parent=0 // loop_exit
    _

</llo_original>
